<compile_context>
chip_gen: v6e
topology: v6e:2x2x1
jax: 0.10.0
libtpu: 0.0.40
codegen_flags: <defaults>
</compile_context>

<pallas_src>
import jax
import jax.numpy as jnp
from jax import lax
from jax.experimental import pallas as pl
from jax.experimental.pallas import tpu as pltpu


def _triple(v):
    return (v, v, v) if isinstance(v, int) else tuple(v)


def _round_up(x, m):
    return ((x + m - 1) // m) * m


# ---------------------------------------------------------------------------
# Module wrapper (NCDHW in / NCDHW out, matching PyTorch Convolution.forward)
# ---------------------------------------------------------------------------
def convolution_adn(x, conv_w, conv_b, prelu_a, *, stride=1, padding=0):
    """
    x:       (N, Cin, D, H, W)
    conv_w:  (Cout, Cin, kd, kh, kw)   PyTorch Conv3d weight layout
    conv_b:  (Cout,)  -- accepted for API parity; mathematically cancelled by
                         InstanceNorm3d(affine=False), so it is not sent to the kernel.
    prelu_a: scalar PReLU slope (PyTorch default 0.25)
    """
    del conv_b  # cancelled exactly by the per-(n,c) mean subtraction in InstanceNorm3d

    N, Cin, D, H, W = x.shape
    Cout, _, kd, kh, kw = conv_w.shape
    sd, sh, sw = _triple(stride)
    pd, ph, pw = _triple(padding)

    Dp, Hp, Wp = D + 2 * pd, H + 2 * ph, W + 2 * pw
    Do = (Dp - kd) // sd + 1
    Ho = (Hp - kh) // sh + 1
    Wo = (Wp - kw) // sw + 1
    R = Do * Ho * Wo                         # number of valid output voxels
    P = Dp * Hp * Wp                         # flattened padded grid size

    # Flattened padded-grid index of the last valid output voxel, and the largest
    # kernel-tap lane offset.  acc[p] for p in [0, L) reads x_flat[p + tap_off].
    max_p = (Do - 1) * sd * Hp * Wp + (Ho - 1) * sh * Wp + (Wo - 1) * sw
    t_max = (kd - 1) * Hp * Wp + (kh - 1) * Wp + (kw - 1)
    L = _round_up(max_p + 1, 128)            # lane-dense output width
    Pp = _round_up(max(P, L + t_max), 128)   # lane-dense, slice-safe input width

    # --- host-side layout glue (no data duplication) ---------------------------
    x_pad = jnp.pad(x, ((0, 0), (0, 0), (pd, pd), (ph, ph), (pw, pw)))
    x_flat = x_pad.reshape(N, Cin, P)
    x_flat = jnp.pad(x_flat, ((0, 0), (0, 0), (0, Pp - P))).astype(jnp.bfloat16)

    ntaps = kd * kh * kw
    K = Cin * ntaps
    # per-tap weight slabs: (ntaps, Cout, Cin), bf16 for the MXU
    w_taps = jnp.transpose(conv_w, (2, 3, 4, 0, 1)).reshape(ntaps, Cout, Cin)
    w_taps = w_taps.astype(jnp.bfloat16)
    tap_off = [i * Hp * Wp + j * Wp + k
               for i in range(kd) for j in range(kh) for k in range(kw)]

    # valid-output lane mask on the padded grid (f32, (1, L))
    m3 = jnp.zeros((Dp, Hp, Wp), jnp.float32)
    m3 = m3.at[0:(Do - 1) * sd + 1:sd,
               0:(Ho - 1) * sh + 1:sh,
               0:(Wo - 1) * sw + 1:sw].set(1.0)
    mask = m3.reshape(-1)
    mask = jnp.pad(mask, (0, max(0, L - P)))[:L].reshape(1, L)

    a_smem = jnp.asarray(prelu_a, jnp.float32).reshape(1)

    inv_r = 1.0 / float(R)
    eps = 1e-5

    # --- fused kernel: conv (shift-and-matmul) + masked InstanceNorm + PReLU ---
    def _conv_adn_kernel(x_ref, w_ref, m_ref, a_ref, o_ref):
        # x_ref: (1, Cin, Pp) bf16   w_ref: (ntaps, Cout, Cin) bf16
        # m_ref: (1, L) f32          a_ref: (1,) f32 in SMEM
        # o_ref: (1, Cout, L)
        xw = x_ref[0]                                          # (Cin, Pp) bf16
        acc = jnp.zeros((Cout, L), jnp.float32)
        for t in range(ntaps):                                 # unrolled kd*kh*kw taps
            off = tap_off[t]
            acc = acc + jnp.dot(w_ref[t], xw[:, off:off + L],
                                preferred_element_type=jnp.float32)

        # InstanceNorm3d over the R valid voxels only (biased variance).
        msk = m_ref[...]                                       # (1, L)
        mean = jnp.sum(acc * msk, axis=-1, keepdims=True) * inv_r
        cen = acc - mean
        var = jnp.sum(cen * cen * msk, axis=-1, keepdims=True) * inv_r
        h = cen * lax.rsqrt(var + eps)

        # Dropout(p=0.0) == identity.  PReLU with a shared scalar slope from SMEM.
        a = a_ref[0]
        o_ref[0] = jnp.where(h >= 0.0, h, h * a).astype(o_ref.dtype)

    out = pl.pallas_call(
        _conv_adn_kernel,
        out_shape=jax.ShapeDtypeStruct((N, Cout, L), x.dtype),
        grid_spec=pltpu.PrefetchScalarGridSpec(
            num_scalar_prefetch=0,
            grid=(N,),
            in_specs=[
                pl.BlockSpec((1, Cin, Pp), lambda n: (n, 0, 0)),     # padded input sample
                pl.BlockSpec((ntaps, Cout, Cin), lambda n: (0, 0, 0)),  # weights (full)
                pl.BlockSpec((1, L), lambda n: (0, 0)),              # valid-lane mask
                pl.BlockSpec(memory_space=pltpu.SMEM),               # PReLU slope scalar
            ],
            out_specs=pl.BlockSpec((1, Cout, L), lambda n: (n, 0, 0)),
        ),
        compiler_params=pltpu.CompilerParams(
            dimension_semantics=("parallel",),        # megacore: split batch on v7x
            vmem_limit_bytes=32 * 1024 * 1024),
        cost_estimate=pl.CostEstimate(
            flops=2 * N * Cout * K * R,
            transcendentals=N * Cout,
            bytes_accessed=(N * Cin * Pp * 2 + w_taps.size * 2
                            + L * 4 + N * Cout * L * 4)),
    )(x_flat, w_taps, mask, a_smem)

    # --- host-side extraction: padded grid -> (N, Cout, Do, Ho, Wo) ------------
    if L < P:
        out = jnp.pad(out, ((0, 0), (0, 0), (0, P - L)))
    else:
        out = out[:, :, :P]
    out = out.reshape(N, Cout, Dp, Hp, Wp)
    out = out[:, :,
              0:(Do - 1) * sd + 1:sd,
              0:(Ho - 1) * sh + 1:sh,
              0:(Wo - 1) * sw + 1:sw]
    return out


# ---------------------------------------------------------------------------
# Demo / self-test
# ---------------------------------------------------------------------------
if __name__ == "__main__":
    key = jax.random.PRNGKey(0)
    k_x, k_w, k_b = jax.random.split(key, 3)

    # Convolution(in_channels=4, out_channels=8, kernel_size=3, stride=1, padding=1)
    N, Cin, Cout = 2, 4, 8
    D = H = W = 8
    kd = kh = kw = 3
    stride, padding = 1, 1

    x = jax.random.normal(k_x, (N, Cin, D, H, W), jnp.float32)
    conv_w = 0.1 * jax.random.normal(k_w, (Cout, Cin, kd, kh, kw), jnp.float32)
    conv_b = 0.1 * jax.random.normal(k_b, (Cout,), jnp.float32)
    prelu_a = 0.25                      # nn.PReLU() default init

    out = convolution_adn(x, conv_w, conv_b, prelu_a, stride=stride, padding=padding)
    out = jax.block_until_ready(out)

    # Pure-JAX f32 reference (Conv3d -> InstanceNorm3d -> Dropout(0) -> PReLU).
    dn = lax.conv_dimension_numbers(x.shape, conv_w.shape, ("NCDHW", "OIDHW", "NCDHW"))
    ref = lax.conv_general_dilated(
        x, conv_w, window_strides=(stride,) * 3,
        padding=((padding, padding),) * 3, dimension_numbers=dn,
        precision=lax.Precision.HIGHEST)
    ref = ref + conv_b.reshape(1, Cout, 1, 1, 1)   # cancelled by the norm anyway
    mean = jnp.mean(ref, axis=(2, 3, 4), keepdims=True)
    var = jnp.mean((ref - mean) ** 2, axis=(2, 3, 4), keepdims=True)
    ref = (ref - mean) / jnp.sqrt(var + 1e-5)
    ref = jnp.where(ref >= 0.0, ref, prelu_a * ref)

    assert out.shape == ref.shape
    # bf16 MXU operands -> ~1e-2 absolute tolerance on unit-variance outputs.
    assert jnp.allclose(out, ref, atol=2e-2, rtol=2e-2)

    print("KERNEL_OK")
</pallas_src>

<mosaic_0001>
module attributes {stable_mosaic.version = 11 : i64} {
  func.func @_conv_adn_kernel(%arg0: i32, %arg1: memref<1x4x1152xbf16, #tpu.memory_space<vmem>>, %arg2: memref<27x8x4xbf16, #tpu.memory_space<vmem>>, %arg3: memref<1x896xf32, #tpu.memory_space<vmem>>, %arg4: memref<1xf32, #tpu.memory_space<smem>>, %arg5: memref<1x8x896xf32, #tpu.memory_space<vmem>>) attributes {dimension_semantics = [#tpu.dimension_semantics<parallel>], iteration_bounds = array<i64: 2>, scalar_prefetch = 0 : i64, scratch_operands = 0 : i64, tpu.core_type = #tpu.core_type<tc>, window_params = [{transform_indices = @transform_0, window_bounds = array<i64: 1, 4, 1152>}, {pipeline_mode = #tpu.pipeline_mode<synchronous>, transform_indices = @transform_1, window_bounds = array<i64: 27, 8, 4>}, {pipeline_mode = #tpu.pipeline_mode<synchronous>, transform_indices = @transform_2, window_bounds = array<i64: 1, 896>}, {transform_indices = @transform_3, window_bounds = array<i64: 1>}, {transform_indices = @transform_4, window_bounds = array<i64: 1, 8, 896>}]} {
    %c0 = arith.constant 0 : index
    %c0_0 = arith.constant 0 : index
    %c0_1 = arith.constant 0 : index
    %0 = vector.load %arg1[%c0, %c0_0, %c0_1] : memref<1x4x1152xbf16, #tpu.memory_space<vmem>>, vector<1x4x1152xbf16>
    %1 = vector.shape_cast %0 : vector<1x4x1152xbf16> to vector<4x1152xbf16>
    %cst = arith.constant 0.000000e+00 : f32
    %2 = vector.broadcast %cst : f32 to vector<8x896xf32>
    %c0_2 = arith.constant 0 : index
    %c0_3 = arith.constant 0 : index
    %c0_4 = arith.constant 0 : index
    %3 = vector.load %arg2[%c0_2, %c0_3, %c0_4] : memref<27x8x4xbf16, #tpu.memory_space<vmem>>, vector<1x8x4xbf16>
    %4 = vector.shape_cast %3 : vector<1x8x4xbf16> to vector<8x4xbf16>
    %5 = vector.extract_strided_slice %1 {offsets = [0, 0], sizes = [4, 896], strides = [1, 1]} : vector<4x1152xbf16> to vector<4x896xbf16>
    %cst_5 = arith.constant dense<0.000000e+00> : vector<8x896xf32>
    %6 = tpu.matmul %4, %5, %cst_5 {dimension_numbers = #tpu.dot_dimension_numbers<[1], [0], [0], [1], [0, 0, 1, 1], [], []>} : vector<8x4xbf16>, vector<4x896xbf16>, vector<8x896xf32> -> vector<8x896xf32>
    %7 = arith.addf %2, %6 : vector<8x896xf32>
    %c1 = arith.constant 1 : index
    %c0_6 = arith.constant 0 : index
    %c0_7 = arith.constant 0 : index
    %8 = vector.load %arg2[%c1, %c0_6, %c0_7] : memref<27x8x4xbf16, #tpu.memory_space<vmem>>, vector<1x8x4xbf16>
    %9 = vector.shape_cast %8 : vector<1x8x4xbf16> to vector<8x4xbf16>
    %10 = vector.extract_strided_slice %1 {offsets = [0, 1], sizes = [4, 896], strides = [1, 1]} : vector<4x1152xbf16> to vector<4x896xbf16>
    %cst_8 = arith.constant dense<0.000000e+00> : vector<8x896xf32>
    %11 = tpu.matmul %9, %10, %cst_8 {dimension_numbers = #tpu.dot_dimension_numbers<[1], [0], [0], [1], [0, 0, 1, 1], [], []>} : vector<8x4xbf16>, vector<4x896xbf16>, vector<8x896xf32> -> vector<8x896xf32>
    %12 = arith.addf %7, %11 : vector<8x896xf32>
    %c2 = arith.constant 2 : index
    %c0_9 = arith.constant 0 : index
    %c0_10 = arith.constant 0 : index
    %13 = vector.load %arg2[%c2, %c0_9, %c0_10] : memref<27x8x4xbf16, #tpu.memory_space<vmem>>, vector<1x8x4xbf16>
    %14 = vector.shape_cast %13 : vector<1x8x4xbf16> to vector<8x4xbf16>
    %15 = vector.extract_strided_slice %1 {offsets = [0, 2], sizes = [4, 896], strides = [1, 1]} : vector<4x1152xbf16> to vector<4x896xbf16>
    %cst_11 = arith.constant dense<0.000000e+00> : vector<8x896xf32>
    %16 = tpu.matmul %14, %15, %cst_11 {dimension_numbers = #tpu.dot_dimension_numbers<[1], [0], [0], [1], [0, 0, 1, 1], [], []>} : vector<8x4xbf16>, vector<4x896xbf16>, vector<8x896xf32> -> vector<8x896xf32>
    %17 = arith.addf %12, %16 : vector<8x896xf32>
    %c3 = arith.constant 3 : index
    %c0_12 = arith.constant 0 : index
    %c0_13 = arith.constant 0 : index
    %18 = vector.load %arg2[%c3, %c0_12, %c0_13] : memref<27x8x4xbf16, #tpu.memory_space<vmem>>, vector<1x8x4xbf16>
    %19 = vector.shape_cast %18 : vector<1x8x4xbf16> to vector<8x4xbf16>
    %20 = vector.extract_strided_slice %1 {offsets = [0, 10], sizes = [4, 896], strides = [1, 1]} : vector<4x1152xbf16> to vector<4x896xbf16>
    %cst_14 = arith.constant dense<0.000000e+00> : vector<8x896xf32>
    %21 = tpu.matmul %19, %20, %cst_14 {dimension_numbers = #tpu.dot_dimension_numbers<[1], [0], [0], [1], [0, 0, 1, 1], [], []>} : vector<8x4xbf16>, vector<4x896xbf16>, vector<8x896xf32> -> vector<8x896xf32>
    %22 = arith.addf %17, %21 : vector<8x896xf32>
    %c4 = arith.constant 4 : index
    %c0_15 = arith.constant 0 : index
    %c0_16 = arith.constant 0 : index
    %23 = vector.load %arg2[%c4, %c0_15, %c0_16] : memref<27x8x4xbf16, #tpu.memory_space<vmem>>, vector<1x8x4xbf16>
    %24 = vector.shape_cast %23 : vector<1x8x4xbf16> to vector<8x4xbf16>
    %25 = vector.extract_strided_slice %1 {offsets = [0, 11], sizes = [4, 896], strides = [1, 1]} : vector<4x1152xbf16> to vector<4x896xbf16>
    %cst_17 = arith.constant dense<0.000000e+00> : vector<8x896xf32>
    %26 = tpu.matmul %24, %25, %cst_17 {dimension_numbers = #tpu.dot_dimension_numbers<[1], [0], [0], [1], [0, 0, 1, 1], [], []>} : vector<8x4xbf16>, vector<4x896xbf16>, vector<8x896xf32> -> vector<8x896xf32>
    %27 = arith.addf %22, %26 : vector<8x896xf32>
    %c5 = arith.constant 5 : index
    %c0_18 = arith.constant 0 : index
    %c0_19 = arith.constant 0 : index
    %28 = vector.load %arg2[%c5, %c0_18, %c0_19] : memref<27x8x4xbf16, #tpu.memory_space<vmem>>, vector<1x8x4xbf16>
    %29 = vector.shape_cast %28 : vector<1x8x4xbf16> to vector<8x4xbf16>
    %30 = vector.extract_strided_slice %1 {offsets = [0, 12], sizes = [4, 896], strides = [1, 1]} : vector<4x1152xbf16> to vector<4x896xbf16>
    %cst_20 = arith.constant dense<0.000000e+00> : vector<8x896xf32>
    %31 = tpu.matmul %29, %30, %cst_20 {dimension_numbers = #tpu.dot_dimension_numbers<[1], [0], [0], [1], [0, 0, 1, 1], [], []>} : vector<8x4xbf16>, vector<4x896xbf16>, vector<8x896xf32> -> vector<8x896xf32>
    %32 = arith.addf %27, %31 : vector<8x896xf32>
    %c6 = arith.constant 6 : index
    %c0_21 = arith.constant 0 : index
    %c0_22 = arith.constant 0 : index
    %33 = vector.load %arg2[%c6, %c0_21, %c0_22] : memref<27x8x4xbf16, #tpu.memory_space<vmem>>, vector<1x8x4xbf16>
    %34 = vector.shape_cast %33 : vector<1x8x4xbf16> to vector<8x4xbf16>
    %35 = vector.extract_strided_slice %1 {offsets = [0, 20], sizes = [4, 896], strides = [1, 1]} : vector<4x1152xbf16> to vector<4x896xbf16>
    %cst_23 = arith.constant dense<0.000000e+00> : vector<8x896xf32>
    %36 = tpu.matmul %34, %35, %cst_23 {dimension_numbers = #tpu.dot_dimension_numbers<[1], [0], [0], [1], [0, 0, 1, 1], [], []>} : vector<8x4xbf16>, vector<4x896xbf16>, vector<8x896xf32> -> vector<8x896xf32>
    %37 = arith.addf %32, %36 : vector<8x896xf32>
    %c7 = arith.constant 7 : index
    %c0_24 = arith.constant 0 : index
    %c0_25 = arith.constant 0 : index
    %38 = vector.load %arg2[%c7, %c0_24, %c0_25] : memref<27x8x4xbf16, #tpu.memory_space<vmem>>, vector<1x8x4xbf16>
    %39 = vector.shape_cast %38 : vector<1x8x4xbf16> to vector<8x4xbf16>
    %40 = vector.extract_strided_slice %1 {offsets = [0, 21], sizes = [4, 896], strides = [1, 1]} : vector<4x1152xbf16> to vector<4x896xbf16>
    %cst_26 = arith.constant dense<0.000000e+00> : vector<8x896xf32>
    %41 = tpu.matmul %39, %40, %cst_26 {dimension_numbers = #tpu.dot_dimension_numbers<[1], [0], [0], [1], [0, 0, 1, 1], [], []>} : vector<8x4xbf16>, vector<4x896xbf16>, vector<8x896xf32> -> vector<8x896xf32>
    %42 = arith.addf %37, %41 : vector<8x896xf32>
    %c8 = arith.constant 8 : index
    %c0_27 = arith.constant 0 : index
    %c0_28 = arith.constant 0 : index
    %43 = vector.load %arg2[%c8, %c0_27, %c0_28] : memref<27x8x4xbf16, #tpu.memory_space<vmem>>, vector<1x8x4xbf16>
    %44 = vector.shape_cast %43 : vector<1x8x4xbf16> to vector<8x4xbf16>
    %45 = vector.extract_strided_slice %1 {offsets = [0, 22], sizes = [4, 896], strides = [1, 1]} : vector<4x1152xbf16> to vector<4x896xbf16>
    %cst_29 = arith.constant dense<0.000000e+00> : vector<8x896xf32>
    %46 = tpu.matmul %44, %45, %cst_29 {dimension_numbers = #tpu.dot_dimension_numbers<[1], [0], [0], [1], [0, 0, 1, 1], [], []>} : vector<8x4xbf16>, vector<4x896xbf16>, vector<8x896xf32> -> vector<8x896xf32>
    %47 = arith.addf %42, %46 : vector<8x896xf32>
    %c9 = arith.constant 9 : index
    %c0_30 = arith.constant 0 : index
    %c0_31 = arith.constant 0 : index
    %48 = vector.load %arg2[%c9, %c0_30, %c0_31] : memref<27x8x4xbf16, #tpu.memory_space<vmem>>, vector<1x8x4xbf16>
    %49 = vector.shape_cast %48 : vector<1x8x4xbf16> to vector<8x4xbf16>
    %50 = vector.extract_strided_slice %1 {offsets = [0, 100], sizes = [4, 896], strides = [1, 1]} : vector<4x1152xbf16> to vector<4x896xbf16>
    %cst_32 = arith.constant dense<0.000000e+00> : vector<8x896xf32>
    %51 = tpu.matmul %49, %50, %cst_32 {dimension_numbers = #tpu.dot_dimension_numbers<[1], [0], [0], [1], [0, 0, 1, 1], [], []>} : vector<8x4xbf16>, vector<4x896xbf16>, vector<8x896xf32> -> vector<8x896xf32>
    %52 = arith.addf %47, %51 : vector<8x896xf32>
    %c10 = arith.constant 10 : index
    %c0_33 = arith.constant 0 : index
    %c0_34 = arith.constant 0 : index
    %53 = vector.load %arg2[%c10, %c0_33, %c0_34] : memref<27x8x4xbf16, #tpu.memory_space<vmem>>, vector<1x8x4xbf16>
    %54 = vector.shape_cast %53 : vector<1x8x4xbf16> to vector<8x4xbf16>
    %55 = vector.extract_strided_slice %1 {offsets = [0, 101], sizes = [4, 896], strides = [1, 1]} : vector<4x1152xbf16> to vector<4x896xbf16>
    %cst_35 = arith.constant dense<0.000000e+00> : vector<8x896xf32>
    %56 = tpu.matmul %54, %55, %cst_35 {dimension_numbers = #tpu.dot_dimension_numbers<[1], [0], [0], [1], [0, 0, 1, 1], [], []>} : vector<8x4xbf16>, vector<4x896xbf16>, vector<8x896xf32> -> vector<8x896xf32>
    %57 = arith.addf %52, %56 : vector<8x896xf32>
    %c11 = arith.constant 11 : index
    %c0_36 = arith.constant 0 : index
    %c0_37 = arith.constant 0 : index
    %58 = vector.load %arg2[%c11, %c0_36, %c0_37] : memref<27x8x4xbf16, #tpu.memory_space<vmem>>, vector<1x8x4xbf16>
    %59 = vector.shape_cast %58 : vector<1x8x4xbf16> to vector<8x4xbf16>
    %60 = vector.extract_strided_slice %1 {offsets = [0, 102], sizes = [4, 896], strides = [1, 1]} : vector<4x1152xbf16> to vector<4x896xbf16>
    %cst_38 = arith.constant dense<0.000000e+00> : vector<8x896xf32>
    %61 = tpu.matmul %59, %60, %cst_38 {dimension_numbers = #tpu.dot_dimension_numbers<[1], [0], [0], [1], [0, 0, 1, 1], [], []>} : vector<8x4xbf16>, vector<4x896xbf16>, vector<8x896xf32> -> vector<8x896xf32>
    %62 = arith.addf %57, %61 : vector<8x896xf32>
    %c12 = arith.constant 12 : index
    %c0_39 = arith.constant 0 : index
    %c0_40 = arith.constant 0 : index
    %63 = vector.load %arg2[%c12, %c0_39, %c0_40] : memref<27x8x4xbf16, #tpu.memory_space<vmem>>, vector<1x8x4xbf16>
    %64 = vector.shape_cast %63 : vector<1x8x4xbf16> to vector<8x4xbf16>
    %65 = vector.extract_strided_slice %1 {offsets = [0, 110], sizes = [4, 896], strides = [1, 1]} : vector<4x1152xbf16> to vector<4x896xbf16>
    %cst_41 = arith.constant dense<0.000000e+00> : vector<8x896xf32>
    %66 = tpu.matmul %64, %65, %cst_41 {dimension_numbers = #tpu.dot_dimension_numbers<[1], [0], [0], [1], [0, 0, 1, 1], [], []>} : vector<8x4xbf16>, vector<4x896xbf16>, vector<8x896xf32> -> vector<8x896xf32>
    %67 = arith.addf %62, %66 : vector<8x896xf32>
    %c13 = arith.constant 13 : index
    %c0_42 = arith.constant 0 : index
    %c0_43 = arith.constant 0 : index
    %68 = vector.load %arg2[%c13, %c0_42, %c0_43] : memref<27x8x4xbf16, #tpu.memory_space<vmem>>, vector<1x8x4xbf16>
    %69 = vector.shape_cast %68 : vector<1x8x4xbf16> to vector<8x4xbf16>
    %70 = vector.extract_strided_slice %1 {offsets = [0, 111], sizes = [4, 896], strides = [1, 1]} : vector<4x1152xbf16> to vector<4x896xbf16>
    %cst_44 = arith.constant dense<0.000000e+00> : vector<8x896xf32>
    %71 = tpu.matmul %69, %70, %cst_44 {dimension_numbers = #tpu.dot_dimension_numbers<[1], [0], [0], [1], [0, 0, 1, 1], [], []>} : vector<8x4xbf16>, vector<4x896xbf16>, vector<8x896xf32> -> vector<8x896xf32>
    %72 = arith.addf %67, %71 : vector<8x896xf32>
    %c14 = arith.constant 14 : index
    %c0_45 = arith.constant 0 : index
    %c0_46 = arith.constant 0 : index
    %73 = vector.load %arg2[%c14, %c0_45, %c0_46] : memref<27x8x4xbf16, #tpu.memory_space<vmem>>, vector<1x8x4xbf16>
    %74 = vector.shape_cast %73 : vector<1x8x4xbf16> to vector<8x4xbf16>
    %75 = vector.extract_strided_slice %1 {offsets = [0, 112], sizes = [4, 896], strides = [1, 1]} : vector<4x1152xbf16> to vector<4x896xbf16>
    %cst_47 = arith.constant dense<0.000000e+00> : vector<8x896xf32>
    %76 = tpu.matmul %74, %75, %cst_47 {dimension_numbers = #tpu.dot_dimension_numbers<[1], [0], [0], [1], [0, 0, 1, 1], [], []>} : vector<8x4xbf16>, vector<4x896xbf16>, vector<8x896xf32> -> vector<8x896xf32>
    %77 = arith.addf %72, %76 : vector<8x896xf32>
    %c15 = arith.constant 15 : index
    %c0_48 = arith.constant 0 : index
    %c0_49 = arith.constant 0 : index
    %78 = vector.load %arg2[%c15, %c0_48, %c0_49] : memref<27x8x4xbf16, #tpu.memory_space<vmem>>, vector<1x8x4xbf16>
    %79 = vector.shape_cast %78 : vector<1x8x4xbf16> to vector<8x4xbf16>
    %80 = vector.extract_strided_slice %1 {offsets = [0, 120], sizes = [4, 896], strides = [1, 1]} : vector<4x1152xbf16> to vector<4x896xbf16>
    %cst_50 = arith.constant dense<0.000000e+00> : vector<8x896xf32>
    %81 = tpu.matmul %79, %80, %cst_50 {dimension_numbers = #tpu.dot_dimension_numbers<[1], [0], [0], [1], [0, 0, 1, 1], [], []>} : vector<8x4xbf16>, vector<4x896xbf16>, vector<8x896xf32> -> vector<8x896xf32>
    %82 = arith.addf %77, %81 : vector<8x896xf32>
    %c16 = arith.constant 16 : index
    %c0_51 = arith.constant 0 : index
    %c0_52 = arith.constant 0 : index
    %83 = vector.load %arg2[%c16, %c0_51, %c0_52] : memref<27x8x4xbf16, #tpu.memory_space<vmem>>, vector<1x8x4xbf16>
    %84 = vector.shape_cast %83 : vector<1x8x4xbf16> to vector<8x4xbf16>
    %85 = vector.extract_strided_slice %1 {offsets = [0, 121], sizes = [4, 896], strides = [1, 1]} : vector<4x1152xbf16> to vector<4x896xbf16>
    %cst_53 = arith.constant dense<0.000000e+00> : vector<8x896xf32>
    %86 = tpu.matmul %84, %85, %cst_53 {dimension_numbers = #tpu.dot_dimension_numbers<[1], [0], [0], [1], [0, 0, 1, 1], [], []>} : vector<8x4xbf16>, vector<4x896xbf16>, vector<8x896xf32> -> vector<8x896xf32>
    %87 = arith.addf %82, %86 : vector<8x896xf32>
    %c17 = arith.constant 17 : index
    %c0_54 = arith.constant 0 : index
    %c0_55 = arith.constant 0 : index
    %88 = vector.load %arg2[%c17, %c0_54, %c0_55] : memref<27x8x4xbf16, #tpu.memory_space<vmem>>, vector<1x8x4xbf16>
    %89 = vector.shape_cast %88 : vector<1x8x4xbf16> to vector<8x4xbf16>
    %90 = vector.extract_strided_slice %1 {offsets = [0, 122], sizes = [4, 896], strides = [1, 1]} : vector<4x1152xbf16> to vector<4x896xbf16>
    %cst_56 = arith.constant dense<0.000000e+00> : vector<8x896xf32>
    %91 = tpu.matmul %89, %90, %cst_56 {dimension_numbers = #tpu.dot_dimension_numbers<[1], [0], [0], [1], [0, 0, 1, 1], [], []>} : vector<8x4xbf16>, vector<4x896xbf16>, vector<8x896xf32> -> vector<8x896xf32>
    %92 = arith.addf %87, %91 : vector<8x896xf32>
    %c18 = arith.constant 18 : index
    %c0_57 = arith.constant 0 : index
    %c0_58 = arith.constant 0 : index
    %93 = vector.load %arg2[%c18, %c0_57, %c0_58] : memref<27x8x4xbf16, #tpu.memory_space<vmem>>, vector<1x8x4xbf16>
    %94 = vector.shape_cast %93 : vector<1x8x4xbf16> to vector<8x4xbf16>
    %95 = vector.extract_strided_slice %1 {offsets = [0, 200], sizes = [4, 896], strides = [1, 1]} : vector<4x1152xbf16> to vector<4x896xbf16>
    %cst_59 = arith.constant dense<0.000000e+00> : vector<8x896xf32>
    %96 = tpu.matmul %94, %95, %cst_59 {dimension_numbers = #tpu.dot_dimension_numbers<[1], [0], [0], [1], [0, 0, 1, 1], [], []>} : vector<8x4xbf16>, vector<4x896xbf16>, vector<8x896xf32> -> vector<8x896xf32>
    %97 = arith.addf %92, %96 : vector<8x896xf32>
    %c19 = arith.constant 19 : index
    %c0_60 = arith.constant 0 : index
    %c0_61 = arith.constant 0 : index
    %98 = vector.load %arg2[%c19, %c0_60, %c0_61] : memref<27x8x4xbf16, #tpu.memory_space<vmem>>, vector<1x8x4xbf16>
    %99 = vector.shape_cast %98 : vector<1x8x4xbf16> to vector<8x4xbf16>
    %100 = vector.extract_strided_slice %1 {offsets = [0, 201], sizes = [4, 896], strides = [1, 1]} : vector<4x1152xbf16> to vector<4x896xbf16>
    %cst_62 = arith.constant dense<0.000000e+00> : vector<8x896xf32>
    %101 = tpu.matmul %99, %100, %cst_62 {dimension_numbers = #tpu.dot_dimension_numbers<[1], [0], [0], [1], [0, 0, 1, 1], [], []>} : vector<8x4xbf16>, vector<4x896xbf16>, vector<8x896xf32> -> vector<8x896xf32>
    %102 = arith.addf %97, %101 : vector<8x896xf32>
    %c20 = arith.constant 20 : index
    %c0_63 = arith.constant 0 : index
    %c0_64 = arith.constant 0 : index
    %103 = vector.load %arg2[%c20, %c0_63, %c0_64] : memref<27x8x4xbf16, #tpu.memory_space<vmem>>, vector<1x8x4xbf16>
    %104 = vector.shape_cast %103 : vector<1x8x4xbf16> to vector<8x4xbf16>
    %105 = vector.extract_strided_slice %1 {offsets = [0, 202], sizes = [4, 896], strides = [1, 1]} : vector<4x1152xbf16> to vector<4x896xbf16>
    %cst_65 = arith.constant dense<0.000000e+00> : vector<8x896xf32>
    %106 = tpu.matmul %104, %105, %cst_65 {dimension_numbers = #tpu.dot_dimension_numbers<[1], [0], [0], [1], [0, 0, 1, 1], [], []>} : vector<8x4xbf16>, vector<4x896xbf16>, vector<8x896xf32> -> vector<8x896xf32>
    %107 = arith.addf %102, %106 : vector<8x896xf32>
    %c21 = arith.constant 21 : index
    %c0_66 = arith.constant 0 : index
    %c0_67 = arith.constant 0 : index
    %108 = vector.load %arg2[%c21, %c0_66, %c0_67] : memref<27x8x4xbf16, #tpu.memory_space<vmem>>, vector<1x8x4xbf16>
    %109 = vector.shape_cast %108 : vector<1x8x4xbf16> to vector<8x4xbf16>
    %110 = vector.extract_strided_slice %1 {offsets = [0, 210], sizes = [4, 896], strides = [1, 1]} : vector<4x1152xbf16> to vector<4x896xbf16>
    %cst_68 = arith.constant dense<0.000000e+00> : vector<8x896xf32>
    %111 = tpu.matmul %109, %110, %cst_68 {dimension_numbers = #tpu.dot_dimension_numbers<[1], [0], [0], [1], [0, 0, 1, 1], [], []>} : vector<8x4xbf16>, vector<4x896xbf16>, vector<8x896xf32> -> vector<8x896xf32>
    %112 = arith.addf %107, %111 : vector<8x896xf32>
    %c22 = arith.constant 22 : index
    %c0_69 = arith.constant 0 : index
    %c0_70 = arith.constant 0 : index
    %113 = vector.load %arg2[%c22, %c0_69, %c0_70] : memref<27x8x4xbf16, #tpu.memory_space<vmem>>, vector<1x8x4xbf16>
    %114 = vector.shape_cast %113 : vector<1x8x4xbf16> to vector<8x4xbf16>
    %115 = vector.extract_strided_slice %1 {offsets = [0, 211], sizes = [4, 896], strides = [1, 1]} : vector<4x1152xbf16> to vector<4x896xbf16>
    %cst_71 = arith.constant dense<0.000000e+00> : vector<8x896xf32>
    %116 = tpu.matmul %114, %115, %cst_71 {dimension_numbers = #tpu.dot_dimension_numbers<[1], [0], [0], [1], [0, 0, 1, 1], [], []>} : vector<8x4xbf16>, vector<4x896xbf16>, vector<8x896xf32> -> vector<8x896xf32>
    %117 = arith.addf %112, %116 : vector<8x896xf32>
    %c23 = arith.constant 23 : index
    %c0_72 = arith.constant 0 : index
    %c0_73 = arith.constant 0 : index
    %118 = vector.load %arg2[%c23, %c0_72, %c0_73] : memref<27x8x4xbf16, #tpu.memory_space<vmem>>, vector<1x8x4xbf16>
    %119 = vector.shape_cast %118 : vector<1x8x4xbf16> to vector<8x4xbf16>
    %120 = vector.extract_strided_slice %1 {offsets = [0, 212], sizes = [4, 896], strides = [1, 1]} : vector<4x1152xbf16> to vector<4x896xbf16>
    %cst_74 = arith.constant dense<0.000000e+00> : vector<8x896xf32>
    %121 = tpu.matmul %119, %120, %cst_74 {dimension_numbers = #tpu.dot_dimension_numbers<[1], [0], [0], [1], [0, 0, 1, 1], [], []>} : vector<8x4xbf16>, vector<4x896xbf16>, vector<8x896xf32> -> vector<8x896xf32>
    %122 = arith.addf %117, %121 : vector<8x896xf32>
    %c24 = arith.constant 24 : index
    %c0_75 = arith.constant 0 : index
    %c0_76 = arith.constant 0 : index
    %123 = vector.load %arg2[%c24, %c0_75, %c0_76] : memref<27x8x4xbf16, #tpu.memory_space<vmem>>, vector<1x8x4xbf16>
    %124 = vector.shape_cast %123 : vector<1x8x4xbf16> to vector<8x4xbf16>
    %125 = vector.extract_strided_slice %1 {offsets = [0, 220], sizes = [4, 896], strides = [1, 1]} : vector<4x1152xbf16> to vector<4x896xbf16>
    %cst_77 = arith.constant dense<0.000000e+00> : vector<8x896xf32>
    %126 = tpu.matmul %124, %125, %cst_77 {dimension_numbers = #tpu.dot_dimension_numbers<[1], [0], [0], [1], [0, 0, 1, 1], [], []>} : vector<8x4xbf16>, vector<4x896xbf16>, vector<8x896xf32> -> vector<8x896xf32>
    %127 = arith.addf %122, %126 : vector<8x896xf32>
    %c25 = arith.constant 25 : index
    %c0_78 = arith.constant 0 : index
    %c0_79 = arith.constant 0 : index
    %128 = vector.load %arg2[%c25, %c0_78, %c0_79] : memref<27x8x4xbf16, #tpu.memory_space<vmem>>, vector<1x8x4xbf16>
    %129 = vector.shape_cast %128 : vector<1x8x4xbf16> to vector<8x4xbf16>
    %130 = vector.extract_strided_slice %1 {offsets = [0, 221], sizes = [4, 896], strides = [1, 1]} : vector<4x1152xbf16> to vector<4x896xbf16>
    %cst_80 = arith.constant dense<0.000000e+00> : vector<8x896xf32>
    %131 = tpu.matmul %129, %130, %cst_80 {dimension_numbers = #tpu.dot_dimension_numbers<[1], [0], [0], [1], [0, 0, 1, 1], [], []>} : vector<8x4xbf16>, vector<4x896xbf16>, vector<8x896xf32> -> vector<8x896xf32>
    %132 = arith.addf %127, %131 : vector<8x896xf32>
    %c26 = arith.constant 26 : index
    %c0_81 = arith.constant 0 : index
    %c0_82 = arith.constant 0 : index
    %133 = vector.load %arg2[%c26, %c0_81, %c0_82] : memref<27x8x4xbf16, #tpu.memory_space<vmem>>, vector<1x8x4xbf16>
    %134 = vector.shape_cast %133 : vector<1x8x4xbf16> to vector<8x4xbf16>
    %135 = vector.extract_strided_slice %1 {offsets = [0, 222], sizes = [4, 896], strides = [1, 1]} : vector<4x1152xbf16> to vector<4x896xbf16>
    %cst_83 = arith.constant dense<0.000000e+00> : vector<8x896xf32>
    %136 = tpu.matmul %134, %135, %cst_83 {dimension_numbers = #tpu.dot_dimension_numbers<[1], [0], [0], [1], [0, 0, 1, 1], [], []>} : vector<8x4xbf16>, vector<4x896xbf16>, vector<8x896xf32> -> vector<8x896xf32>
    %137 = arith.addf %132, %136 : vector<8x896xf32>
    %c0_84 = arith.constant 0 : index
    %c0_85 = arith.constant 0 : index
    %138 = vector.load %arg3[%c0_84, %c0_85] : memref<1x896xf32, #tpu.memory_space<vmem>>, vector<1x896xf32>
    %139 = vector.broadcast %138 : vector<1x896xf32> to vector<8x896xf32>
    %140 = arith.mulf %137, %139 : vector<8x896xf32>
    %cst_86 = arith.constant dense<0.000000e+00> : vector<8xf32>
    %141 = vector.multi_reduction <add>, %140, %cst_86 [1] : vector<8x896xf32> to vector<8xf32>
    %142 = vector.shape_cast %141 : vector<8xf32> to vector<8x1xf32>
    %cst_87 = arith.constant 0.001953125 : f32
    %143 = vector.broadcast %cst_87 : f32 to vector<8x1xf32>
    %144 = arith.mulf %142, %143 : vector<8x1xf32>
    %145 = vector.broadcast %144 : vector<8x1xf32> to vector<8x896xf32>
    %146 = arith.subf %137, %145 : vector<8x896xf32>
    %147 = arith.mulf %146, %146 : vector<8x896xf32>
    %148 = vector.broadcast %138 : vector<1x896xf32> to vector<8x896xf32>
    %149 = arith.mulf %147, %148 : vector<8x896xf32>
    %cst_88 = arith.constant dense<0.000000e+00> : vector<8xf32>
    %150 = vector.multi_reduction <add>, %149, %cst_88 [1] : vector<8x896xf32> to vector<8xf32>
    %151 = vector.shape_cast %150 : vector<8xf32> to vector<8x1xf32>
    %cst_89 = arith.constant 0.001953125 : f32
    %152 = vector.broadcast %cst_89 : f32 to vector<8x1xf32>
    %153 = arith.mulf %151, %152 : vector<8x1xf32>
    %cst_90 = arith.constant 9.99999974E-6 : f32
    %154 = vector.broadcast %cst_90 : f32 to vector<8x1xf32>
    %155 = arith.addf %153, %154 : vector<8x1xf32>
    %156 = math.rsqrt %155 : vector<8x1xf32>
    %157 = vector.broadcast %156 : vector<8x1xf32> to vector<8x896xf32>
    %158 = arith.mulf %146, %157 : vector<8x896xf32>
    %c0_91 = arith.constant 0 : index
    %159 = memref.load %arg4[%c0_91] : memref<1xf32, #tpu.memory_space<smem>>
    %cst_92 = arith.constant 0.000000e+00 : f32
    %160 = vector.broadcast %cst_92 : f32 to vector<8x896xf32>
    %161 = arith.cmpf oge, %158, %160 : vector<8x896xf32>
    %162 = vector.broadcast %159 : f32 to vector<8x896xf32>
    %163 = arith.mulf %158, %162 : vector<8x896xf32>
    %164 = arith.select %161, %158, %163 : vector<8x896xi1>, vector<8x896xf32>
    %c0_93 = arith.constant 0 : index
    %c0_94 = arith.constant 0 : index
    %c0_95 = arith.constant 0 : index
    %165 = vector.load %arg5[%c0_93, %c0_94, %c0_95] : memref<1x8x896xf32, #tpu.memory_space<vmem>>, vector<1x8x896xf32>
    %166 = vector.shape_cast %165 : vector<1x8x896xf32> to vector<8x896xf32>
    %167 = vector.shape_cast %164 : vector<8x896xf32> to vector<1x8x896xf32>
    tpu.vector_store %arg5[%c0_93, %c0_94, %c0_95], %167 {strides = array<i32>} : memref<1x8x896xf32, #tpu.memory_space<vmem>>, vector<1x8x896xf32>,
    return
  }
  func.func @transform_0(%arg0: i32) -> (i32, i32, i32) {
    %c0_i32 = arith.constant 0 : i32
    %c0_i32_0 = arith.constant 0 : i32
    %c0_i32_1 = arith.constant 0 : i32
    return %arg0, %c0_i32, %c0_i32_0 : i32, i32, i32
  }
  func.func @transform_1(%arg0: i32) -> (i32, i32, i32) {
    %c0_i32 = arith.constant 0 : i32
    %c0_i32_0 = arith.constant 0 : i32
    %c0_i32_1 = arith.constant 0 : i32
    %c0_i32_2 = arith.constant 0 : i32
    return %c0_i32, %c0_i32_0, %c0_i32_1 : i32, i32, i32
  }
  func.func @transform_2(%arg0: i32) -> (i32, i32) {
    %c0_i32 = arith.constant 0 : i32
    %c0_i32_0 = arith.constant 0 : i32
    %c0_i32_1 = arith.constant 0 : i32
    return %c0_i32, %c0_i32_0 : i32, i32
  }
  func.func @transform_3(%arg0: i32) -> i32 {
    %c0_i32 = arith.constant 0 : i32
    %c0_i32_0 = arith.constant 0 : i32
    return %c0_i32 : i32
  }
  func.func @transform_4(%arg0: i32) -> (i32, i32, i32) {
    %c0_i32 = arith.constant 0 : i32
    %c0_i32_0 = arith.constant 0 : i32
    %c0_i32_1 = arith.constant 0 : i32
    return %arg0, %c0_i32, %c0_i32_0 : i32, i32, i32
  }
}

</mosaic_0001>

<llo_original>
// kernel: tpu_custom_call.1
$region0: #{tpu_custom_call.1}
  #allocation0 [shape = 'u32[]', space=smem, size = 0x4, offset = 0x4, fixed_abs, tag = 'smem constant byte address 0x4 - core index']
  #allocation1 [shape = 'u32[144,128]{1,0:T(1,128)}', space=vmem, size = 0x12000, scoped, tag = 'internal scratch']
  #allocation2 [shape = 'f32[1]{0:T(128)S(6)}', space=smem, size = 0x200, scoped, tag = 'scoped memory for tpu_custom_call.1']
  %s0 = inlined_call_operand.vmem [shape: bf16[2,4,1152], index: 0, kind: input, shape index: {}]
  %s1 = inlined_call_operand.vmem [shape: bf16[27,8,4], index: 1, kind: input, shape index: {}]
  %s2 = inlined_call_operand.vmem [shape: f32[1,896], index: 2, kind: input, shape index: {}]
  %s3 = inlined_call_operand.<no memory space> [shape: f32[1], index: 3, kind: input, shape index: {}]
  %s4 = inlined_call_operand.hbm [shape: f32[2,8,896], index: 4, kind: output, shape index: {}]
  %s5 = sld [smem:[#allocation0]]
  $region49: #{tpu_custom_call.1} parent=0
    _
  %s7 = ssub.s32 1, %s5
  %s8 = scalar_select 0, %s7, %s5
  %9 = sst [smem:[#allocation2]] %s3
  $region1: #{tpu_custom_call.1} parent=0
    #allocation3 [shape = 'u8[57344]{0}', space=vmem, size = 0xe000, scoped, tag = 'output window, operand 0']
    #allocation4 [shape = 's32[2]{0}', space=sflag, size = 0x8, scoped, tag = 'scoped memory for tpu_custom_call.1']
    %10 = vsyncpa [#allocation4], 0
    %s11 = scalar_lea.sflag [#allocation4], 1
    %12 = vsyncpa %s11, 0
    loop: start=0, step=1, limit=4
    $region2: #{tpu_custom_call.1} parent=1 // loop_pre_header
      _
    $region3: #{tpu_custom_call.1} parent=1 // loop_header
      %s14 = sphi 0, %s18
      %p15 = scmp.ge.s32.totalorder %s14, 4
      %s24 = sphi 0, %s26
      %s27 = sphi 0, %s24
      %s28 = sphi 0, %s27
      %s44 = sphi 0, %s28
      %s48 = sphi 0, %s48
      %s50 = sphi 0, %s48
      %s51 = sphi 0, %s50
      %s65 = sphi 0, %s51
      %s69 = sphi 0, %s69
      %s71 = sphi 0, %s69
      %s72 = sphi 0, %s71
      %s86 = sphi 0, %s72
      %s90 = sphi 0, %s90
      %s92 = sphi 0, %s90
      %s93 = sphi 0, %s92
      %s107 = sphi 0, %s93
      %s113 = sphi 0, %s115
      %s116 = sphi 0, %s113
      %s117 = sphi 0, %s116
      %s133 = sphi 0, %s117
    $region4: #{tpu_custom_call.1} parent=1 // loop_header_branch
      %17 = sbr.rel (%p15) target = $region8
    $region5: #{tpu_custom_call.1} parent=1 // loop_body
      %s19 = ssub.s32 %s14, 1
      %s20 = ssub.s32 %s14, 2
      %s21 = sadd.s32 %s14, 1
      %s22 = ssub.s32 %s14, %s21
      %p23 = scmp.eq.s32.totalorder %s22, 0
      %s25 = sadd.s32 %s24, 1
      %s26 = scalar_select %p23, %s24, %s25
      %p29 = pneg %p23
      %p30 = scmp.eq.s32.totalorder %s14, 1
      %p31 = por %p29, %p30
      %p32 = scmp.ne.s32.totalorder %s24, %s27
      %p33 = scmp.eq.s32.totalorder %s14, 0
      %p34 = por %p32, %p33
      %p35 = scmp.ne.s32.totalorder %s24, %s27
      %p36 = scmp.eq.s32.totalorder %s19, 1
      %p37 = por %p35, %p36
      %p38 = scmp.ne.s32.totalorder %s27, %s28
      %p39 = scmp.eq.s32.totalorder %s19, 0
      %p40 = por %p38, %p39
      %p41 = scmp.ne.s32.totalorder %s27, %s28
      %p42 = scmp.eq.s32.totalorder %s20, 1
      %p43 = por %p41, %p42
      %p45 = scmp.ne.s32.totalorder %s28, %s44
      %p46 = scmp.eq.s32.totalorder %s20, 0
      %p47 = por %p45, %p46
      %s49 = sadd.s32 %s48, 1
      %p52 = scmp.eq.s32.totalorder %s14, 1
      %p53 = scmp.ne.s32.totalorder %s48, %s50
      %p54 = scmp.eq.s32.totalorder %s14, 0
      %p55 = por %p53, %p54
      %p56 = scmp.ne.s32.totalorder %s48, %s50
      %p57 = scmp.eq.s32.totalorder %s19, 1
      %p58 = por %p56, %p57
      %p59 = scmp.ne.s32.totalorder %s50, %s51
      %p60 = scmp.eq.s32.totalorder %s19, 0
      %p61 = por %p59, %p60
      %p62 = scmp.ne.s32.totalorder %s50, %s51
      %p63 = scmp.eq.s32.totalorder %s20, 1
      %p64 = por %p62, %p63
      %p66 = scmp.ne.s32.totalorder %s51, %s65
      %p67 = scmp.eq.s32.totalorder %s20, 0
      %p68 = por %p66, %p67
      %s70 = sadd.s32 %s69, 1
      %p73 = scmp.eq.s32.totalorder %s14, 1
      %p74 = scmp.ne.s32.totalorder %s69, %s71
      %p75 = scmp.eq.s32.totalorder %s14, 0
      %p76 = por %p74, %p75
      %p77 = scmp.ne.s32.totalorder %s69, %s71
      %p78 = scmp.eq.s32.totalorder %s19, 1
      %p79 = por %p77, %p78
      %p80 = scmp.ne.s32.totalorder %s71, %s72
      %p81 = scmp.eq.s32.totalorder %s19, 0
      %p82 = por %p80, %p81
      %p83 = scmp.ne.s32.totalorder %s71, %s72
      %p84 = scmp.eq.s32.totalorder %s20, 1
      %p85 = por %p83, %p84
      %p87 = scmp.ne.s32.totalorder %s72, %s86
      %p88 = scmp.eq.s32.totalorder %s20, 0
      %p89 = por %p87, %p88
      %s91 = sadd.s32 %s90, 1
      %p94 = scmp.eq.s32.totalorder %s14, 1
      %p95 = scmp.ne.s32.totalorder %s90, %s92
      %p96 = scmp.eq.s32.totalorder %s14, 0
      %p97 = por %p95, %p96
      %p98 = scmp.ne.s32.totalorder %s90, %s92
      %p99 = scmp.eq.s32.totalorder %s19, 1
      %p100 = por %p98, %p99
      %p101 = scmp.ne.s32.totalorder %s92, %s93
      %p102 = scmp.eq.s32.totalorder %s19, 0
      %p103 = por %p101, %p102
      %p104 = scmp.ne.s32.totalorder %s92, %s93
      %p105 = scmp.eq.s32.totalorder %s20, 1
      %p106 = por %p104, %p105
      %p108 = scmp.ne.s32.totalorder %s93, %s107
      %p109 = scmp.eq.s32.totalorder %s20, 0
      %p110 = por %p108, %p109
      %s111 = ssub.s32 %s14, %s21
      %p112 = scmp.eq.s32.totalorder %s111, 0
      %s114 = sadd.s32 %s113, 1
      %s115 = scalar_select %p112, %s113, %s114
      %p118 = pneg %p112
      %p119 = scmp.eq.s32.totalorder %s14, 1
      %p120 = por %p118, %p119
      %p121 = scmp.ne.s32.totalorder %s113, %s116
      %p122 = scmp.eq.s32.totalorder %s14, 0
      %p123 = por %p121, %p122
      %p124 = scmp.ne.s32.totalorder %s113, %s116
      %p125 = scmp.eq.s32.totalorder %s19, 1
      %p126 = por %p124, %p125
      %p127 = scmp.ne.s32.totalorder %s116, %s117
      %p128 = scmp.eq.s32.totalorder %s19, 0
      %p129 = por %p127, %p128
      %p130 = scmp.ne.s32.totalorder %s116, %s117
      %p131 = scmp.eq.s32.totalorder %s20, 1
      %p132 = por %p130, %p131
      %p134 = scmp.ne.s32.totalorder %s117, %s133
      %p135 = scmp.eq.s32.totalorder %s20, 0
      %p136 = por %p134, %p135
      %p137 = scmp.le.s32.totalorder 1, %s14
      %p138 = scmp.lt.s32.totalorder %s14, 3
      %p139 = pnand %p137, %p138
      %p140 = pneg %p139
      // Predicated region
      $region9: #{tpu_custom_call.1} parent=5 // pred_check
        _
      $region10: #{tpu_custom_call.1} parent=5 // pred_check_branch
        %142 = sbr.rel (%p139) target = $region12
      $region11: #{tpu_custom_call.1} parent=5 // pred_region
        %s143 = ssub.s32 %s14, 1
        // Predicated region
        $region13: #{tpu_custom_call.1} parent=11 // pred_check
          %p144 = pneg %p61
        $region14: #{tpu_custom_call.1} parent=11 // pred_check_branch
          %146 = sbr.rel (%p144) target = $region16
        $region15: #{tpu_custom_call.1} parent=11 // pred_region
          _
        $region16: #{tpu_custom_call.1} parent=11 // pred_fallthru
          _
        // Predicated region
        $region17: #{tpu_custom_call.1} parent=11 // pred_check
          %p147 = pneg %p82
        $region18: #{tpu_custom_call.1} parent=11 // pred_check_branch
          %149 = sbr.rel (%p147) target = $region20
        $region19: #{tpu_custom_call.1} parent=11 // pred_region
          _
        $region20: #{tpu_custom_call.1} parent=11 // pred_fallthru
          _
        // Predicated region
        $region21: #{tpu_custom_call.1} parent=11 // pred_check
          %p150 = pneg %p103
        $region22: #{tpu_custom_call.1} parent=11 // pred_check_branch
          %152 = sbr.rel (%p150) target = $region24
        $region23: #{tpu_custom_call.1} parent=11 // pred_region
          _
        $region24: #{tpu_custom_call.1} parent=11 // pred_fallthru
          _
      $region12: #{tpu_custom_call.1} parent=5 // pred_fallthru
        _
      %p153 = scmp.lt.s32.totalorder %s14, 2
      // Predicated region
      $region25: #{tpu_custom_call.1} parent=5 // pred_check
        %p154 = pneg %p153
      $region26: #{tpu_custom_call.1} parent=5 // pred_check_branch
        %156 = sbr.rel (%p154) target = $region28
      $region27: #{tpu_custom_call.1} parent=5 // pred_region
        // Predicated region
        $region29: #{tpu_custom_call.1} parent=27 // pred_check
          %p157 = pneg %p34
        $region30: #{tpu_custom_call.1} parent=27 // pred_check_branch
          %159 = sbr.rel (%p157) target = $region32
        $region31: #{tpu_custom_call.1} parent=27 // pred_region
          %p160 = scmp.lt.s32.totalorder %s14, 1
          %s161 = scalar_select %p160, %s14, 1
          %s162 = smul.addr %s161, 9
          %s163 = smul.addr %s162, 2
          %s164 = scalar_lea.vmem %s0, %s163
        $region32: #{tpu_custom_call.1} parent=27 // pred_fallthru
          _
      $region28: #{tpu_custom_call.1} parent=5 // pred_fallthru
        _
      %p165 = scmp.le.s32.totalorder 1, %s14
      %p166 = scmp.lt.s32.totalorder %s14, 3
      %p167 = pnand %p165, %p166
      %p168 = pneg %p167
      // Predicated region
      $region33: #{tpu_custom_call.1} parent=5 // pred_check
        _
      $region34: #{tpu_custom_call.1} parent=5 // pred_check_branch
        %170 = sbr.rel (%p167) target = $region36
      $region35: #{tpu_custom_call.1} parent=5 // pred_region
        %s171 = ssub.s32 %s14, 1
        %p172 = scmp.lt.s32.totalorder %s19, 1
        %s173 = scalar_select %p172, %s19, 1
        %s174 = smul.addr %s173, 9
        %s175 = smul.addr %s174, 2
        %s176 = scalar_lea.vmem %s0, %s175
        %p177 = pneg %p40
        %p178 = pneg %p37
        %p179 = pneg %p61
        %p180 = pneg %p58
        %p181 = pneg %p82
        %p182 = pneg %p79
        %p183 = pneg %p103
        %p184 = pneg %p100
        %p185 = pneg %p129
        %p186 = pneg %p126
        %s187 = sand.u32 %s116, 1
        %s188 = scalar_lea.sflag [#allocation4], %s187
        %s189 = sand.u32 %s116, 1
        %s190 = smul.addr %s189, 56
        %s191 = scalar_lea.vmem [#allocation3], %s190
        %p192 = scmp.lt.s32.totalorder %s19, 1
        %s193 = scalar_select %p192, %s19, 1
        %s194 = smul.addr %s193, 9
        %s195 = smul.addr %s194, 2
        %s196 = scalar_lea.vmem %s0, %s195
        %v198 = vld [vmem:[%s196] sm:$0xff]
        %v199 = vld [vmem:[%s196 + $0x8] sm:$0xff]
        %v200 = vld [vmem:[%s196 + $0x10] sm:$0x3]
        %v201 = vld [vmem:[%s1] sm:$0xf]
        %s202 = scalar_lea.vmem %s1, 4
        %v203 = vld [vmem:[%s202] sm:$0xf]
        %v206 = vcombine.high %v198, %v198
        %v208 = vunpack.c.l.s4 1983009808
        %v209 = vunpack.c.0.s8 %v208
        %v210 = vlaneseq
        %v211 = vshrl.u32 %v210, 7
        %v212 = vsub.s32 %v209, %v211
        %v213 = vrot.slane %v198, %v212
        %v215 = vunpack.c.l.s4 1983009808
        %v216 = vunpack.c.0.s8 %v215
        %v217 = vlaneseq
        %v218 = vshrl.u32 %v217, 7
        %v219 = vsub.s32 %v216, %v218
        %v220 = vrot.slane %v206, %v219
        %v221 = vcombine.high %v213, %v213
        %v222 = vcombine.high %v220, %v220
        %v223 = vcombine.high %v199, %v199
        %v225 = vunpack.c.l.s4 1983009808
        %v226 = vunpack.c.0.s8 %v225
        %v227 = vlaneseq
        %v228 = vshrl.u32 %v227, 7
        %v229 = vsub.s32 %v226, %v228
        %v230 = vrot.slane %v199, %v229
        %v232 = vunpack.c.l.s4 1983009808
        %v233 = vunpack.c.0.s8 %v232
        %v234 = vlaneseq
        %v235 = vshrl.u32 %v234, 7
        %v236 = vsub.s32 %v233, %v235
        %v237 = vrot.slane %v223, %v236
        %v238 = vcombine.high %v230, %v230
        %v239 = vcombine.high %v237, %v237
        %240 = vrot.lane.b32.xlu0 %v213, 127
        %v241 = vpop.permute.xlu0 %240
        %242 = vrot.lane.b32.xlu0 %v221, 127
        %v243 = vpop.permute.xlu0 %242
        %244 = vrot.lane.b32.xlu0 %v220, 127
        %v245 = vpop.permute.xlu0 %244
        %246 = vrot.lane.b32.xlu0 %v222, 127
        %v247 = vpop.permute.xlu0 %246
        %248 = vrot.lane.b32.xlu0 %v230, 127
        %v249 = vpop.permute.xlu0 %248
        %250 = vrot.lane.b32.xlu0 %v238, 127
        %v251 = vpop.permute.xlu0 %250
        %252 = vrot.lane.b32.xlu0 %v237, 127
        %v253 = vpop.permute.xlu0 %252
        %254 = vrot.lane.b32.xlu0 %v239, 127
        %v255 = vpop.permute.xlu0 %254
        %vm256 = vcmask 1039360
        %v257 = vsel %vm256, %v241, %v243
        %v258 = vsel %vm256, %v243, %v245
        %v259 = vsel %vm256, %v245, %v247
        %v260 = vsel %vm256, %v247, %v249
        %v261 = vsel %vm256, %v249, %v251
        %v262 = vsel %vm256, %v251, %v253
        %v263 = vsel %vm256, %v253, %v255
        %vm264 = vcmask 31744
        %v266 = vsel %vm264, %v203, 0
        %vm268 = vcmask 1041408
        %v270 = vsel %vm268, %v257, 0
        %v273 = vsel %vm268, %v258, 0
        %v276 = vsel %vm268, %v259, 0
        %v279 = vsel %vm268, %v260, 0
        %v282 = vsel %vm268, %v261, 0
        %v285 = vsel %vm268, %v262, 0
        %v288 = vsel %vm268, %v263, 0
        %290 = vmatprep.subr.bf16.mxu0 0
        %291 = vmatpush1.bf16.msra.mxu0 0
        %292 = vmatprep.subr.bf16.mxu0 0
        %293 = vmatpush1.bf16.msra.mxu0 0
        %294 = vmatprep.subr.bf16.mxu0 0
        %295 = vmatpush1.bf16.msra.mxu0 0
        %296 = vmatprep.subr.bf16.mxu0 0
        %297 = vmatpush1.bf16.msra.mxu0 0
        %298 = vmatprep.subr.bf16.mxu0 0
        %299 = vmatpush1.bf16.msra.mxu0 0
        %300 = vmatprep.subr.bf16.mxu0 0
        %301 = vmatpush1.bf16.msra.mxu0 0
        %302 = vmatprep.subr.bf16.mxu0 0
        %303 = vmatpush1.bf16.msra.mxu0 0
        %304 = vmatprep.subr.bf16.mxu0 %v273
        %305 = vmatpush1.bf16.msra.mxu0 %v270
        %306 = vmatprep.subr.bf16.mxu0 0
        %307 = vmatpush2.bf16.msra.mxu0 0
        %308 = vmatprep.subr.bf16.mxu0 0
        %309 = vmatpush2.bf16.msra.mxu0 0
        %310 = vmatprep.subr.bf16.mxu0 0
        %311 = vmatpush2.bf16.msra.mxu0 0
        %312 = vmatprep.subr.bf16.mxu0 0
        %313 = vmatpush2.bf16.msra.mxu0 0
        %314 = vmatprep.subr.bf16.mxu0 0
        %315 = vmatpush2.bf16.msra.mxu0 0
        %316 = vmatprep.subr.bf16.mxu0 0
        %317 = vmatpush2.bf16.msra.mxu0 0
        %318 = vmatprep.subr.bf16.mxu0 0
        %319 = vmatpush2.bf16.msra.mxu0 0
        %320 = vmatprep.subr.bf16.mxu0 0
        %321 = vmatpush2.bf16.msra.mxu0 0
        %322 = vmatprep.mubr.bf16.mxu0 0
        %323 = vmatmul.mubr.bf16.gmra.mxu0 %v266
        %v324 = vpop.f32.mrf.mxu0
        %v325 = vadd.f32 0.0, %v324
        %v326 = vpop.f32.mrf.mxu0
        %v327 = vadd.f32 0.0, %v326
        %v328 = vpop.f32.mrf.mxu0
        %v329 = vpop.f32.mrf.mxu0
        %330 = vdwg.mxu0
        %331 = vmatprep.subr.bf16.mxu0 0
        %332 = vmatpush1.bf16.msra.mxu0 0
        %333 = vmatprep.subr.bf16.mxu0 0
        %334 = vmatpush1.bf16.msra.mxu0 0
        %335 = vmatprep.subr.bf16.mxu0 0
        %336 = vmatpush1.bf16.msra.mxu0 0
        %337 = vmatprep.subr.bf16.mxu0 0
        %338 = vmatpush1.bf16.msra.mxu0 0
        %339 = vmatprep.subr.bf16.mxu0 0
        %340 = vmatpush1.bf16.msra.mxu0 0
        %341 = vmatprep.subr.bf16.mxu0 0
        %342 = vmatpush1.bf16.msra.mxu0 0
        %343 = vmatprep.subr.bf16.mxu0 0
        %344 = vmatpush1.bf16.msra.mxu0 0
        %345 = vmatprep.subr.bf16.mxu0 %v279
        %346 = vmatpush1.bf16.msra.mxu0 %v276
        %347 = vmatprep.subr.bf16.mxu0 0
        %348 = vmatpush2.bf16.msra.mxu0 0
        %349 = vmatprep.subr.bf16.mxu0 0
        %350 = vmatpush2.bf16.msra.mxu0 0
        %351 = vmatprep.subr.bf16.mxu0 0
        %352 = vmatpush2.bf16.msra.mxu0 0
        %353 = vmatprep.subr.bf16.mxu0 0
        %354 = vmatpush2.bf16.msra.mxu0 0
        %355 = vmatprep.subr.bf16.mxu0 0
        %356 = vmatpush2.bf16.msra.mxu0 0
        %357 = vmatprep.subr.bf16.mxu0 0
        %358 = vmatpush2.bf16.msra.mxu0 0
        %359 = vmatprep.subr.bf16.mxu0 0
        %360 = vmatpush2.bf16.msra.mxu0 0
        %361 = vmatprep.subr.bf16.mxu0 0
        %362 = vmatpush2.bf16.msra.mxu0 0
        %363 = vmatprep.mubr.bf16.mxu0 0
        %364 = vmatmul.mubr.bf16.gmra.mxu0 %v266
        %v365 = vpop.f32.mrf.mxu0
        %v366 = vadd.f32 0.0, %v365
        %v367 = vpop.f32.mrf.mxu0
        %v368 = vadd.f32 0.0, %v367
        %v369 = vpop.f32.mrf.mxu0
        %v370 = vpop.f32.mrf.mxu0
        %371 = vdwg.mxu0
        %372 = vmatprep.subr.bf16.mxu0 0
        %373 = vmatpush1.bf16.msra.mxu0 0
        %374 = vmatprep.subr.bf16.mxu0 0
        %375 = vmatpush1.bf16.msra.mxu0 0
        %376 = vmatprep.subr.bf16.mxu0 0
        %377 = vmatpush1.bf16.msra.mxu0 0
        %378 = vmatprep.subr.bf16.mxu0 0
        %379 = vmatpush1.bf16.msra.mxu0 0
        %380 = vmatprep.subr.bf16.mxu0 0
        %381 = vmatpush1.bf16.msra.mxu0 0
        %382 = vmatprep.subr.bf16.mxu0 0
        %383 = vmatpush1.bf16.msra.mxu0 0
        %384 = vmatprep.subr.bf16.mxu0 0
        %385 = vmatpush1.bf16.msra.mxu0 0
        %386 = vmatprep.subr.bf16.mxu0 %v285
        %387 = vmatpush1.bf16.msra.mxu0 %v282
        %388 = vmatprep.subr.bf16.mxu0 0
        %389 = vmatpush2.bf16.msra.mxu0 0
        %390 = vmatprep.subr.bf16.mxu0 0
        %391 = vmatpush2.bf16.msra.mxu0 0
        %392 = vmatprep.subr.bf16.mxu0 0
        %393 = vmatpush2.bf16.msra.mxu0 0
        %394 = vmatprep.subr.bf16.mxu0 0
        %395 = vmatpush2.bf16.msra.mxu0 0
        %396 = vmatprep.subr.bf16.mxu0 0
        %397 = vmatpush2.bf16.msra.mxu0 0
        %398 = vmatprep.subr.bf16.mxu0 0
        %399 = vmatpush2.bf16.msra.mxu0 0
        %400 = vmatprep.subr.bf16.mxu0 0
        %401 = vmatpush2.bf16.msra.mxu0 0
        %402 = vmatprep.subr.bf16.mxu0 0
        %403 = vmatpush2.bf16.msra.mxu0 0
        %404 = vmatprep.mubr.bf16.mxu0 0
        %405 = vmatmul.mubr.bf16.gmra.mxu0 %v266
        %v406 = vpop.f32.mrf.mxu0
        %v407 = vadd.f32 0.0, %v406
        %v408 = vpop.f32.mrf.mxu0
        %v409 = vadd.f32 0.0, %v408
        %v410 = vpop.f32.mrf.mxu0
        %v411 = vpop.f32.mrf.mxu0
        %412 = vdwg.mxu0
        %413 = vmatprep.subr.bf16.mxu0 0
        %414 = vmatpush1.bf16.msra.mxu0 0
        %415 = vmatprep.subr.bf16.mxu0 0
        %416 = vmatpush1.bf16.msra.mxu0 0
        %417 = vmatprep.subr.bf16.mxu0 0
        %418 = vmatpush1.bf16.msra.mxu0 0
        %419 = vmatprep.subr.bf16.mxu0 0
        %420 = vmatpush1.bf16.msra.mxu0 0
        %421 = vmatprep.subr.bf16.mxu0 0
        %422 = vmatpush1.bf16.msra.mxu0 0
        %423 = vmatprep.subr.bf16.mxu0 0
        %424 = vmatpush1.bf16.msra.mxu0 0
        %425 = vmatprep.subr.bf16.mxu0 0
        %426 = vmatpush1.bf16.msra.mxu0 0
        %427 = vmatprep.subr.bf16.mxu0 0
        %428 = vmatpush1.bf16.msra.mxu0 %v288
        %429 = vmatprep.subr.bf16.mxu0 0
        %430 = vmatpush2.bf16.msra.mxu0 0
        %431 = vmatprep.subr.bf16.mxu0 0
        %432 = vmatpush2.bf16.msra.mxu0 0
        %433 = vmatprep.subr.bf16.mxu0 0
        %434 = vmatpush2.bf16.msra.mxu0 0
        %435 = vmatprep.subr.bf16.mxu0 0
        %436 = vmatpush2.bf16.msra.mxu0 0
        %437 = vmatprep.subr.bf16.mxu0 0
        %438 = vmatpush2.bf16.msra.mxu0 0
        %439 = vmatprep.subr.bf16.mxu0 0
        %440 = vmatpush2.bf16.msra.mxu0 0
        %441 = vmatprep.subr.bf16.mxu0 0
        %442 = vmatpush2.bf16.msra.mxu0 0
        %443 = vmatprep.subr.bf16.mxu0 0
        %444 = vmatpush2.bf16.msra.mxu0 0
        %445 = vmatprep.mubr.bf16.mxu0 0
        %446 = vmatmul.mubr.bf16.gmra.mxu0 %v266
        %v447 = vpop.f32.mrf.mxu0
        %v448 = vadd.f32 0.0, %v447
        %v449 = vpop.f32.mrf.mxu0
        %v450 = vpop.f32.mrf.mxu0
        %v451 = vpop.f32.mrf.mxu0
        %452 = vdwg.mxu0
        %v454 = vsel %vm264, %v201, 0
        %v457 = vsel %vm268, %v213, 0
        %v460 = vsel %vm268, %v221, 0
        %v463 = vsel %vm268, %v220, 0
        %v466 = vsel %vm268, %v222, 0
        %v469 = vsel %vm268, %v230, 0
        %v472 = vsel %vm268, %v238, 0
        %v475 = vsel %vm268, %v237, 0
        %477 = vmatprep.subr.bf16.mxu0 0
        %478 = vmatpush1.bf16.msra.mxu0 0
        %479 = vmatprep.subr.bf16.mxu0 0
        %480 = vmatpush1.bf16.msra.mxu0 0
        %481 = vmatprep.subr.bf16.mxu0 0
        %482 = vmatpush1.bf16.msra.mxu0 0
        %483 = vmatprep.subr.bf16.mxu0 0
        %484 = vmatpush1.bf16.msra.mxu0 0
        %485 = vmatprep.subr.bf16.mxu0 0
        %486 = vmatpush1.bf16.msra.mxu0 0
        %487 = vmatprep.subr.bf16.mxu0 0
        %488 = vmatpush1.bf16.msra.mxu0 0
        %489 = vmatprep.subr.bf16.mxu0 0
        %490 = vmatpush1.bf16.msra.mxu0 0
        %491 = vmatprep.subr.bf16.mxu0 %v460
        %492 = vmatpush1.bf16.msra.mxu0 %v457
        %493 = vmatprep.subr.bf16.mxu0 0
        %494 = vmatpush2.bf16.msra.mxu0 0
        %495 = vmatprep.subr.bf16.mxu0 0
        %496 = vmatpush2.bf16.msra.mxu0 0
        %497 = vmatprep.subr.bf16.mxu0 0
        %498 = vmatpush2.bf16.msra.mxu0 0
        %499 = vmatprep.subr.bf16.mxu0 0
        %500 = vmatpush2.bf16.msra.mxu0 0
        %501 = vmatprep.subr.bf16.mxu0 0
        %502 = vmatpush2.bf16.msra.mxu0 0
        %503 = vmatprep.subr.bf16.mxu0 0
        %504 = vmatpush2.bf16.msra.mxu0 0
        %505 = vmatprep.subr.bf16.mxu0 0
        %506 = vmatpush2.bf16.msra.mxu0 0
        %507 = vmatprep.subr.bf16.mxu0 0
        %508 = vmatpush2.bf16.msra.mxu0 0
        %509 = vmatprep.mubr.bf16.mxu0 0
        %510 = vmatmul.mubr.bf16.gmra.mxu0 %v454
        %v511 = vpop.f32.mrf.mxu0
        %v512 = vadd.f32 %v325, %v511
        %v513 = vpop.f32.mrf.mxu0
        %v514 = vadd.f32 %v327, %v513
        %v515 = vpop.f32.mrf.mxu0
        %v516 = vpop.f32.mrf.mxu0
        %517 = vdwg.mxu0
        %518 = vmatprep.subr.bf16.mxu0 0
        %519 = vmatpush1.bf16.msra.mxu0 0
        %520 = vmatprep.subr.bf16.mxu0 0
        %521 = vmatpush1.bf16.msra.mxu0 0
        %522 = vmatprep.subr.bf16.mxu0 0
        %523 = vmatpush1.bf16.msra.mxu0 0
        %524 = vmatprep.subr.bf16.mxu0 0
        %525 = vmatpush1.bf16.msra.mxu0 0
        %526 = vmatprep.subr.bf16.mxu0 0
        %527 = vmatpush1.bf16.msra.mxu0 0
        %528 = vmatprep.subr.bf16.mxu0 0
        %529 = vmatpush1.bf16.msra.mxu0 0
        %530 = vmatprep.subr.bf16.mxu0 0
        %531 = vmatpush1.bf16.msra.mxu0 0
        %532 = vmatprep.subr.bf16.mxu0 %v466
        %533 = vmatpush1.bf16.msra.mxu0 %v463
        %534 = vmatprep.subr.bf16.mxu0 0
        %535 = vmatpush2.bf16.msra.mxu0 0
        %536 = vmatprep.subr.bf16.mxu0 0
        %537 = vmatpush2.bf16.msra.mxu0 0
        %538 = vmatprep.subr.bf16.mxu0 0
        %539 = vmatpush2.bf16.msra.mxu0 0
        %540 = vmatprep.subr.bf16.mxu0 0
        %541 = vmatpush2.bf16.msra.mxu0 0
        %542 = vmatprep.subr.bf16.mxu0 0
        %543 = vmatpush2.bf16.msra.mxu0 0
        %544 = vmatprep.subr.bf16.mxu0 0
        %545 = vmatpush2.bf16.msra.mxu0 0
        %546 = vmatprep.subr.bf16.mxu0 0
        %547 = vmatpush2.bf16.msra.mxu0 0
        %548 = vmatprep.subr.bf16.mxu0 0
        %549 = vmatpush2.bf16.msra.mxu0 0
        %550 = vmatprep.mubr.bf16.mxu0 0
        %551 = vmatmul.mubr.bf16.gmra.mxu0 %v454
        %v552 = vpop.f32.mrf.mxu0
        %v553 = vadd.f32 %v366, %v552
        %v554 = vpop.f32.mrf.mxu0
        %v555 = vadd.f32 %v368, %v554
        %v556 = vpop.f32.mrf.mxu0
        %v557 = vpop.f32.mrf.mxu0
        %558 = vdwg.mxu0
        %559 = vmatprep.subr.bf16.mxu0 0
        %560 = vmatpush1.bf16.msra.mxu0 0
        %561 = vmatprep.subr.bf16.mxu0 0
        %562 = vmatpush1.bf16.msra.mxu0 0
        %563 = vmatprep.subr.bf16.mxu0 0
        %564 = vmatpush1.bf16.msra.mxu0 0
        %565 = vmatprep.subr.bf16.mxu0 0
        %566 = vmatpush1.bf16.msra.mxu0 0
        %567 = vmatprep.subr.bf16.mxu0 0
        %568 = vmatpush1.bf16.msra.mxu0 0
        %569 = vmatprep.subr.bf16.mxu0 0
        %570 = vmatpush1.bf16.msra.mxu0 0
        %571 = vmatprep.subr.bf16.mxu0 0
        %572 = vmatpush1.bf16.msra.mxu0 0
        %573 = vmatprep.subr.bf16.mxu0 %v472
        %574 = vmatpush1.bf16.msra.mxu0 %v469
        %575 = vmatprep.subr.bf16.mxu0 0
        %576 = vmatpush2.bf16.msra.mxu0 0
        %577 = vmatprep.subr.bf16.mxu0 0
        %578 = vmatpush2.bf16.msra.mxu0 0
        %579 = vmatprep.subr.bf16.mxu0 0
        %580 = vmatpush2.bf16.msra.mxu0 0
        %581 = vmatprep.subr.bf16.mxu0 0
        %582 = vmatpush2.bf16.msra.mxu0 0
        %583 = vmatprep.subr.bf16.mxu0 0
        %584 = vmatpush2.bf16.msra.mxu0 0
        %585 = vmatprep.subr.bf16.mxu0 0
        %586 = vmatpush2.bf16.msra.mxu0 0
        %587 = vmatprep.subr.bf16.mxu0 0
        %588 = vmatpush2.bf16.msra.mxu0 0
        %589 = vmatprep.subr.bf16.mxu0 0
        %590 = vmatpush2.bf16.msra.mxu0 0
        %591 = vmatprep.mubr.bf16.mxu0 0
        %592 = vmatmul.mubr.bf16.gmra.mxu0 %v454
        %v593 = vpop.f32.mrf.mxu0
        %v594 = vadd.f32 %v407, %v593
        %v595 = vpop.f32.mrf.mxu0
        %v596 = vadd.f32 %v409, %v595
        %v597 = vpop.f32.mrf.mxu0
        %v598 = vpop.f32.mrf.mxu0
        %599 = vdwg.mxu0
        %600 = vmatprep.subr.bf16.mxu0 0
        %601 = vmatpush1.bf16.msra.mxu0 0
        %602 = vmatprep.subr.bf16.mxu0 0
        %603 = vmatpush1.bf16.msra.mxu0 0
        %604 = vmatprep.subr.bf16.mxu0 0
        %605 = vmatpush1.bf16.msra.mxu0 0
        %606 = vmatprep.subr.bf16.mxu0 0
        %607 = vmatpush1.bf16.msra.mxu0 0
        %608 = vmatprep.subr.bf16.mxu0 0
        %609 = vmatpush1.bf16.msra.mxu0 0
        %610 = vmatprep.subr.bf16.mxu0 0
        %611 = vmatpush1.bf16.msra.mxu0 0
        %612 = vmatprep.subr.bf16.mxu0 0
        %613 = vmatpush1.bf16.msra.mxu0 0
        %614 = vmatprep.subr.bf16.mxu0 0
        %615 = vmatpush1.bf16.msra.mxu0 %v475
        %616 = vmatprep.subr.bf16.mxu0 0
        %617 = vmatpush2.bf16.msra.mxu0 0
        %618 = vmatprep.subr.bf16.mxu0 0
        %619 = vmatpush2.bf16.msra.mxu0 0
        %620 = vmatprep.subr.bf16.mxu0 0
        %621 = vmatpush2.bf16.msra.mxu0 0
        %622 = vmatprep.subr.bf16.mxu0 0
        %623 = vmatpush2.bf16.msra.mxu0 0
        %624 = vmatprep.subr.bf16.mxu0 0
        %625 = vmatpush2.bf16.msra.mxu0 0
        %626 = vmatprep.subr.bf16.mxu0 0
        %627 = vmatpush2.bf16.msra.mxu0 0
        %628 = vmatprep.subr.bf16.mxu0 0
        %629 = vmatpush2.bf16.msra.mxu0 0
        %630 = vmatprep.subr.bf16.mxu0 0
        %631 = vmatpush2.bf16.msra.mxu0 0
        %632 = vmatprep.mubr.bf16.mxu0 0
        %633 = vmatmul.mubr.bf16.gmra.mxu0 %v454
        %v634 = vpop.f32.mrf.mxu0
        %v635 = vadd.f32 %v448, %v634
        %v636 = vpop.f32.mrf.mxu0
        %v637 = vpop.f32.mrf.mxu0
        %v638 = vpop.f32.mrf.mxu0
        %639 = vdwg.mxu0
        %s640 = scalar_lea.vmem %s1, 8
        %v641 = vld [vmem:[%s640] sm:$0xf]
        %642 = vrot.lane.b32.xlu0 %v213, 126
        %v643 = vpop.permute.xlu0 %642
        %644 = vrot.lane.b32.xlu0 %v221, 126
        %v645 = vpop.permute.xlu0 %644
        %646 = vrot.lane.b32.xlu0 %v220, 126
        %v647 = vpop.permute.xlu0 %646
        %648 = vrot.lane.b32.xlu0 %v222, 126
        %v649 = vpop.permute.xlu0 %648
        %650 = vrot.lane.b32.xlu0 %v230, 126
        %v651 = vpop.permute.xlu0 %650
        %652 = vrot.lane.b32.xlu0 %v238, 126
        %v653 = vpop.permute.xlu0 %652
        %654 = vrot.lane.b32.xlu0 %v237, 126
        %v655 = vpop.permute.xlu0 %654
        %656 = vrot.lane.b32.xlu0 %v239, 126
        %v657 = vpop.permute.xlu0 %656
        %vm658 = vcmask 1031168
        %v659 = vsel %vm658, %v643, %v645
        %v660 = vsel %vm658, %v645, %v647
        %v661 = vsel %vm658, %v647, %v649
        %v662 = vsel %vm658, %v649, %v651
        %v663 = vsel %vm658, %v651, %v653
        %v664 = vsel %vm658, %v653, %v655
        %v665 = vsel %vm658, %v655, %v657
        %v667 = vsel %vm264, %v641, 0
        %v670 = vsel %vm268, %v659, 0
        %v673 = vsel %vm268, %v660, 0
        %v676 = vsel %vm268, %v661, 0
        %v679 = vsel %vm268, %v662, 0
        %v682 = vsel %vm268, %v663, 0
        %v685 = vsel %vm268, %v664, 0
        %v688 = vsel %vm268, %v665, 0
        %690 = vmatprep.subr.bf16.mxu0 0
        %691 = vmatpush1.bf16.msra.mxu0 0
        %692 = vmatprep.subr.bf16.mxu0 0
        %693 = vmatpush1.bf16.msra.mxu0 0
        %694 = vmatprep.subr.bf16.mxu0 0
        %695 = vmatpush1.bf16.msra.mxu0 0
        %696 = vmatprep.subr.bf16.mxu0 0
        %697 = vmatpush1.bf16.msra.mxu0 0
        %698 = vmatprep.subr.bf16.mxu0 0
        %699 = vmatpush1.bf16.msra.mxu0 0
        %700 = vmatprep.subr.bf16.mxu0 0
        %701 = vmatpush1.bf16.msra.mxu0 0
        %702 = vmatprep.subr.bf16.mxu0 0
        %703 = vmatpush1.bf16.msra.mxu0 0
        %704 = vmatprep.subr.bf16.mxu0 %v673
        %705 = vmatpush1.bf16.msra.mxu0 %v670
        %706 = vmatprep.subr.bf16.mxu0 0
        %707 = vmatpush2.bf16.msra.mxu0 0
        %708 = vmatprep.subr.bf16.mxu0 0
        %709 = vmatpush2.bf16.msra.mxu0 0
        %710 = vmatprep.subr.bf16.mxu0 0
        %711 = vmatpush2.bf16.msra.mxu0 0
        %712 = vmatprep.subr.bf16.mxu0 0
        %713 = vmatpush2.bf16.msra.mxu0 0
        %714 = vmatprep.subr.bf16.mxu0 0
        %715 = vmatpush2.bf16.msra.mxu0 0
        %716 = vmatprep.subr.bf16.mxu0 0
        %717 = vmatpush2.bf16.msra.mxu0 0
        %718 = vmatprep.subr.bf16.mxu0 0
        %719 = vmatpush2.bf16.msra.mxu0 0
        %720 = vmatprep.subr.bf16.mxu0 0
        %721 = vmatpush2.bf16.msra.mxu0 0
        %722 = vmatprep.mubr.bf16.mxu0 0
        %723 = vmatmul.mubr.bf16.gmra.mxu0 %v667
        %v724 = vpop.f32.mrf.mxu0
        %v725 = vadd.f32 0.0, %v724
        %v726 = vpop.f32.mrf.mxu0
        %v727 = vadd.f32 0.0, %v726
        %v728 = vpop.f32.mrf.mxu0
        %v729 = vpop.f32.mrf.mxu0
        %730 = vdwg.mxu0
        %731 = vmatprep.subr.bf16.mxu0 0
        %732 = vmatpush1.bf16.msra.mxu0 0
        %733 = vmatprep.subr.bf16.mxu0 0
        %734 = vmatpush1.bf16.msra.mxu0 0
        %735 = vmatprep.subr.bf16.mxu0 0
        %736 = vmatpush1.bf16.msra.mxu0 0
        %737 = vmatprep.subr.bf16.mxu0 0
        %738 = vmatpush1.bf16.msra.mxu0 0
        %739 = vmatprep.subr.bf16.mxu0 0
        %740 = vmatpush1.bf16.msra.mxu0 0
        %741 = vmatprep.subr.bf16.mxu0 0
        %742 = vmatpush1.bf16.msra.mxu0 0
        %743 = vmatprep.subr.bf16.mxu0 0
        %744 = vmatpush1.bf16.msra.mxu0 0
        %745 = vmatprep.subr.bf16.mxu0 %v679
        %746 = vmatpush1.bf16.msra.mxu0 %v676
        %747 = vmatprep.subr.bf16.mxu0 0
        %748 = vmatpush2.bf16.msra.mxu0 0
        %749 = vmatprep.subr.bf16.mxu0 0
        %750 = vmatpush2.bf16.msra.mxu0 0
        %751 = vmatprep.subr.bf16.mxu0 0
        %752 = vmatpush2.bf16.msra.mxu0 0
        %753 = vmatprep.subr.bf16.mxu0 0
        %754 = vmatpush2.bf16.msra.mxu0 0
        %755 = vmatprep.subr.bf16.mxu0 0
        %756 = vmatpush2.bf16.msra.mxu0 0
        %757 = vmatprep.subr.bf16.mxu0 0
        %758 = vmatpush2.bf16.msra.mxu0 0
        %759 = vmatprep.subr.bf16.mxu0 0
        %760 = vmatpush2.bf16.msra.mxu0 0
        %761 = vmatprep.subr.bf16.mxu0 0
        %762 = vmatpush2.bf16.msra.mxu0 0
        %763 = vmatprep.mubr.bf16.mxu0 0
        %764 = vmatmul.mubr.bf16.gmra.mxu0 %v667
        %v765 = vpop.f32.mrf.mxu0
        %v766 = vadd.f32 0.0, %v765
        %v767 = vpop.f32.mrf.mxu0
        %v768 = vadd.f32 0.0, %v767
        %v769 = vpop.f32.mrf.mxu0
        %v770 = vpop.f32.mrf.mxu0
        %771 = vdwg.mxu0
        %772 = vmatprep.subr.bf16.mxu0 0
        %773 = vmatpush1.bf16.msra.mxu0 0
        %774 = vmatprep.subr.bf16.mxu0 0
        %775 = vmatpush1.bf16.msra.mxu0 0
        %776 = vmatprep.subr.bf16.mxu0 0
        %777 = vmatpush1.bf16.msra.mxu0 0
        %778 = vmatprep.subr.bf16.mxu0 0
        %779 = vmatpush1.bf16.msra.mxu0 0
        %780 = vmatprep.subr.bf16.mxu0 0
        %781 = vmatpush1.bf16.msra.mxu0 0
        %782 = vmatprep.subr.bf16.mxu0 0
        %783 = vmatpush1.bf16.msra.mxu0 0
        %784 = vmatprep.subr.bf16.mxu0 0
        %785 = vmatpush1.bf16.msra.mxu0 0
        %786 = vmatprep.subr.bf16.mxu0 %v685
        %787 = vmatpush1.bf16.msra.mxu0 %v682
        %788 = vmatprep.subr.bf16.mxu0 0
        %789 = vmatpush2.bf16.msra.mxu0 0
        %790 = vmatprep.subr.bf16.mxu0 0
        %791 = vmatpush2.bf16.msra.mxu0 0
        %792 = vmatprep.subr.bf16.mxu0 0
        %793 = vmatpush2.bf16.msra.mxu0 0
        %794 = vmatprep.subr.bf16.mxu0 0
        %795 = vmatpush2.bf16.msra.mxu0 0
        %796 = vmatprep.subr.bf16.mxu0 0
        %797 = vmatpush2.bf16.msra.mxu0 0
        %798 = vmatprep.subr.bf16.mxu0 0
        %799 = vmatpush2.bf16.msra.mxu0 0
        %800 = vmatprep.subr.bf16.mxu0 0
        %801 = vmatpush2.bf16.msra.mxu0 0
        %802 = vmatprep.subr.bf16.mxu0 0
        %803 = vmatpush2.bf16.msra.mxu0 0
        %804 = vmatprep.mubr.bf16.mxu0 0
        %805 = vmatmul.mubr.bf16.gmra.mxu0 %v667
        %v806 = vpop.f32.mrf.mxu0
        %v807 = vadd.f32 0.0, %v806
        %v808 = vpop.f32.mrf.mxu0
        %v809 = vadd.f32 0.0, %v808
        %v810 = vpop.f32.mrf.mxu0
        %v811 = vpop.f32.mrf.mxu0
        %812 = vdwg.mxu0
        %813 = vmatprep.subr.bf16.mxu0 0
        %814 = vmatpush1.bf16.msra.mxu0 0
        %815 = vmatprep.subr.bf16.mxu0 0
        %816 = vmatpush1.bf16.msra.mxu0 0
        %817 = vmatprep.subr.bf16.mxu0 0
        %818 = vmatpush1.bf16.msra.mxu0 0
        %819 = vmatprep.subr.bf16.mxu0 0
        %820 = vmatpush1.bf16.msra.mxu0 0
        %821 = vmatprep.subr.bf16.mxu0 0
        %822 = vmatpush1.bf16.msra.mxu0 0
        %823 = vmatprep.subr.bf16.mxu0 0
        %824 = vmatpush1.bf16.msra.mxu0 0
        %825 = vmatprep.subr.bf16.mxu0 0
        %826 = vmatpush1.bf16.msra.mxu0 0
        %827 = vmatprep.subr.bf16.mxu0 0
        %828 = vmatpush1.bf16.msra.mxu0 %v688
        %829 = vmatprep.subr.bf16.mxu0 0
        %830 = vmatpush2.bf16.msra.mxu0 0
        %831 = vmatprep.subr.bf16.mxu0 0
        %832 = vmatpush2.bf16.msra.mxu0 0
        %833 = vmatprep.subr.bf16.mxu0 0
        %834 = vmatpush2.bf16.msra.mxu0 0
        %835 = vmatprep.subr.bf16.mxu0 0
        %836 = vmatpush2.bf16.msra.mxu0 0
        %837 = vmatprep.subr.bf16.mxu0 0
        %838 = vmatpush2.bf16.msra.mxu0 0
        %839 = vmatprep.subr.bf16.mxu0 0
        %840 = vmatpush2.bf16.msra.mxu0 0
        %841 = vmatprep.subr.bf16.mxu0 0
        %842 = vmatpush2.bf16.msra.mxu0 0
        %843 = vmatprep.subr.bf16.mxu0 0
        %844 = vmatpush2.bf16.msra.mxu0 0
        %845 = vmatprep.mubr.bf16.mxu0 0
        %846 = vmatmul.mubr.bf16.gmra.mxu0 %v667
        %v847 = vpop.f32.mrf.mxu0
        %v848 = vadd.f32 0.0, %v847
        %v849 = vpop.f32.mrf.mxu0
        %v850 = vpop.f32.mrf.mxu0
        %v851 = vpop.f32.mrf.mxu0
        %852 = vdwg.mxu0
        %v853 = vadd.f32 %v512, %v725
        %v854 = vadd.f32 %v514, %v727
        %v855 = vadd.f32 %v553, %v766
        %v856 = vadd.f32 %v555, %v768
        %v857 = vadd.f32 %v594, %v807
        %v858 = vadd.f32 %v596, %v809
        %v859 = vadd.f32 %v635, %v848
        %s860 = scalar_lea.vmem %s1, 12
        %v861 = vld [vmem:[%s860] sm:$0xf]
        %862 = vrot.lane.b32.xlu0 %v213, 118
        %v863 = vpop.permute.xlu0 %862
        %864 = vrot.lane.b32.xlu0 %v221, 118
        %v865 = vpop.permute.xlu0 %864
        %866 = vrot.lane.b32.xlu0 %v220, 118
        %v867 = vpop.permute.xlu0 %866
        %868 = vrot.lane.b32.xlu0 %v222, 118
        %v869 = vpop.permute.xlu0 %868
        %870 = vrot.lane.b32.xlu0 %v230, 118
        %v871 = vpop.permute.xlu0 %870
        %872 = vrot.lane.b32.xlu0 %v238, 118
        %v873 = vpop.permute.xlu0 %872
        %874 = vrot.lane.b32.xlu0 %v237, 118
        %v875 = vpop.permute.xlu0 %874
        %876 = vrot.lane.b32.xlu0 %v239, 118
        %v877 = vpop.permute.xlu0 %876
        %vm878 = vcmask 965632
        %v879 = vsel %vm878, %v863, %v865
        %v880 = vsel %vm878, %v865, %v867
        %v881 = vsel %vm878, %v867, %v869
        %v882 = vsel %vm878, %v869, %v871
        %v883 = vsel %vm878, %v871, %v873
        %v884 = vsel %vm878, %v873, %v875
        %v885 = vsel %vm878, %v875, %v877
        %v887 = vsel %vm264, %v861, 0
        %v890 = vsel %vm268, %v879, 0
        %v893 = vsel %vm268, %v880, 0
        %v896 = vsel %vm268, %v881, 0
        %v899 = vsel %vm268, %v882, 0
        %v902 = vsel %vm268, %v883, 0
        %v905 = vsel %vm268, %v884, 0
        %v908 = vsel %vm268, %v885, 0
        %910 = vmatprep.subr.bf16.mxu0 0
        %911 = vmatpush1.bf16.msra.mxu0 0
        %912 = vmatprep.subr.bf16.mxu0 0
        %913 = vmatpush1.bf16.msra.mxu0 0
        %914 = vmatprep.subr.bf16.mxu0 0
        %915 = vmatpush1.bf16.msra.mxu0 0
        %916 = vmatprep.subr.bf16.mxu0 0
        %917 = vmatpush1.bf16.msra.mxu0 0
        %918 = vmatprep.subr.bf16.mxu0 0
        %919 = vmatpush1.bf16.msra.mxu0 0
        %920 = vmatprep.subr.bf16.mxu0 0
        %921 = vmatpush1.bf16.msra.mxu0 0
        %922 = vmatprep.subr.bf16.mxu0 0
        %923 = vmatpush1.bf16.msra.mxu0 0
        %924 = vmatprep.subr.bf16.mxu0 %v893
        %925 = vmatpush1.bf16.msra.mxu0 %v890
        %926 = vmatprep.subr.bf16.mxu0 0
        %927 = vmatpush2.bf16.msra.mxu0 0
        %928 = vmatprep.subr.bf16.mxu0 0
        %929 = vmatpush2.bf16.msra.mxu0 0
        %930 = vmatprep.subr.bf16.mxu0 0
        %931 = vmatpush2.bf16.msra.mxu0 0
        %932 = vmatprep.subr.bf16.mxu0 0
        %933 = vmatpush2.bf16.msra.mxu0 0
        %934 = vmatprep.subr.bf16.mxu0 0
        %935 = vmatpush2.bf16.msra.mxu0 0
        %936 = vmatprep.subr.bf16.mxu0 0
        %937 = vmatpush2.bf16.msra.mxu0 0
        %938 = vmatprep.subr.bf16.mxu0 0
        %939 = vmatpush2.bf16.msra.mxu0 0
        %940 = vmatprep.subr.bf16.mxu0 0
        %941 = vmatpush2.bf16.msra.mxu0 0
        %942 = vmatprep.mubr.bf16.mxu0 0
        %943 = vmatmul.mubr.bf16.gmra.mxu0 %v887
        %v944 = vpop.f32.mrf.mxu0
        %v945 = vadd.f32 0.0, %v944
        %v946 = vpop.f32.mrf.mxu0
        %v947 = vadd.f32 0.0, %v946
        %v948 = vpop.f32.mrf.mxu0
        %v949 = vpop.f32.mrf.mxu0
        %950 = vdwg.mxu0
        %951 = vmatprep.subr.bf16.mxu0 0
        %952 = vmatpush1.bf16.msra.mxu0 0
        %953 = vmatprep.subr.bf16.mxu0 0
        %954 = vmatpush1.bf16.msra.mxu0 0
        %955 = vmatprep.subr.bf16.mxu0 0
        %956 = vmatpush1.bf16.msra.mxu0 0
        %957 = vmatprep.subr.bf16.mxu0 0
        %958 = vmatpush1.bf16.msra.mxu0 0
        %959 = vmatprep.subr.bf16.mxu0 0
        %960 = vmatpush1.bf16.msra.mxu0 0
        %961 = vmatprep.subr.bf16.mxu0 0
        %962 = vmatpush1.bf16.msra.mxu0 0
        %963 = vmatprep.subr.bf16.mxu0 0
        %964 = vmatpush1.bf16.msra.mxu0 0
        %965 = vmatprep.subr.bf16.mxu0 %v899
        %966 = vmatpush1.bf16.msra.mxu0 %v896
        %967 = vmatprep.subr.bf16.mxu0 0
        %968 = vmatpush2.bf16.msra.mxu0 0
        %969 = vmatprep.subr.bf16.mxu0 0
        %970 = vmatpush2.bf16.msra.mxu0 0
        %971 = vmatprep.subr.bf16.mxu0 0
        %972 = vmatpush2.bf16.msra.mxu0 0
        %973 = vmatprep.subr.bf16.mxu0 0
        %974 = vmatpush2.bf16.msra.mxu0 0
        %975 = vmatprep.subr.bf16.mxu0 0
        %976 = vmatpush2.bf16.msra.mxu0 0
        %977 = vmatprep.subr.bf16.mxu0 0
        %978 = vmatpush2.bf16.msra.mxu0 0
        %979 = vmatprep.subr.bf16.mxu0 0
        %980 = vmatpush2.bf16.msra.mxu0 0
        %981 = vmatprep.subr.bf16.mxu0 0
        %982 = vmatpush2.bf16.msra.mxu0 0
        %983 = vmatprep.mubr.bf16.mxu0 0
        %984 = vmatmul.mubr.bf16.gmra.mxu0 %v887
        %v985 = vpop.f32.mrf.mxu0
        %v986 = vadd.f32 0.0, %v985
        %v987 = vpop.f32.mrf.mxu0
        %v988 = vadd.f32 0.0, %v987
        %v989 = vpop.f32.mrf.mxu0
        %v990 = vpop.f32.mrf.mxu0
        %991 = vdwg.mxu0
        %992 = vmatprep.subr.bf16.mxu0 0
        %993 = vmatpush1.bf16.msra.mxu0 0
        %994 = vmatprep.subr.bf16.mxu0 0
        %995 = vmatpush1.bf16.msra.mxu0 0
        %996 = vmatprep.subr.bf16.mxu0 0
        %997 = vmatpush1.bf16.msra.mxu0 0
        %998 = vmatprep.subr.bf16.mxu0 0
        %999 = vmatpush1.bf16.msra.mxu0 0
        %1000 = vmatprep.subr.bf16.mxu0 0
        %1001 = vmatpush1.bf16.msra.mxu0 0
        %1002 = vmatprep.subr.bf16.mxu0 0
        %1003 = vmatpush1.bf16.msra.mxu0 0
        %1004 = vmatprep.subr.bf16.mxu0 0
        %1005 = vmatpush1.bf16.msra.mxu0 0
        %1006 = vmatprep.subr.bf16.mxu0 %v905
        %1007 = vmatpush1.bf16.msra.mxu0 %v902
        %1008 = vmatprep.subr.bf16.mxu0 0
        %1009 = vmatpush2.bf16.msra.mxu0 0
        %1010 = vmatprep.subr.bf16.mxu0 0
        %1011 = vmatpush2.bf16.msra.mxu0 0
        %1012 = vmatprep.subr.bf16.mxu0 0
        %1013 = vmatpush2.bf16.msra.mxu0 0
        %1014 = vmatprep.subr.bf16.mxu0 0
        %1015 = vmatpush2.bf16.msra.mxu0 0
        %1016 = vmatprep.subr.bf16.mxu0 0
        %1017 = vmatpush2.bf16.msra.mxu0 0
        %1018 = vmatprep.subr.bf16.mxu0 0
        %1019 = vmatpush2.bf16.msra.mxu0 0
        %1020 = vmatprep.subr.bf16.mxu0 0
        %1021 = vmatpush2.bf16.msra.mxu0 0
        %1022 = vmatprep.subr.bf16.mxu0 0
        %1023 = vmatpush2.bf16.msra.mxu0 0
        %1024 = vmatprep.mubr.bf16.mxu0 0
        %1025 = vmatmul.mubr.bf16.gmra.mxu0 %v887
        %v1026 = vpop.f32.mrf.mxu0
        %v1027 = vadd.f32 0.0, %v1026
        %v1028 = vpop.f32.mrf.mxu0
        %v1029 = vadd.f32 0.0, %v1028
        %v1030 = vpop.f32.mrf.mxu0
        %v1031 = vpop.f32.mrf.mxu0
        %1032 = vdwg.mxu0
        %1033 = vmatprep.subr.bf16.mxu0 0
        %1034 = vmatpush1.bf16.msra.mxu0 0
        %1035 = vmatprep.subr.bf16.mxu0 0
        %1036 = vmatpush1.bf16.msra.mxu0 0
        %1037 = vmatprep.subr.bf16.mxu0 0
        %1038 = vmatpush1.bf16.msra.mxu0 0
        %1039 = vmatprep.subr.bf16.mxu0 0
        %1040 = vmatpush1.bf16.msra.mxu0 0
        %1041 = vmatprep.subr.bf16.mxu0 0
        %1042 = vmatpush1.bf16.msra.mxu0 0
        %1043 = vmatprep.subr.bf16.mxu0 0
        %1044 = vmatpush1.bf16.msra.mxu0 0
        %1045 = vmatprep.subr.bf16.mxu0 0
        %1046 = vmatpush1.bf16.msra.mxu0 0
        %1047 = vmatprep.subr.bf16.mxu0 0
        %1048 = vmatpush1.bf16.msra.mxu0 %v908
        %1049 = vmatprep.subr.bf16.mxu0 0
        %1050 = vmatpush2.bf16.msra.mxu0 0
        %1051 = vmatprep.subr.bf16.mxu0 0
        %1052 = vmatpush2.bf16.msra.mxu0 0
        %1053 = vmatprep.subr.bf16.mxu0 0
        %1054 = vmatpush2.bf16.msra.mxu0 0
        %1055 = vmatprep.subr.bf16.mxu0 0
        %1056 = vmatpush2.bf16.msra.mxu0 0
        %1057 = vmatprep.subr.bf16.mxu0 0
        %1058 = vmatpush2.bf16.msra.mxu0 0
        %1059 = vmatprep.subr.bf16.mxu0 0
        %1060 = vmatpush2.bf16.msra.mxu0 0
        %1061 = vmatprep.subr.bf16.mxu0 0
        %1062 = vmatpush2.bf16.msra.mxu0 0
        %1063 = vmatprep.subr.bf16.mxu0 0
        %1064 = vmatpush2.bf16.msra.mxu0 0
        %1065 = vmatprep.mubr.bf16.mxu0 0
        %1066 = vmatmul.mubr.bf16.gmra.mxu0 %v887
        %v1067 = vpop.f32.mrf.mxu0
        %v1068 = vadd.f32 0.0, %v1067
        %v1069 = vpop.f32.mrf.mxu0
        %v1070 = vpop.f32.mrf.mxu0
        %v1071 = vpop.f32.mrf.mxu0
        %1072 = vdwg.mxu0
        %v1073 = vadd.f32 %v853, %v945
        %v1074 = vadd.f32 %v854, %v947
        %v1075 = vadd.f32 %v855, %v986
        %v1076 = vadd.f32 %v856, %v988
        %v1077 = vadd.f32 %v857, %v1027
        %v1078 = vadd.f32 %v858, %v1029
        %v1079 = vadd.f32 %v859, %v1068
        %s1080 = scalar_lea.vmem %s1, 16
        %v1081 = vld [vmem:[%s1080] sm:$0xf]
        %1082 = vrot.lane.b32.xlu0 %v213, 117
        %v1083 = vpop.permute.xlu0 %1082
        %1084 = vrot.lane.b32.xlu0 %v221, 117
        %v1085 = vpop.permute.xlu0 %1084
        %1086 = vrot.lane.b32.xlu0 %v220, 117
        %v1087 = vpop.permute.xlu0 %1086
        %1088 = vrot.lane.b32.xlu0 %v222, 117
        %v1089 = vpop.permute.xlu0 %1088
        %1090 = vrot.lane.b32.xlu0 %v230, 117
        %v1091 = vpop.permute.xlu0 %1090
        %1092 = vrot.lane.b32.xlu0 %v238, 117
        %v1093 = vpop.permute.xlu0 %1092
        %1094 = vrot.lane.b32.xlu0 %v237, 117
        %v1095 = vpop.permute.xlu0 %1094
        %1096 = vrot.lane.b32.xlu0 %v239, 117
        %v1097 = vpop.permute.xlu0 %1096
        %vm1098 = vcmask 957440
        %v1099 = vsel %vm1098, %v1083, %v1085
        %v1100 = vsel %vm1098, %v1085, %v1087
        %v1101 = vsel %vm1098, %v1087, %v1089
        %v1102 = vsel %vm1098, %v1089, %v1091
        %v1103 = vsel %vm1098, %v1091, %v1093
        %v1104 = vsel %vm1098, %v1093, %v1095
        %v1105 = vsel %vm1098, %v1095, %v1097
        %v1107 = vsel %vm264, %v1081, 0
        %v1110 = vsel %vm268, %v1099, 0
        %v1113 = vsel %vm268, %v1100, 0
        %v1116 = vsel %vm268, %v1101, 0
        %v1119 = vsel %vm268, %v1102, 0
        %v1122 = vsel %vm268, %v1103, 0
        %v1125 = vsel %vm268, %v1104, 0
        %v1128 = vsel %vm268, %v1105, 0
        %1130 = vmatprep.subr.bf16.mxu0 0
        %1131 = vmatpush1.bf16.msra.mxu0 0
        %1132 = vmatprep.subr.bf16.mxu0 0
        %1133 = vmatpush1.bf16.msra.mxu0 0
        %1134 = vmatprep.subr.bf16.mxu0 0
        %1135 = vmatpush1.bf16.msra.mxu0 0
        %1136 = vmatprep.subr.bf16.mxu0 0
        %1137 = vmatpush1.bf16.msra.mxu0 0
        %1138 = vmatprep.subr.bf16.mxu0 0
        %1139 = vmatpush1.bf16.msra.mxu0 0
        %1140 = vmatprep.subr.bf16.mxu0 0
        %1141 = vmatpush1.bf16.msra.mxu0 0
        %1142 = vmatprep.subr.bf16.mxu0 0
        %1143 = vmatpush1.bf16.msra.mxu0 0
        %1144 = vmatprep.subr.bf16.mxu0 %v1113
        %1145 = vmatpush1.bf16.msra.mxu0 %v1110
        %1146 = vmatprep.subr.bf16.mxu0 0
        %1147 = vmatpush2.bf16.msra.mxu0 0
        %1148 = vmatprep.subr.bf16.mxu0 0
        %1149 = vmatpush2.bf16.msra.mxu0 0
        %1150 = vmatprep.subr.bf16.mxu0 0
        %1151 = vmatpush2.bf16.msra.mxu0 0
        %1152 = vmatprep.subr.bf16.mxu0 0
        %1153 = vmatpush2.bf16.msra.mxu0 0
        %1154 = vmatprep.subr.bf16.mxu0 0
        %1155 = vmatpush2.bf16.msra.mxu0 0
        %1156 = vmatprep.subr.bf16.mxu0 0
        %1157 = vmatpush2.bf16.msra.mxu0 0
        %1158 = vmatprep.subr.bf16.mxu0 0
        %1159 = vmatpush2.bf16.msra.mxu0 0
        %1160 = vmatprep.subr.bf16.mxu0 0
        %1161 = vmatpush2.bf16.msra.mxu0 0
        %1162 = vmatprep.mubr.bf16.mxu0 0
        %1163 = vmatmul.mubr.bf16.gmra.mxu0 %v1107
        %v1164 = vpop.f32.mrf.mxu0
        %v1165 = vadd.f32 0.0, %v1164
        %v1166 = vpop.f32.mrf.mxu0
        %v1167 = vadd.f32 0.0, %v1166
        %v1168 = vpop.f32.mrf.mxu0
        %v1169 = vpop.f32.mrf.mxu0
        %1170 = vdwg.mxu0
        %1171 = vmatprep.subr.bf16.mxu0 0
        %1172 = vmatpush1.bf16.msra.mxu0 0
        %1173 = vmatprep.subr.bf16.mxu0 0
        %1174 = vmatpush1.bf16.msra.mxu0 0
        %1175 = vmatprep.subr.bf16.mxu0 0
        %1176 = vmatpush1.bf16.msra.mxu0 0
        %1177 = vmatprep.subr.bf16.mxu0 0
        %1178 = vmatpush1.bf16.msra.mxu0 0
        %1179 = vmatprep.subr.bf16.mxu0 0
        %1180 = vmatpush1.bf16.msra.mxu0 0
        %1181 = vmatprep.subr.bf16.mxu0 0
        %1182 = vmatpush1.bf16.msra.mxu0 0
        %1183 = vmatprep.subr.bf16.mxu0 0
        %1184 = vmatpush1.bf16.msra.mxu0 0
        %1185 = vmatprep.subr.bf16.mxu0 %v1119
        %1186 = vmatpush1.bf16.msra.mxu0 %v1116
        %1187 = vmatprep.subr.bf16.mxu0 0
        %1188 = vmatpush2.bf16.msra.mxu0 0
        %1189 = vmatprep.subr.bf16.mxu0 0
        %1190 = vmatpush2.bf16.msra.mxu0 0
        %1191 = vmatprep.subr.bf16.mxu0 0
        %1192 = vmatpush2.bf16.msra.mxu0 0
        %1193 = vmatprep.subr.bf16.mxu0 0
        %1194 = vmatpush2.bf16.msra.mxu0 0
        %1195 = vmatprep.subr.bf16.mxu0 0
        %1196 = vmatpush2.bf16.msra.mxu0 0
        %1197 = vmatprep.subr.bf16.mxu0 0
        %1198 = vmatpush2.bf16.msra.mxu0 0
        %1199 = vmatprep.subr.bf16.mxu0 0
        %1200 = vmatpush2.bf16.msra.mxu0 0
        %1201 = vmatprep.subr.bf16.mxu0 0
        %1202 = vmatpush2.bf16.msra.mxu0 0
        %1203 = vmatprep.mubr.bf16.mxu0 0
        %1204 = vmatmul.mubr.bf16.gmra.mxu0 %v1107
        %v1205 = vpop.f32.mrf.mxu0
        %v1206 = vadd.f32 0.0, %v1205
        %v1207 = vpop.f32.mrf.mxu0
        %v1208 = vadd.f32 0.0, %v1207
        %v1209 = vpop.f32.mrf.mxu0
        %v1210 = vpop.f32.mrf.mxu0
        %1211 = vdwg.mxu0
        %1212 = vmatprep.subr.bf16.mxu0 0
        %1213 = vmatpush1.bf16.msra.mxu0 0
        %1214 = vmatprep.subr.bf16.mxu0 0
        %1215 = vmatpush1.bf16.msra.mxu0 0
        %1216 = vmatprep.subr.bf16.mxu0 0
        %1217 = vmatpush1.bf16.msra.mxu0 0
        %1218 = vmatprep.subr.bf16.mxu0 0
        %1219 = vmatpush1.bf16.msra.mxu0 0
        %1220 = vmatprep.subr.bf16.mxu0 0
        %1221 = vmatpush1.bf16.msra.mxu0 0
        %1222 = vmatprep.subr.bf16.mxu0 0
        %1223 = vmatpush1.bf16.msra.mxu0 0
        %1224 = vmatprep.subr.bf16.mxu0 0
        %1225 = vmatpush1.bf16.msra.mxu0 0
        %1226 = vmatprep.subr.bf16.mxu0 %v1125
        %1227 = vmatpush1.bf16.msra.mxu0 %v1122
        %1228 = vmatprep.subr.bf16.mxu0 0
        %1229 = vmatpush2.bf16.msra.mxu0 0
        %1230 = vmatprep.subr.bf16.mxu0 0
        %1231 = vmatpush2.bf16.msra.mxu0 0
        %1232 = vmatprep.subr.bf16.mxu0 0
        %1233 = vmatpush2.bf16.msra.mxu0 0
        %1234 = vmatprep.subr.bf16.mxu0 0
        %1235 = vmatpush2.bf16.msra.mxu0 0
        %1236 = vmatprep.subr.bf16.mxu0 0
        %1237 = vmatpush2.bf16.msra.mxu0 0
        %1238 = vmatprep.subr.bf16.mxu0 0
        %1239 = vmatpush2.bf16.msra.mxu0 0
        %1240 = vmatprep.subr.bf16.mxu0 0
        %1241 = vmatpush2.bf16.msra.mxu0 0
        %1242 = vmatprep.subr.bf16.mxu0 0
        %1243 = vmatpush2.bf16.msra.mxu0 0
        %1244 = vmatprep.mubr.bf16.mxu0 0
        %1245 = vmatmul.mubr.bf16.gmra.mxu0 %v1107
        %v1246 = vpop.f32.mrf.mxu0
        %v1247 = vadd.f32 0.0, %v1246
        %v1248 = vpop.f32.mrf.mxu0
        %v1249 = vadd.f32 0.0, %v1248
        %v1250 = vpop.f32.mrf.mxu0
        %v1251 = vpop.f32.mrf.mxu0
        %1252 = vdwg.mxu0
        %1253 = vmatprep.subr.bf16.mxu0 0
        %1254 = vmatpush1.bf16.msra.mxu0 0
        %1255 = vmatprep.subr.bf16.mxu0 0
        %1256 = vmatpush1.bf16.msra.mxu0 0
        %1257 = vmatprep.subr.bf16.mxu0 0
        %1258 = vmatpush1.bf16.msra.mxu0 0
        %1259 = vmatprep.subr.bf16.mxu0 0
        %1260 = vmatpush1.bf16.msra.mxu0 0
        %1261 = vmatprep.subr.bf16.mxu0 0
        %1262 = vmatpush1.bf16.msra.mxu0 0
        %1263 = vmatprep.subr.bf16.mxu0 0
        %1264 = vmatpush1.bf16.msra.mxu0 0
        %1265 = vmatprep.subr.bf16.mxu0 0
        %1266 = vmatpush1.bf16.msra.mxu0 0
        %1267 = vmatprep.subr.bf16.mxu0 0
        %1268 = vmatpush1.bf16.msra.mxu0 %v1128
        %1269 = vmatprep.subr.bf16.mxu0 0
        %1270 = vmatpush2.bf16.msra.mxu0 0
        %1271 = vmatprep.subr.bf16.mxu0 0
        %1272 = vmatpush2.bf16.msra.mxu0 0
        %1273 = vmatprep.subr.bf16.mxu0 0
        %1274 = vmatpush2.bf16.msra.mxu0 0
        %1275 = vmatprep.subr.bf16.mxu0 0
        %1276 = vmatpush2.bf16.msra.mxu0 0
        %1277 = vmatprep.subr.bf16.mxu0 0
        %1278 = vmatpush2.bf16.msra.mxu0 0
        %1279 = vmatprep.subr.bf16.mxu0 0
        %1280 = vmatpush2.bf16.msra.mxu0 0
        %1281 = vmatprep.subr.bf16.mxu0 0
        %1282 = vmatpush2.bf16.msra.mxu0 0
        %1283 = vmatprep.subr.bf16.mxu0 0
        %1284 = vmatpush2.bf16.msra.mxu0 0
        %1285 = vmatprep.mubr.bf16.mxu0 0
        %1286 = vmatmul.mubr.bf16.gmra.mxu0 %v1107
        %v1287 = vpop.f32.mrf.mxu0
        %v1288 = vadd.f32 0.0, %v1287
        %v1289 = vpop.f32.mrf.mxu0
        %v1290 = vpop.f32.mrf.mxu0
        %v1291 = vpop.f32.mrf.mxu0
        %1292 = vdwg.mxu0
        %v1293 = vadd.f32 %v1073, %v1165
        %v1294 = vadd.f32 %v1074, %v1167
        %v1295 = vadd.f32 %v1075, %v1206
        %v1296 = vadd.f32 %v1076, %v1208
        %v1297 = vadd.f32 %v1077, %v1247
        %v1298 = vadd.f32 %v1078, %v1249
        %v1299 = vadd.f32 %v1079, %v1288
        %s1300 = scalar_lea.vmem %s1, 20
        %v1301 = vld [vmem:[%s1300] sm:$0xf]
        %1302 = vrot.lane.b32.xlu0 %v213, 116
        %v1303 = vpop.permute.xlu0 %1302
        %1304 = vrot.lane.b32.xlu0 %v221, 116
        %v1305 = vpop.permute.xlu0 %1304
        %1306 = vrot.lane.b32.xlu0 %v220, 116
        %v1307 = vpop.permute.xlu0 %1306
        %1308 = vrot.lane.b32.xlu0 %v222, 116
        %v1309 = vpop.permute.xlu0 %1308
        %1310 = vrot.lane.b32.xlu0 %v230, 116
        %v1311 = vpop.permute.xlu0 %1310
        %1312 = vrot.lane.b32.xlu0 %v238, 116
        %v1313 = vpop.permute.xlu0 %1312
        %1314 = vrot.lane.b32.xlu0 %v237, 116
        %v1315 = vpop.permute.xlu0 %1314
        %1316 = vrot.lane.b32.xlu0 %v239, 116
        %v1317 = vpop.permute.xlu0 %1316
        %vm1318 = vcmask 949248
        %v1319 = vsel %vm1318, %v1303, %v1305
        %v1320 = vsel %vm1318, %v1305, %v1307
        %v1321 = vsel %vm1318, %v1307, %v1309
        %v1322 = vsel %vm1318, %v1309, %v1311
        %v1323 = vsel %vm1318, %v1311, %v1313
        %v1324 = vsel %vm1318, %v1313, %v1315
        %v1325 = vsel %vm1318, %v1315, %v1317
        %v1327 = vsel %vm264, %v1301, 0
        %v1330 = vsel %vm268, %v1319, 0
        %v1333 = vsel %vm268, %v1320, 0
        %v1336 = vsel %vm268, %v1321, 0
        %v1339 = vsel %vm268, %v1322, 0
        %v1342 = vsel %vm268, %v1323, 0
        %v1345 = vsel %vm268, %v1324, 0
        %v1348 = vsel %vm268, %v1325, 0
        %1350 = vmatprep.subr.bf16.mxu0 0
        %1351 = vmatpush1.bf16.msra.mxu0 0
        %1352 = vmatprep.subr.bf16.mxu0 0
        %1353 = vmatpush1.bf16.msra.mxu0 0
        %1354 = vmatprep.subr.bf16.mxu0 0
        %1355 = vmatpush1.bf16.msra.mxu0 0
        %1356 = vmatprep.subr.bf16.mxu0 0
        %1357 = vmatpush1.bf16.msra.mxu0 0
        %1358 = vmatprep.subr.bf16.mxu0 0
        %1359 = vmatpush1.bf16.msra.mxu0 0
        %1360 = vmatprep.subr.bf16.mxu0 0
        %1361 = vmatpush1.bf16.msra.mxu0 0
        %1362 = vmatprep.subr.bf16.mxu0 0
        %1363 = vmatpush1.bf16.msra.mxu0 0
        %1364 = vmatprep.subr.bf16.mxu0 %v1333
        %1365 = vmatpush1.bf16.msra.mxu0 %v1330
        %1366 = vmatprep.subr.bf16.mxu0 0
        %1367 = vmatpush2.bf16.msra.mxu0 0
        %1368 = vmatprep.subr.bf16.mxu0 0
        %1369 = vmatpush2.bf16.msra.mxu0 0
        %1370 = vmatprep.subr.bf16.mxu0 0
        %1371 = vmatpush2.bf16.msra.mxu0 0
        %1372 = vmatprep.subr.bf16.mxu0 0
        %1373 = vmatpush2.bf16.msra.mxu0 0
        %1374 = vmatprep.subr.bf16.mxu0 0
        %1375 = vmatpush2.bf16.msra.mxu0 0
        %1376 = vmatprep.subr.bf16.mxu0 0
        %1377 = vmatpush2.bf16.msra.mxu0 0
        %1378 = vmatprep.subr.bf16.mxu0 0
        %1379 = vmatpush2.bf16.msra.mxu0 0
        %1380 = vmatprep.subr.bf16.mxu0 0
        %1381 = vmatpush2.bf16.msra.mxu0 0
        %1382 = vmatprep.mubr.bf16.mxu0 0
        %1383 = vmatmul.mubr.bf16.gmra.mxu0 %v1327
        %v1384 = vpop.f32.mrf.mxu0
        %v1385 = vadd.f32 0.0, %v1384
        %v1386 = vpop.f32.mrf.mxu0
        %v1387 = vadd.f32 0.0, %v1386
        %v1388 = vpop.f32.mrf.mxu0
        %v1389 = vpop.f32.mrf.mxu0
        %1390 = vdwg.mxu0
        %1391 = vmatprep.subr.bf16.mxu0 0
        %1392 = vmatpush1.bf16.msra.mxu0 0
        %1393 = vmatprep.subr.bf16.mxu0 0
        %1394 = vmatpush1.bf16.msra.mxu0 0
        %1395 = vmatprep.subr.bf16.mxu0 0
        %1396 = vmatpush1.bf16.msra.mxu0 0
        %1397 = vmatprep.subr.bf16.mxu0 0
        %1398 = vmatpush1.bf16.msra.mxu0 0
        %1399 = vmatprep.subr.bf16.mxu0 0
        %1400 = vmatpush1.bf16.msra.mxu0 0
        %1401 = vmatprep.subr.bf16.mxu0 0
        %1402 = vmatpush1.bf16.msra.mxu0 0
        %1403 = vmatprep.subr.bf16.mxu0 0
        %1404 = vmatpush1.bf16.msra.mxu0 0
        %1405 = vmatprep.subr.bf16.mxu0 %v1339
        %1406 = vmatpush1.bf16.msra.mxu0 %v1336
        %1407 = vmatprep.subr.bf16.mxu0 0
        %1408 = vmatpush2.bf16.msra.mxu0 0
        %1409 = vmatprep.subr.bf16.mxu0 0
        %1410 = vmatpush2.bf16.msra.mxu0 0
        %1411 = vmatprep.subr.bf16.mxu0 0
        %1412 = vmatpush2.bf16.msra.mxu0 0
        %1413 = vmatprep.subr.bf16.mxu0 0
        %1414 = vmatpush2.bf16.msra.mxu0 0
        %1415 = vmatprep.subr.bf16.mxu0 0
        %1416 = vmatpush2.bf16.msra.mxu0 0
        %1417 = vmatprep.subr.bf16.mxu0 0
        %1418 = vmatpush2.bf16.msra.mxu0 0
        %1419 = vmatprep.subr.bf16.mxu0 0
        %1420 = vmatpush2.bf16.msra.mxu0 0
        %1421 = vmatprep.subr.bf16.mxu0 0
        %1422 = vmatpush2.bf16.msra.mxu0 0
        %1423 = vmatprep.mubr.bf16.mxu0 0
        %1424 = vmatmul.mubr.bf16.gmra.mxu0 %v1327
        %v1425 = vpop.f32.mrf.mxu0
        %v1426 = vadd.f32 0.0, %v1425
        %v1427 = vpop.f32.mrf.mxu0
        %v1428 = vadd.f32 0.0, %v1427
        %v1429 = vpop.f32.mrf.mxu0
        %v1430 = vpop.f32.mrf.mxu0
        %1431 = vdwg.mxu0
        %1432 = vmatprep.subr.bf16.mxu0 0
        %1433 = vmatpush1.bf16.msra.mxu0 0
        %1434 = vmatprep.subr.bf16.mxu0 0
        %1435 = vmatpush1.bf16.msra.mxu0 0
        %1436 = vmatprep.subr.bf16.mxu0 0
        %1437 = vmatpush1.bf16.msra.mxu0 0
        %1438 = vmatprep.subr.bf16.mxu0 0
        %1439 = vmatpush1.bf16.msra.mxu0 0
        %1440 = vmatprep.subr.bf16.mxu0 0
        %1441 = vmatpush1.bf16.msra.mxu0 0
        %1442 = vmatprep.subr.bf16.mxu0 0
        %1443 = vmatpush1.bf16.msra.mxu0 0
        %1444 = vmatprep.subr.bf16.mxu0 0
        %1445 = vmatpush1.bf16.msra.mxu0 0
        %1446 = vmatprep.subr.bf16.mxu0 %v1345
        %1447 = vmatpush1.bf16.msra.mxu0 %v1342
        %1448 = vmatprep.subr.bf16.mxu0 0
        %1449 = vmatpush2.bf16.msra.mxu0 0
        %1450 = vmatprep.subr.bf16.mxu0 0
        %1451 = vmatpush2.bf16.msra.mxu0 0
        %1452 = vmatprep.subr.bf16.mxu0 0
        %1453 = vmatpush2.bf16.msra.mxu0 0
        %1454 = vmatprep.subr.bf16.mxu0 0
        %1455 = vmatpush2.bf16.msra.mxu0 0
        %1456 = vmatprep.subr.bf16.mxu0 0
        %1457 = vmatpush2.bf16.msra.mxu0 0
        %1458 = vmatprep.subr.bf16.mxu0 0
        %1459 = vmatpush2.bf16.msra.mxu0 0
        %1460 = vmatprep.subr.bf16.mxu0 0
        %1461 = vmatpush2.bf16.msra.mxu0 0
        %1462 = vmatprep.subr.bf16.mxu0 0
        %1463 = vmatpush2.bf16.msra.mxu0 0
        %1464 = vmatprep.mubr.bf16.mxu0 0
        %1465 = vmatmul.mubr.bf16.gmra.mxu0 %v1327
        %v1466 = vpop.f32.mrf.mxu0
        %v1467 = vadd.f32 0.0, %v1466
        %v1468 = vpop.f32.mrf.mxu0
        %v1469 = vadd.f32 0.0, %v1468
        %v1470 = vpop.f32.mrf.mxu0
        %v1471 = vpop.f32.mrf.mxu0
        %1472 = vdwg.mxu0
        %1473 = vmatprep.subr.bf16.mxu0 0
        %1474 = vmatpush1.bf16.msra.mxu0 0
        %1475 = vmatprep.subr.bf16.mxu0 0
        %1476 = vmatpush1.bf16.msra.mxu0 0
        %1477 = vmatprep.subr.bf16.mxu0 0
        %1478 = vmatpush1.bf16.msra.mxu0 0
        %1479 = vmatprep.subr.bf16.mxu0 0
        %1480 = vmatpush1.bf16.msra.mxu0 0
        %1481 = vmatprep.subr.bf16.mxu0 0
        %1482 = vmatpush1.bf16.msra.mxu0 0
        %1483 = vmatprep.subr.bf16.mxu0 0
        %1484 = vmatpush1.bf16.msra.mxu0 0
        %1485 = vmatprep.subr.bf16.mxu0 0
        %1486 = vmatpush1.bf16.msra.mxu0 0
        %1487 = vmatprep.subr.bf16.mxu0 0
        %1488 = vmatpush1.bf16.msra.mxu0 %v1348
        %1489 = vmatprep.subr.bf16.mxu0 0
        %1490 = vmatpush2.bf16.msra.mxu0 0
        %1491 = vmatprep.subr.bf16.mxu0 0
        %1492 = vmatpush2.bf16.msra.mxu0 0
        %1493 = vmatprep.subr.bf16.mxu0 0
        %1494 = vmatpush2.bf16.msra.mxu0 0
        %1495 = vmatprep.subr.bf16.mxu0 0
        %1496 = vmatpush2.bf16.msra.mxu0 0
        %1497 = vmatprep.subr.bf16.mxu0 0
        %1498 = vmatpush2.bf16.msra.mxu0 0
        %1499 = vmatprep.subr.bf16.mxu0 0
        %1500 = vmatpush2.bf16.msra.mxu0 0
        %1501 = vmatprep.subr.bf16.mxu0 0
        %1502 = vmatpush2.bf16.msra.mxu0 0
        %1503 = vmatprep.subr.bf16.mxu0 0
        %1504 = vmatpush2.bf16.msra.mxu0 0
        %1505 = vmatprep.mubr.bf16.mxu0 0
        %1506 = vmatmul.mubr.bf16.gmra.mxu0 %v1327
        %v1507 = vpop.f32.mrf.mxu0
        %v1508 = vadd.f32 0.0, %v1507
        %v1509 = vpop.f32.mrf.mxu0
        %v1510 = vpop.f32.mrf.mxu0
        %v1511 = vpop.f32.mrf.mxu0
        %1512 = vdwg.mxu0
        %v1513 = vadd.f32 %v1293, %v1385
        %v1514 = vadd.f32 %v1294, %v1387
        %v1515 = vadd.f32 %v1295, %v1426
        %v1516 = vadd.f32 %v1296, %v1428
        %v1517 = vadd.f32 %v1297, %v1467
        %v1518 = vadd.f32 %v1298, %v1469
        %v1519 = vadd.f32 %v1299, %v1508
        %s1520 = scalar_lea.vmem %s1, 24
        %v1521 = vld [vmem:[%s1520] sm:$0xf]
        %1522 = vrot.lane.b32.xlu0 %v213, 108
        %v1523 = vpop.permute.xlu0 %1522
        %1524 = vrot.lane.b32.xlu0 %v221, 108
        %v1525 = vpop.permute.xlu0 %1524
        %1526 = vrot.lane.b32.xlu0 %v220, 108
        %v1527 = vpop.permute.xlu0 %1526
        %1528 = vrot.lane.b32.xlu0 %v222, 108
        %v1529 = vpop.permute.xlu0 %1528
        %1530 = vrot.lane.b32.xlu0 %v230, 108
        %v1531 = vpop.permute.xlu0 %1530
        %1532 = vrot.lane.b32.xlu0 %v238, 108
        %v1533 = vpop.permute.xlu0 %1532
        %1534 = vrot.lane.b32.xlu0 %v237, 108
        %v1535 = vpop.permute.xlu0 %1534
        %1536 = vrot.lane.b32.xlu0 %v239, 108
        %v1537 = vpop.permute.xlu0 %1536
        %vm1538 = vcmask 883712
        %v1539 = vsel %vm1538, %v1523, %v1525
        %v1540 = vsel %vm1538, %v1525, %v1527
        %v1541 = vsel %vm1538, %v1527, %v1529
        %v1542 = vsel %vm1538, %v1529, %v1531
        %v1543 = vsel %vm1538, %v1531, %v1533
        %v1544 = vsel %vm1538, %v1533, %v1535
        %v1545 = vsel %vm1538, %v1535, %v1537
        %v1547 = vsel %vm264, %v1521, 0
        %v1550 = vsel %vm268, %v1539, 0
        %v1553 = vsel %vm268, %v1540, 0
        %v1556 = vsel %vm268, %v1541, 0
        %v1559 = vsel %vm268, %v1542, 0
        %v1562 = vsel %vm268, %v1543, 0
        %v1565 = vsel %vm268, %v1544, 0
        %v1568 = vsel %vm268, %v1545, 0
        %1570 = vmatprep.subr.bf16.mxu0 0
        %1571 = vmatpush1.bf16.msra.mxu0 0
        %1572 = vmatprep.subr.bf16.mxu0 0
        %1573 = vmatpush1.bf16.msra.mxu0 0
        %1574 = vmatprep.subr.bf16.mxu0 0
        %1575 = vmatpush1.bf16.msra.mxu0 0
        %1576 = vmatprep.subr.bf16.mxu0 0
        %1577 = vmatpush1.bf16.msra.mxu0 0
        %1578 = vmatprep.subr.bf16.mxu0 0
        %1579 = vmatpush1.bf16.msra.mxu0 0
        %1580 = vmatprep.subr.bf16.mxu0 0
        %1581 = vmatpush1.bf16.msra.mxu0 0
        %1582 = vmatprep.subr.bf16.mxu0 0
        %1583 = vmatpush1.bf16.msra.mxu0 0
        %1584 = vmatprep.subr.bf16.mxu0 %v1553
        %1585 = vmatpush1.bf16.msra.mxu0 %v1550
        %1586 = vmatprep.subr.bf16.mxu0 0
        %1587 = vmatpush2.bf16.msra.mxu0 0
        %1588 = vmatprep.subr.bf16.mxu0 0
        %1589 = vmatpush2.bf16.msra.mxu0 0
        %1590 = vmatprep.subr.bf16.mxu0 0
        %1591 = vmatpush2.bf16.msra.mxu0 0
        %1592 = vmatprep.subr.bf16.mxu0 0
        %1593 = vmatpush2.bf16.msra.mxu0 0
        %1594 = vmatprep.subr.bf16.mxu0 0
        %1595 = vmatpush2.bf16.msra.mxu0 0
        %1596 = vmatprep.subr.bf16.mxu0 0
        %1597 = vmatpush2.bf16.msra.mxu0 0
        %1598 = vmatprep.subr.bf16.mxu0 0
        %1599 = vmatpush2.bf16.msra.mxu0 0
        %1600 = vmatprep.subr.bf16.mxu0 0
        %1601 = vmatpush2.bf16.msra.mxu0 0
        %1602 = vmatprep.mubr.bf16.mxu0 0
        %1603 = vmatmul.mubr.bf16.gmra.mxu0 %v1547
        %v1604 = vpop.f32.mrf.mxu0
        %v1605 = vadd.f32 0.0, %v1604
        %v1606 = vpop.f32.mrf.mxu0
        %v1607 = vadd.f32 0.0, %v1606
        %v1608 = vpop.f32.mrf.mxu0
        %v1609 = vpop.f32.mrf.mxu0
        %1610 = vdwg.mxu0
        %1611 = vmatprep.subr.bf16.mxu0 0
        %1612 = vmatpush1.bf16.msra.mxu0 0
        %1613 = vmatprep.subr.bf16.mxu0 0
        %1614 = vmatpush1.bf16.msra.mxu0 0
        %1615 = vmatprep.subr.bf16.mxu0 0
        %1616 = vmatpush1.bf16.msra.mxu0 0
        %1617 = vmatprep.subr.bf16.mxu0 0
        %1618 = vmatpush1.bf16.msra.mxu0 0
        %1619 = vmatprep.subr.bf16.mxu0 0
        %1620 = vmatpush1.bf16.msra.mxu0 0
        %1621 = vmatprep.subr.bf16.mxu0 0
        %1622 = vmatpush1.bf16.msra.mxu0 0
        %1623 = vmatprep.subr.bf16.mxu0 0
        %1624 = vmatpush1.bf16.msra.mxu0 0
        %1625 = vmatprep.subr.bf16.mxu0 %v1559
        %1626 = vmatpush1.bf16.msra.mxu0 %v1556
        %1627 = vmatprep.subr.bf16.mxu0 0
        %1628 = vmatpush2.bf16.msra.mxu0 0
        %1629 = vmatprep.subr.bf16.mxu0 0
        %1630 = vmatpush2.bf16.msra.mxu0 0
        %1631 = vmatprep.subr.bf16.mxu0 0
        %1632 = vmatpush2.bf16.msra.mxu0 0
        %1633 = vmatprep.subr.bf16.mxu0 0
        %1634 = vmatpush2.bf16.msra.mxu0 0
        %1635 = vmatprep.subr.bf16.mxu0 0
        %1636 = vmatpush2.bf16.msra.mxu0 0
        %1637 = vmatprep.subr.bf16.mxu0 0
        %1638 = vmatpush2.bf16.msra.mxu0 0
        %1639 = vmatprep.subr.bf16.mxu0 0
        %1640 = vmatpush2.bf16.msra.mxu0 0
        %1641 = vmatprep.subr.bf16.mxu0 0
        %1642 = vmatpush2.bf16.msra.mxu0 0
        %1643 = vmatprep.mubr.bf16.mxu0 0
        %1644 = vmatmul.mubr.bf16.gmra.mxu0 %v1547
        %v1645 = vpop.f32.mrf.mxu0
        %v1646 = vadd.f32 0.0, %v1645
        %v1647 = vpop.f32.mrf.mxu0
        %v1648 = vadd.f32 0.0, %v1647
        %v1649 = vpop.f32.mrf.mxu0
        %v1650 = vpop.f32.mrf.mxu0
        %1651 = vdwg.mxu0
        %1652 = vmatprep.subr.bf16.mxu0 0
        %1653 = vmatpush1.bf16.msra.mxu0 0
        %1654 = vmatprep.subr.bf16.mxu0 0
        %1655 = vmatpush1.bf16.msra.mxu0 0
        %1656 = vmatprep.subr.bf16.mxu0 0
        %1657 = vmatpush1.bf16.msra.mxu0 0
        %1658 = vmatprep.subr.bf16.mxu0 0
        %1659 = vmatpush1.bf16.msra.mxu0 0
        %1660 = vmatprep.subr.bf16.mxu0 0
        %1661 = vmatpush1.bf16.msra.mxu0 0
        %1662 = vmatprep.subr.bf16.mxu0 0
        %1663 = vmatpush1.bf16.msra.mxu0 0
        %1664 = vmatprep.subr.bf16.mxu0 0
        %1665 = vmatpush1.bf16.msra.mxu0 0
        %1666 = vmatprep.subr.bf16.mxu0 %v1565
        %1667 = vmatpush1.bf16.msra.mxu0 %v1562
        %1668 = vmatprep.subr.bf16.mxu0 0
        %1669 = vmatpush2.bf16.msra.mxu0 0
        %1670 = vmatprep.subr.bf16.mxu0 0
        %1671 = vmatpush2.bf16.msra.mxu0 0
        %1672 = vmatprep.subr.bf16.mxu0 0
        %1673 = vmatpush2.bf16.msra.mxu0 0
        %1674 = vmatprep.subr.bf16.mxu0 0
        %1675 = vmatpush2.bf16.msra.mxu0 0
        %1676 = vmatprep.subr.bf16.mxu0 0
        %1677 = vmatpush2.bf16.msra.mxu0 0
        %1678 = vmatprep.subr.bf16.mxu0 0
        %1679 = vmatpush2.bf16.msra.mxu0 0
        %1680 = vmatprep.subr.bf16.mxu0 0
        %1681 = vmatpush2.bf16.msra.mxu0 0
        %1682 = vmatprep.subr.bf16.mxu0 0
        %1683 = vmatpush2.bf16.msra.mxu0 0
        %1684 = vmatprep.mubr.bf16.mxu0 0
        %1685 = vmatmul.mubr.bf16.gmra.mxu0 %v1547
        %v1686 = vpop.f32.mrf.mxu0
        %v1687 = vadd.f32 0.0, %v1686
        %v1688 = vpop.f32.mrf.mxu0
        %v1689 = vadd.f32 0.0, %v1688
        %v1690 = vpop.f32.mrf.mxu0
        %v1691 = vpop.f32.mrf.mxu0
        %1692 = vdwg.mxu0
        %1693 = vmatprep.subr.bf16.mxu0 0
        %1694 = vmatpush1.bf16.msra.mxu0 0
        %1695 = vmatprep.subr.bf16.mxu0 0
        %1696 = vmatpush1.bf16.msra.mxu0 0
        %1697 = vmatprep.subr.bf16.mxu0 0
        %1698 = vmatpush1.bf16.msra.mxu0 0
        %1699 = vmatprep.subr.bf16.mxu0 0
        %1700 = vmatpush1.bf16.msra.mxu0 0
        %1701 = vmatprep.subr.bf16.mxu0 0
        %1702 = vmatpush1.bf16.msra.mxu0 0
        %1703 = vmatprep.subr.bf16.mxu0 0
        %1704 = vmatpush1.bf16.msra.mxu0 0
        %1705 = vmatprep.subr.bf16.mxu0 0
        %1706 = vmatpush1.bf16.msra.mxu0 0
        %1707 = vmatprep.subr.bf16.mxu0 0
        %1708 = vmatpush1.bf16.msra.mxu0 %v1568
        %1709 = vmatprep.subr.bf16.mxu0 0
        %1710 = vmatpush2.bf16.msra.mxu0 0
        %1711 = vmatprep.subr.bf16.mxu0 0
        %1712 = vmatpush2.bf16.msra.mxu0 0
        %1713 = vmatprep.subr.bf16.mxu0 0
        %1714 = vmatpush2.bf16.msra.mxu0 0
        %1715 = vmatprep.subr.bf16.mxu0 0
        %1716 = vmatpush2.bf16.msra.mxu0 0
        %1717 = vmatprep.subr.bf16.mxu0 0
        %1718 = vmatpush2.bf16.msra.mxu0 0
        %1719 = vmatprep.subr.bf16.mxu0 0
        %1720 = vmatpush2.bf16.msra.mxu0 0
        %1721 = vmatprep.subr.bf16.mxu0 0
        %1722 = vmatpush2.bf16.msra.mxu0 0
        %1723 = vmatprep.subr.bf16.mxu0 0
        %1724 = vmatpush2.bf16.msra.mxu0 0
        %1725 = vmatprep.mubr.bf16.mxu0 0
        %1726 = vmatmul.mubr.bf16.gmra.mxu0 %v1547
        %v1727 = vpop.f32.mrf.mxu0
        %v1728 = vadd.f32 0.0, %v1727
        %v1729 = vpop.f32.mrf.mxu0
        %v1730 = vpop.f32.mrf.mxu0
        %v1731 = vpop.f32.mrf.mxu0
        %1732 = vdwg.mxu0
        %v1733 = vadd.f32 %v1513, %v1605
        %v1734 = vadd.f32 %v1514, %v1607
        %v1735 = vadd.f32 %v1515, %v1646
        %v1736 = vadd.f32 %v1516, %v1648
        %v1737 = vadd.f32 %v1517, %v1687
        %v1738 = vadd.f32 %v1518, %v1689
        %v1739 = vadd.f32 %v1519, %v1728
        %s1740 = scalar_lea.vmem %s1, 28
        %v1741 = vld [vmem:[%s1740] sm:$0xf]
        %1742 = vrot.lane.b32.xlu0 %v213, 107
        %v1743 = vpop.permute.xlu0 %1742
        %1744 = vrot.lane.b32.xlu0 %v221, 107
        %v1745 = vpop.permute.xlu0 %1744
        %1746 = vrot.lane.b32.xlu0 %v220, 107
        %v1747 = vpop.permute.xlu0 %1746
        %1748 = vrot.lane.b32.xlu0 %v222, 107
        %v1749 = vpop.permute.xlu0 %1748
        %1750 = vrot.lane.b32.xlu0 %v230, 107
        %v1751 = vpop.permute.xlu0 %1750
        %1752 = vrot.lane.b32.xlu0 %v238, 107
        %v1753 = vpop.permute.xlu0 %1752
        %1754 = vrot.lane.b32.xlu0 %v237, 107
        %v1755 = vpop.permute.xlu0 %1754
        %1756 = vrot.lane.b32.xlu0 %v239, 107
        %v1757 = vpop.permute.xlu0 %1756
        %vm1758 = vcmask 875520
        %v1759 = vsel %vm1758, %v1743, %v1745
        %v1760 = vsel %vm1758, %v1745, %v1747
        %v1761 = vsel %vm1758, %v1747, %v1749
        %v1762 = vsel %vm1758, %v1749, %v1751
        %v1763 = vsel %vm1758, %v1751, %v1753
        %v1764 = vsel %vm1758, %v1753, %v1755
        %v1765 = vsel %vm1758, %v1755, %v1757
        %v1767 = vsel %vm264, %v1741, 0
        %v1770 = vsel %vm268, %v1759, 0
        %v1773 = vsel %vm268, %v1760, 0
        %v1776 = vsel %vm268, %v1761, 0
        %v1779 = vsel %vm268, %v1762, 0
        %v1782 = vsel %vm268, %v1763, 0
        %v1785 = vsel %vm268, %v1764, 0
        %v1788 = vsel %vm268, %v1765, 0
        %1790 = vmatprep.subr.bf16.mxu0 0
        %1791 = vmatpush1.bf16.msra.mxu0 0
        %1792 = vmatprep.subr.bf16.mxu0 0
        %1793 = vmatpush1.bf16.msra.mxu0 0
        %1794 = vmatprep.subr.bf16.mxu0 0
        %1795 = vmatpush1.bf16.msra.mxu0 0
        %1796 = vmatprep.subr.bf16.mxu0 0
        %1797 = vmatpush1.bf16.msra.mxu0 0
        %1798 = vmatprep.subr.bf16.mxu0 0
        %1799 = vmatpush1.bf16.msra.mxu0 0
        %1800 = vmatprep.subr.bf16.mxu0 0
        %1801 = vmatpush1.bf16.msra.mxu0 0
        %1802 = vmatprep.subr.bf16.mxu0 0
        %1803 = vmatpush1.bf16.msra.mxu0 0
        %1804 = vmatprep.subr.bf16.mxu0 %v1773
        %1805 = vmatpush1.bf16.msra.mxu0 %v1770
        %1806 = vmatprep.subr.bf16.mxu0 0
        %1807 = vmatpush2.bf16.msra.mxu0 0
        %1808 = vmatprep.subr.bf16.mxu0 0
        %1809 = vmatpush2.bf16.msra.mxu0 0
        %1810 = vmatprep.subr.bf16.mxu0 0
        %1811 = vmatpush2.bf16.msra.mxu0 0
        %1812 = vmatprep.subr.bf16.mxu0 0
        %1813 = vmatpush2.bf16.msra.mxu0 0
        %1814 = vmatprep.subr.bf16.mxu0 0
        %1815 = vmatpush2.bf16.msra.mxu0 0
        %1816 = vmatprep.subr.bf16.mxu0 0
        %1817 = vmatpush2.bf16.msra.mxu0 0
        %1818 = vmatprep.subr.bf16.mxu0 0
        %1819 = vmatpush2.bf16.msra.mxu0 0
        %1820 = vmatprep.subr.bf16.mxu0 0
        %1821 = vmatpush2.bf16.msra.mxu0 0
        %1822 = vmatprep.mubr.bf16.mxu0 0
        %1823 = vmatmul.mubr.bf16.gmra.mxu0 %v1767
        %v1824 = vpop.f32.mrf.mxu0
        %v1825 = vadd.f32 0.0, %v1824
        %v1826 = vpop.f32.mrf.mxu0
        %v1827 = vadd.f32 0.0, %v1826
        %v1828 = vpop.f32.mrf.mxu0
        %v1829 = vpop.f32.mrf.mxu0
        %1830 = vdwg.mxu0
        %1831 = vmatprep.subr.bf16.mxu0 0
        %1832 = vmatpush1.bf16.msra.mxu0 0
        %1833 = vmatprep.subr.bf16.mxu0 0
        %1834 = vmatpush1.bf16.msra.mxu0 0
        %1835 = vmatprep.subr.bf16.mxu0 0
        %1836 = vmatpush1.bf16.msra.mxu0 0
        %1837 = vmatprep.subr.bf16.mxu0 0
        %1838 = vmatpush1.bf16.msra.mxu0 0
        %1839 = vmatprep.subr.bf16.mxu0 0
        %1840 = vmatpush1.bf16.msra.mxu0 0
        %1841 = vmatprep.subr.bf16.mxu0 0
        %1842 = vmatpush1.bf16.msra.mxu0 0
        %1843 = vmatprep.subr.bf16.mxu0 0
        %1844 = vmatpush1.bf16.msra.mxu0 0
        %1845 = vmatprep.subr.bf16.mxu0 %v1779
        %1846 = vmatpush1.bf16.msra.mxu0 %v1776
        %1847 = vmatprep.subr.bf16.mxu0 0
        %1848 = vmatpush2.bf16.msra.mxu0 0
        %1849 = vmatprep.subr.bf16.mxu0 0
        %1850 = vmatpush2.bf16.msra.mxu0 0
        %1851 = vmatprep.subr.bf16.mxu0 0
        %1852 = vmatpush2.bf16.msra.mxu0 0
        %1853 = vmatprep.subr.bf16.mxu0 0
        %1854 = vmatpush2.bf16.msra.mxu0 0
        %1855 = vmatprep.subr.bf16.mxu0 0
        %1856 = vmatpush2.bf16.msra.mxu0 0
        %1857 = vmatprep.subr.bf16.mxu0 0
        %1858 = vmatpush2.bf16.msra.mxu0 0
        %1859 = vmatprep.subr.bf16.mxu0 0
        %1860 = vmatpush2.bf16.msra.mxu0 0
        %1861 = vmatprep.subr.bf16.mxu0 0
        %1862 = vmatpush2.bf16.msra.mxu0 0
        %1863 = vmatprep.mubr.bf16.mxu0 0
        %1864 = vmatmul.mubr.bf16.gmra.mxu0 %v1767
        %v1865 = vpop.f32.mrf.mxu0
        %v1866 = vadd.f32 0.0, %v1865
        %v1867 = vpop.f32.mrf.mxu0
        %v1868 = vadd.f32 0.0, %v1867
        %v1869 = vpop.f32.mrf.mxu0
        %v1870 = vpop.f32.mrf.mxu0
        %1871 = vdwg.mxu0
        %1872 = vmatprep.subr.bf16.mxu0 0
        %1873 = vmatpush1.bf16.msra.mxu0 0
        %1874 = vmatprep.subr.bf16.mxu0 0
        %1875 = vmatpush1.bf16.msra.mxu0 0
        %1876 = vmatprep.subr.bf16.mxu0 0
        %1877 = vmatpush1.bf16.msra.mxu0 0
        %1878 = vmatprep.subr.bf16.mxu0 0
        %1879 = vmatpush1.bf16.msra.mxu0 0
        %1880 = vmatprep.subr.bf16.mxu0 0
        %1881 = vmatpush1.bf16.msra.mxu0 0
        %1882 = vmatprep.subr.bf16.mxu0 0
        %1883 = vmatpush1.bf16.msra.mxu0 0
        %1884 = vmatprep.subr.bf16.mxu0 0
        %1885 = vmatpush1.bf16.msra.mxu0 0
        %1886 = vmatprep.subr.bf16.mxu0 %v1785
        %1887 = vmatpush1.bf16.msra.mxu0 %v1782
        %1888 = vmatprep.subr.bf16.mxu0 0
        %1889 = vmatpush2.bf16.msra.mxu0 0
        %1890 = vmatprep.subr.bf16.mxu0 0
        %1891 = vmatpush2.bf16.msra.mxu0 0
        %1892 = vmatprep.subr.bf16.mxu0 0
        %1893 = vmatpush2.bf16.msra.mxu0 0
        %1894 = vmatprep.subr.bf16.mxu0 0
        %1895 = vmatpush2.bf16.msra.mxu0 0
        %1896 = vmatprep.subr.bf16.mxu0 0
        %1897 = vmatpush2.bf16.msra.mxu0 0
        %1898 = vmatprep.subr.bf16.mxu0 0
        %1899 = vmatpush2.bf16.msra.mxu0 0
        %1900 = vmatprep.subr.bf16.mxu0 0
        %1901 = vmatpush2.bf16.msra.mxu0 0
        %1902 = vmatprep.subr.bf16.mxu0 0
        %1903 = vmatpush2.bf16.msra.mxu0 0
        %1904 = vmatprep.mubr.bf16.mxu0 0
        %1905 = vmatmul.mubr.bf16.gmra.mxu0 %v1767
        %v1906 = vpop.f32.mrf.mxu0
        %v1907 = vadd.f32 0.0, %v1906
        %v1908 = vpop.f32.mrf.mxu0
        %v1909 = vadd.f32 0.0, %v1908
        %v1910 = vpop.f32.mrf.mxu0
        %v1911 = vpop.f32.mrf.mxu0
        %1912 = vdwg.mxu0
        %1913 = vmatprep.subr.bf16.mxu0 0
        %1914 = vmatpush1.bf16.msra.mxu0 0
        %1915 = vmatprep.subr.bf16.mxu0 0
        %1916 = vmatpush1.bf16.msra.mxu0 0
        %1917 = vmatprep.subr.bf16.mxu0 0
        %1918 = vmatpush1.bf16.msra.mxu0 0
        %1919 = vmatprep.subr.bf16.mxu0 0
        %1920 = vmatpush1.bf16.msra.mxu0 0
        %1921 = vmatprep.subr.bf16.mxu0 0
        %1922 = vmatpush1.bf16.msra.mxu0 0
        %1923 = vmatprep.subr.bf16.mxu0 0
        %1924 = vmatpush1.bf16.msra.mxu0 0
        %1925 = vmatprep.subr.bf16.mxu0 0
        %1926 = vmatpush1.bf16.msra.mxu0 0
        %1927 = vmatprep.subr.bf16.mxu0 0
        %1928 = vmatpush1.bf16.msra.mxu0 %v1788
        %1929 = vmatprep.subr.bf16.mxu0 0
        %1930 = vmatpush2.bf16.msra.mxu0 0
        %1931 = vmatprep.subr.bf16.mxu0 0
        %1932 = vmatpush2.bf16.msra.mxu0 0
        %1933 = vmatprep.subr.bf16.mxu0 0
        %1934 = vmatpush2.bf16.msra.mxu0 0
        %1935 = vmatprep.subr.bf16.mxu0 0
        %1936 = vmatpush2.bf16.msra.mxu0 0
        %1937 = vmatprep.subr.bf16.mxu0 0
        %1938 = vmatpush2.bf16.msra.mxu0 0
        %1939 = vmatprep.subr.bf16.mxu0 0
        %1940 = vmatpush2.bf16.msra.mxu0 0
        %1941 = vmatprep.subr.bf16.mxu0 0
        %1942 = vmatpush2.bf16.msra.mxu0 0
        %1943 = vmatprep.subr.bf16.mxu0 0
        %1944 = vmatpush2.bf16.msra.mxu0 0
        %1945 = vmatprep.mubr.bf16.mxu0 0
        %1946 = vmatmul.mubr.bf16.gmra.mxu0 %v1767
        %v1947 = vpop.f32.mrf.mxu0
        %v1948 = vadd.f32 0.0, %v1947
        %v1949 = vpop.f32.mrf.mxu0
        %v1950 = vpop.f32.mrf.mxu0
        %v1951 = vpop.f32.mrf.mxu0
        %1952 = vdwg.mxu0
        %v1953 = vadd.f32 %v1733, %v1825
        %v1954 = vadd.f32 %v1734, %v1827
        %v1955 = vadd.f32 %v1735, %v1866
        %v1956 = vadd.f32 %v1736, %v1868
        %v1957 = vadd.f32 %v1737, %v1907
        %v1958 = vadd.f32 %v1738, %v1909
        %v1959 = vadd.f32 %v1739, %v1948
        %s1960 = scalar_lea.vmem %s1, 32
        %v1961 = vld [vmem:[%s1960] sm:$0xf]
        %1962 = vrot.lane.b32.xlu0 %v213, 106
        %v1963 = vpop.permute.xlu0 %1962
        %1964 = vrot.lane.b32.xlu0 %v221, 106
        %v1965 = vpop.permute.xlu0 %1964
        %1966 = vrot.lane.b32.xlu0 %v220, 106
        %v1967 = vpop.permute.xlu0 %1966
        %1968 = vrot.lane.b32.xlu0 %v222, 106
        %v1969 = vpop.permute.xlu0 %1968
        %1970 = vrot.lane.b32.xlu0 %v230, 106
        %v1971 = vpop.permute.xlu0 %1970
        %1972 = vrot.lane.b32.xlu0 %v238, 106
        %v1973 = vpop.permute.xlu0 %1972
        %1974 = vrot.lane.b32.xlu0 %v237, 106
        %v1975 = vpop.permute.xlu0 %1974
        %1976 = vrot.lane.b32.xlu0 %v239, 106
        %v1977 = vpop.permute.xlu0 %1976
        %vm1978 = vcmask 867328
        %v1979 = vsel %vm1978, %v1963, %v1965
        %v1980 = vsel %vm1978, %v1965, %v1967
        %v1981 = vsel %vm1978, %v1967, %v1969
        %v1982 = vsel %vm1978, %v1969, %v1971
        %v1983 = vsel %vm1978, %v1971, %v1973
        %v1984 = vsel %vm1978, %v1973, %v1975
        %v1985 = vsel %vm1978, %v1975, %v1977
        %v1987 = vsel %vm264, %v1961, 0
        %v1990 = vsel %vm268, %v1979, 0
        %v1993 = vsel %vm268, %v1980, 0
        %v1996 = vsel %vm268, %v1981, 0
        %v1999 = vsel %vm268, %v1982, 0
        %v2002 = vsel %vm268, %v1983, 0
        %v2005 = vsel %vm268, %v1984, 0
        %v2008 = vsel %vm268, %v1985, 0
        %2010 = vmatprep.subr.bf16.mxu0 0
        %2011 = vmatpush1.bf16.msra.mxu0 0
        %2012 = vmatprep.subr.bf16.mxu0 0
        %2013 = vmatpush1.bf16.msra.mxu0 0
        %2014 = vmatprep.subr.bf16.mxu0 0
        %2015 = vmatpush1.bf16.msra.mxu0 0
        %2016 = vmatprep.subr.bf16.mxu0 0
        %2017 = vmatpush1.bf16.msra.mxu0 0
        %2018 = vmatprep.subr.bf16.mxu0 0
        %2019 = vmatpush1.bf16.msra.mxu0 0
        %2020 = vmatprep.subr.bf16.mxu0 0
        %2021 = vmatpush1.bf16.msra.mxu0 0
        %2022 = vmatprep.subr.bf16.mxu0 0
        %2023 = vmatpush1.bf16.msra.mxu0 0
        %2024 = vmatprep.subr.bf16.mxu0 %v1993
        %2025 = vmatpush1.bf16.msra.mxu0 %v1990
        %2026 = vmatprep.subr.bf16.mxu0 0
        %2027 = vmatpush2.bf16.msra.mxu0 0
        %2028 = vmatprep.subr.bf16.mxu0 0
        %2029 = vmatpush2.bf16.msra.mxu0 0
        %2030 = vmatprep.subr.bf16.mxu0 0
        %2031 = vmatpush2.bf16.msra.mxu0 0
        %2032 = vmatprep.subr.bf16.mxu0 0
        %2033 = vmatpush2.bf16.msra.mxu0 0
        %2034 = vmatprep.subr.bf16.mxu0 0
        %2035 = vmatpush2.bf16.msra.mxu0 0
        %2036 = vmatprep.subr.bf16.mxu0 0
        %2037 = vmatpush2.bf16.msra.mxu0 0
        %2038 = vmatprep.subr.bf16.mxu0 0
        %2039 = vmatpush2.bf16.msra.mxu0 0
        %2040 = vmatprep.subr.bf16.mxu0 0
        %2041 = vmatpush2.bf16.msra.mxu0 0
        %2042 = vmatprep.mubr.bf16.mxu0 0
        %2043 = vmatmul.mubr.bf16.gmra.mxu0 %v1987
        %v2044 = vpop.f32.mrf.mxu0
        %v2045 = vadd.f32 0.0, %v2044
        %v2046 = vpop.f32.mrf.mxu0
        %v2047 = vadd.f32 0.0, %v2046
        %v2048 = vpop.f32.mrf.mxu0
        %v2049 = vpop.f32.mrf.mxu0
        %2050 = vdwg.mxu0
        %2051 = vmatprep.subr.bf16.mxu0 0
        %2052 = vmatpush1.bf16.msra.mxu0 0
        %2053 = vmatprep.subr.bf16.mxu0 0
        %2054 = vmatpush1.bf16.msra.mxu0 0
        %2055 = vmatprep.subr.bf16.mxu0 0
        %2056 = vmatpush1.bf16.msra.mxu0 0
        %2057 = vmatprep.subr.bf16.mxu0 0
        %2058 = vmatpush1.bf16.msra.mxu0 0
        %2059 = vmatprep.subr.bf16.mxu0 0
        %2060 = vmatpush1.bf16.msra.mxu0 0
        %2061 = vmatprep.subr.bf16.mxu0 0
        %2062 = vmatpush1.bf16.msra.mxu0 0
        %2063 = vmatprep.subr.bf16.mxu0 0
        %2064 = vmatpush1.bf16.msra.mxu0 0
        %2065 = vmatprep.subr.bf16.mxu0 %v1999
        %2066 = vmatpush1.bf16.msra.mxu0 %v1996
        %2067 = vmatprep.subr.bf16.mxu0 0
        %2068 = vmatpush2.bf16.msra.mxu0 0
        %2069 = vmatprep.subr.bf16.mxu0 0
        %2070 = vmatpush2.bf16.msra.mxu0 0
        %2071 = vmatprep.subr.bf16.mxu0 0
        %2072 = vmatpush2.bf16.msra.mxu0 0
        %2073 = vmatprep.subr.bf16.mxu0 0
        %2074 = vmatpush2.bf16.msra.mxu0 0
        %2075 = vmatprep.subr.bf16.mxu0 0
        %2076 = vmatpush2.bf16.msra.mxu0 0
        %2077 = vmatprep.subr.bf16.mxu0 0
        %2078 = vmatpush2.bf16.msra.mxu0 0
        %2079 = vmatprep.subr.bf16.mxu0 0
        %2080 = vmatpush2.bf16.msra.mxu0 0
        %2081 = vmatprep.subr.bf16.mxu0 0
        %2082 = vmatpush2.bf16.msra.mxu0 0
        %2083 = vmatprep.mubr.bf16.mxu0 0
        %2084 = vmatmul.mubr.bf16.gmra.mxu0 %v1987
        %v2085 = vpop.f32.mrf.mxu0
        %v2086 = vadd.f32 0.0, %v2085
        %v2087 = vpop.f32.mrf.mxu0
        %v2088 = vadd.f32 0.0, %v2087
        %v2089 = vpop.f32.mrf.mxu0
        %v2090 = vpop.f32.mrf.mxu0
        %2091 = vdwg.mxu0
        %2092 = vmatprep.subr.bf16.mxu0 0
        %2093 = vmatpush1.bf16.msra.mxu0 0
        %2094 = vmatprep.subr.bf16.mxu0 0
        %2095 = vmatpush1.bf16.msra.mxu0 0
        %2096 = vmatprep.subr.bf16.mxu0 0
        %2097 = vmatpush1.bf16.msra.mxu0 0
        %2098 = vmatprep.subr.bf16.mxu0 0
        %2099 = vmatpush1.bf16.msra.mxu0 0
        %2100 = vmatprep.subr.bf16.mxu0 0
        %2101 = vmatpush1.bf16.msra.mxu0 0
        %2102 = vmatprep.subr.bf16.mxu0 0
        %2103 = vmatpush1.bf16.msra.mxu0 0
        %2104 = vmatprep.subr.bf16.mxu0 0
        %2105 = vmatpush1.bf16.msra.mxu0 0
        %2106 = vmatprep.subr.bf16.mxu0 %v2005
        %2107 = vmatpush1.bf16.msra.mxu0 %v2002
        %2108 = vmatprep.subr.bf16.mxu0 0
        %2109 = vmatpush2.bf16.msra.mxu0 0
        %2110 = vmatprep.subr.bf16.mxu0 0
        %2111 = vmatpush2.bf16.msra.mxu0 0
        %2112 = vmatprep.subr.bf16.mxu0 0
        %2113 = vmatpush2.bf16.msra.mxu0 0
        %2114 = vmatprep.subr.bf16.mxu0 0
        %2115 = vmatpush2.bf16.msra.mxu0 0
        %2116 = vmatprep.subr.bf16.mxu0 0
        %2117 = vmatpush2.bf16.msra.mxu0 0
        %2118 = vmatprep.subr.bf16.mxu0 0
        %2119 = vmatpush2.bf16.msra.mxu0 0
        %2120 = vmatprep.subr.bf16.mxu0 0
        %2121 = vmatpush2.bf16.msra.mxu0 0
        %2122 = vmatprep.subr.bf16.mxu0 0
        %2123 = vmatpush2.bf16.msra.mxu0 0
        %2124 = vmatprep.mubr.bf16.mxu0 0
        %2125 = vmatmul.mubr.bf16.gmra.mxu0 %v1987
        %v2126 = vpop.f32.mrf.mxu0
        %v2127 = vadd.f32 0.0, %v2126
        %v2128 = vpop.f32.mrf.mxu0
        %v2129 = vadd.f32 0.0, %v2128
        %v2130 = vpop.f32.mrf.mxu0
        %v2131 = vpop.f32.mrf.mxu0
        %2132 = vdwg.mxu0
        %2133 = vmatprep.subr.bf16.mxu0 0
        %2134 = vmatpush1.bf16.msra.mxu0 0
        %2135 = vmatprep.subr.bf16.mxu0 0
        %2136 = vmatpush1.bf16.msra.mxu0 0
        %2137 = vmatprep.subr.bf16.mxu0 0
        %2138 = vmatpush1.bf16.msra.mxu0 0
        %2139 = vmatprep.subr.bf16.mxu0 0
        %2140 = vmatpush1.bf16.msra.mxu0 0
        %2141 = vmatprep.subr.bf16.mxu0 0
        %2142 = vmatpush1.bf16.msra.mxu0 0
        %2143 = vmatprep.subr.bf16.mxu0 0
        %2144 = vmatpush1.bf16.msra.mxu0 0
        %2145 = vmatprep.subr.bf16.mxu0 0
        %2146 = vmatpush1.bf16.msra.mxu0 0
        %2147 = vmatprep.subr.bf16.mxu0 0
        %2148 = vmatpush1.bf16.msra.mxu0 %v2008
        %2149 = vmatprep.subr.bf16.mxu0 0
        %2150 = vmatpush2.bf16.msra.mxu0 0
        %2151 = vmatprep.subr.bf16.mxu0 0
        %2152 = vmatpush2.bf16.msra.mxu0 0
        %2153 = vmatprep.subr.bf16.mxu0 0
        %2154 = vmatpush2.bf16.msra.mxu0 0
        %2155 = vmatprep.subr.bf16.mxu0 0
        %2156 = vmatpush2.bf16.msra.mxu0 0
        %2157 = vmatprep.subr.bf16.mxu0 0
        %2158 = vmatpush2.bf16.msra.mxu0 0
        %2159 = vmatprep.subr.bf16.mxu0 0
        %2160 = vmatpush2.bf16.msra.mxu0 0
        %2161 = vmatprep.subr.bf16.mxu0 0
        %2162 = vmatpush2.bf16.msra.mxu0 0
        %2163 = vmatprep.subr.bf16.mxu0 0
        %2164 = vmatpush2.bf16.msra.mxu0 0
        %2165 = vmatprep.mubr.bf16.mxu0 0
        %2166 = vmatmul.mubr.bf16.gmra.mxu0 %v1987
        %v2167 = vpop.f32.mrf.mxu0
        %v2168 = vadd.f32 0.0, %v2167
        %v2169 = vpop.f32.mrf.mxu0
        %v2170 = vpop.f32.mrf.mxu0
        %v2171 = vpop.f32.mrf.mxu0
        %2172 = vdwg.mxu0
        %v2173 = vadd.f32 %v1953, %v2045
        %v2174 = vadd.f32 %v1954, %v2047
        %v2175 = vadd.f32 %v1955, %v2086
        %v2176 = vadd.f32 %v1956, %v2088
        %v2177 = vadd.f32 %v1957, %v2127
        %v2178 = vadd.f32 %v1958, %v2129
        %v2179 = vadd.f32 %v1959, %v2168
        %s2180 = scalar_lea.vmem %s1, 36
        %v2181 = vld [vmem:[%s2180] sm:$0xf]
        %2182 = vrot.lane.b32.xlu0 %v213, 28
        %v2183 = vpop.permute.xlu0 %2182
        %2184 = vrot.lane.b32.xlu0 %v221, 28
        %v2185 = vpop.permute.xlu0 %2184
        %2186 = vrot.lane.b32.xlu0 %v220, 28
        %v2187 = vpop.permute.xlu0 %2186
        %2188 = vrot.lane.b32.xlu0 %v222, 28
        %v2189 = vpop.permute.xlu0 %2188
        %2190 = vrot.lane.b32.xlu0 %v230, 28
        %v2191 = vpop.permute.xlu0 %2190
        %2192 = vrot.lane.b32.xlu0 %v238, 28
        %v2193 = vpop.permute.xlu0 %2192
        %2194 = vrot.lane.b32.xlu0 %v237, 28
        %v2195 = vpop.permute.xlu0 %2194
        %2196 = vrot.lane.b32.xlu0 %v239, 28
        %v2197 = vpop.permute.xlu0 %2196
        %vm2198 = vcmask 228352
        %v2199 = vsel %vm2198, %v2183, %v2185
        %v2200 = vsel %vm2198, %v2185, %v2187
        %v2201 = vsel %vm2198, %v2187, %v2189
        %v2202 = vsel %vm2198, %v2189, %v2191
        %v2203 = vsel %vm2198, %v2191, %v2193
        %v2204 = vsel %vm2198, %v2193, %v2195
        %v2205 = vsel %vm2198, %v2195, %v2197
        %v2207 = vsel %vm264, %v2181, 0
        %v2210 = vsel %vm268, %v2199, 0
        %v2213 = vsel %vm268, %v2200, 0
        %v2216 = vsel %vm268, %v2201, 0
        %v2219 = vsel %vm268, %v2202, 0
        %v2222 = vsel %vm268, %v2203, 0
        %v2225 = vsel %vm268, %v2204, 0
        %v2228 = vsel %vm268, %v2205, 0
        %2230 = vmatprep.subr.bf16.mxu0 0
        %2231 = vmatpush1.bf16.msra.mxu0 0
        %2232 = vmatprep.subr.bf16.mxu0 0
        %2233 = vmatpush1.bf16.msra.mxu0 0
        %2234 = vmatprep.subr.bf16.mxu0 0
        %2235 = vmatpush1.bf16.msra.mxu0 0
        %2236 = vmatprep.subr.bf16.mxu0 0
        %2237 = vmatpush1.bf16.msra.mxu0 0
        %2238 = vmatprep.subr.bf16.mxu0 0
        %2239 = vmatpush1.bf16.msra.mxu0 0
        %2240 = vmatprep.subr.bf16.mxu0 0
        %2241 = vmatpush1.bf16.msra.mxu0 0
        %2242 = vmatprep.subr.bf16.mxu0 0
        %2243 = vmatpush1.bf16.msra.mxu0 0
        %2244 = vmatprep.subr.bf16.mxu0 %v2213
        %2245 = vmatpush1.bf16.msra.mxu0 %v2210
        %2246 = vmatprep.subr.bf16.mxu0 0
        %2247 = vmatpush2.bf16.msra.mxu0 0
        %2248 = vmatprep.subr.bf16.mxu0 0
        %2249 = vmatpush2.bf16.msra.mxu0 0
        %2250 = vmatprep.subr.bf16.mxu0 0
        %2251 = vmatpush2.bf16.msra.mxu0 0
        %2252 = vmatprep.subr.bf16.mxu0 0
        %2253 = vmatpush2.bf16.msra.mxu0 0
        %2254 = vmatprep.subr.bf16.mxu0 0
        %2255 = vmatpush2.bf16.msra.mxu0 0
        %2256 = vmatprep.subr.bf16.mxu0 0
        %2257 = vmatpush2.bf16.msra.mxu0 0
        %2258 = vmatprep.subr.bf16.mxu0 0
        %2259 = vmatpush2.bf16.msra.mxu0 0
        %2260 = vmatprep.subr.bf16.mxu0 0
        %2261 = vmatpush2.bf16.msra.mxu0 0
        %2262 = vmatprep.mubr.bf16.mxu0 0
        %2263 = vmatmul.mubr.bf16.gmra.mxu0 %v2207
        %v2264 = vpop.f32.mrf.mxu0
        %v2265 = vadd.f32 0.0, %v2264
        %v2266 = vpop.f32.mrf.mxu0
        %v2267 = vadd.f32 0.0, %v2266
        %v2268 = vpop.f32.mrf.mxu0
        %v2269 = vpop.f32.mrf.mxu0
        %2270 = vdwg.mxu0
        %2271 = vmatprep.subr.bf16.mxu0 0
        %2272 = vmatpush1.bf16.msra.mxu0 0
        %2273 = vmatprep.subr.bf16.mxu0 0
        %2274 = vmatpush1.bf16.msra.mxu0 0
        %2275 = vmatprep.subr.bf16.mxu0 0
        %2276 = vmatpush1.bf16.msra.mxu0 0
        %2277 = vmatprep.subr.bf16.mxu0 0
        %2278 = vmatpush1.bf16.msra.mxu0 0
        %2279 = vmatprep.subr.bf16.mxu0 0
        %2280 = vmatpush1.bf16.msra.mxu0 0
        %2281 = vmatprep.subr.bf16.mxu0 0
        %2282 = vmatpush1.bf16.msra.mxu0 0
        %2283 = vmatprep.subr.bf16.mxu0 0
        %2284 = vmatpush1.bf16.msra.mxu0 0
        %2285 = vmatprep.subr.bf16.mxu0 %v2219
        %2286 = vmatpush1.bf16.msra.mxu0 %v2216
        %2287 = vmatprep.subr.bf16.mxu0 0
        %2288 = vmatpush2.bf16.msra.mxu0 0
        %2289 = vmatprep.subr.bf16.mxu0 0
        %2290 = vmatpush2.bf16.msra.mxu0 0
        %2291 = vmatprep.subr.bf16.mxu0 0
        %2292 = vmatpush2.bf16.msra.mxu0 0
        %2293 = vmatprep.subr.bf16.mxu0 0
        %2294 = vmatpush2.bf16.msra.mxu0 0
        %2295 = vmatprep.subr.bf16.mxu0 0
        %2296 = vmatpush2.bf16.msra.mxu0 0
        %2297 = vmatprep.subr.bf16.mxu0 0
        %2298 = vmatpush2.bf16.msra.mxu0 0
        %2299 = vmatprep.subr.bf16.mxu0 0
        %2300 = vmatpush2.bf16.msra.mxu0 0
        %2301 = vmatprep.subr.bf16.mxu0 0
        %2302 = vmatpush2.bf16.msra.mxu0 0
        %2303 = vmatprep.mubr.bf16.mxu0 0
        %2304 = vmatmul.mubr.bf16.gmra.mxu0 %v2207
        %v2305 = vpop.f32.mrf.mxu0
        %v2306 = vadd.f32 0.0, %v2305
        %v2307 = vpop.f32.mrf.mxu0
        %v2308 = vadd.f32 0.0, %v2307
        %v2309 = vpop.f32.mrf.mxu0
        %v2310 = vpop.f32.mrf.mxu0
        %2311 = vdwg.mxu0
        %2312 = vmatprep.subr.bf16.mxu0 0
        %2313 = vmatpush1.bf16.msra.mxu0 0
        %2314 = vmatprep.subr.bf16.mxu0 0
        %2315 = vmatpush1.bf16.msra.mxu0 0
        %2316 = vmatprep.subr.bf16.mxu0 0
        %2317 = vmatpush1.bf16.msra.mxu0 0
        %2318 = vmatprep.subr.bf16.mxu0 0
        %2319 = vmatpush1.bf16.msra.mxu0 0
        %2320 = vmatprep.subr.bf16.mxu0 0
        %2321 = vmatpush1.bf16.msra.mxu0 0
        %2322 = vmatprep.subr.bf16.mxu0 0
        %2323 = vmatpush1.bf16.msra.mxu0 0
        %2324 = vmatprep.subr.bf16.mxu0 0
        %2325 = vmatpush1.bf16.msra.mxu0 0
        %2326 = vmatprep.subr.bf16.mxu0 %v2225
        %2327 = vmatpush1.bf16.msra.mxu0 %v2222
        %2328 = vmatprep.subr.bf16.mxu0 0
        %2329 = vmatpush2.bf16.msra.mxu0 0
        %2330 = vmatprep.subr.bf16.mxu0 0
        %2331 = vmatpush2.bf16.msra.mxu0 0
        %2332 = vmatprep.subr.bf16.mxu0 0
        %2333 = vmatpush2.bf16.msra.mxu0 0
        %2334 = vmatprep.subr.bf16.mxu0 0
        %2335 = vmatpush2.bf16.msra.mxu0 0
        %2336 = vmatprep.subr.bf16.mxu0 0
        %2337 = vmatpush2.bf16.msra.mxu0 0
        %2338 = vmatprep.subr.bf16.mxu0 0
        %2339 = vmatpush2.bf16.msra.mxu0 0
        %2340 = vmatprep.subr.bf16.mxu0 0
        %2341 = vmatpush2.bf16.msra.mxu0 0
        %2342 = vmatprep.subr.bf16.mxu0 0
        %2343 = vmatpush2.bf16.msra.mxu0 0
        %2344 = vmatprep.mubr.bf16.mxu0 0
        %2345 = vmatmul.mubr.bf16.gmra.mxu0 %v2207
        %v2346 = vpop.f32.mrf.mxu0
        %v2347 = vadd.f32 0.0, %v2346
        %v2348 = vpop.f32.mrf.mxu0
        %v2349 = vadd.f32 0.0, %v2348
        %v2350 = vpop.f32.mrf.mxu0
        %v2351 = vpop.f32.mrf.mxu0
        %2352 = vdwg.mxu0
        %2353 = vmatprep.subr.bf16.mxu0 0
        %2354 = vmatpush1.bf16.msra.mxu0 0
        %2355 = vmatprep.subr.bf16.mxu0 0
        %2356 = vmatpush1.bf16.msra.mxu0 0
        %2357 = vmatprep.subr.bf16.mxu0 0
        %2358 = vmatpush1.bf16.msra.mxu0 0
        %2359 = vmatprep.subr.bf16.mxu0 0
        %2360 = vmatpush1.bf16.msra.mxu0 0
        %2361 = vmatprep.subr.bf16.mxu0 0
        %2362 = vmatpush1.bf16.msra.mxu0 0
        %2363 = vmatprep.subr.bf16.mxu0 0
        %2364 = vmatpush1.bf16.msra.mxu0 0
        %2365 = vmatprep.subr.bf16.mxu0 0
        %2366 = vmatpush1.bf16.msra.mxu0 0
        %2367 = vmatprep.subr.bf16.mxu0 0
        %2368 = vmatpush1.bf16.msra.mxu0 %v2228
        %2369 = vmatprep.subr.bf16.mxu0 0
        %2370 = vmatpush2.bf16.msra.mxu0 0
        %2371 = vmatprep.subr.bf16.mxu0 0
        %2372 = vmatpush2.bf16.msra.mxu0 0
        %2373 = vmatprep.subr.bf16.mxu0 0
        %2374 = vmatpush2.bf16.msra.mxu0 0
        %2375 = vmatprep.subr.bf16.mxu0 0
        %2376 = vmatpush2.bf16.msra.mxu0 0
        %2377 = vmatprep.subr.bf16.mxu0 0
        %2378 = vmatpush2.bf16.msra.mxu0 0
        %2379 = vmatprep.subr.bf16.mxu0 0
        %2380 = vmatpush2.bf16.msra.mxu0 0
        %2381 = vmatprep.subr.bf16.mxu0 0
        %2382 = vmatpush2.bf16.msra.mxu0 0
        %2383 = vmatprep.subr.bf16.mxu0 0
        %2384 = vmatpush2.bf16.msra.mxu0 0
        %2385 = vmatprep.mubr.bf16.mxu0 0
        %2386 = vmatmul.mubr.bf16.gmra.mxu0 %v2207
        %v2387 = vpop.f32.mrf.mxu0
        %v2388 = vadd.f32 0.0, %v2387
        %v2389 = vpop.f32.mrf.mxu0
        %v2390 = vpop.f32.mrf.mxu0
        %v2391 = vpop.f32.mrf.mxu0
        %2392 = vdwg.mxu0
        %v2393 = vadd.f32 %v2173, %v2265
        %v2394 = vadd.f32 %v2174, %v2267
        %v2395 = vadd.f32 %v2175, %v2306
        %v2396 = vadd.f32 %v2176, %v2308
        %v2397 = vadd.f32 %v2177, %v2347
        %v2398 = vadd.f32 %v2178, %v2349
        %v2399 = vadd.f32 %v2179, %v2388
        %s2400 = scalar_lea.vmem %s1, 40
        %v2401 = vld [vmem:[%s2400] sm:$0xf]
        %2402 = vrot.lane.b32.xlu0 %v213, 27
        %v2403 = vpop.permute.xlu0 %2402
        %2404 = vrot.lane.b32.xlu0 %v221, 27
        %v2405 = vpop.permute.xlu0 %2404
        %2406 = vrot.lane.b32.xlu0 %v220, 27
        %v2407 = vpop.permute.xlu0 %2406
        %2408 = vrot.lane.b32.xlu0 %v222, 27
        %v2409 = vpop.permute.xlu0 %2408
        %2410 = vrot.lane.b32.xlu0 %v230, 27
        %v2411 = vpop.permute.xlu0 %2410
        %2412 = vrot.lane.b32.xlu0 %v238, 27
        %v2413 = vpop.permute.xlu0 %2412
        %2414 = vrot.lane.b32.xlu0 %v237, 27
        %v2415 = vpop.permute.xlu0 %2414
        %2416 = vrot.lane.b32.xlu0 %v239, 27
        %v2417 = vpop.permute.xlu0 %2416
        %vm2418 = vcmask 220160
        %v2419 = vsel %vm2418, %v2403, %v2405
        %v2420 = vsel %vm2418, %v2405, %v2407
        %v2421 = vsel %vm2418, %v2407, %v2409
        %v2422 = vsel %vm2418, %v2409, %v2411
        %v2423 = vsel %vm2418, %v2411, %v2413
        %v2424 = vsel %vm2418, %v2413, %v2415
        %v2425 = vsel %vm2418, %v2415, %v2417
        %v2427 = vsel %vm264, %v2401, 0
        %v2430 = vsel %vm268, %v2419, 0
        %v2433 = vsel %vm268, %v2420, 0
        %v2436 = vsel %vm268, %v2421, 0
        %v2439 = vsel %vm268, %v2422, 0
        %v2442 = vsel %vm268, %v2423, 0
        %v2445 = vsel %vm268, %v2424, 0
        %v2448 = vsel %vm268, %v2425, 0
        %2450 = vmatprep.subr.bf16.mxu0 0
        %2451 = vmatpush1.bf16.msra.mxu0 0
        %2452 = vmatprep.subr.bf16.mxu0 0
        %2453 = vmatpush1.bf16.msra.mxu0 0
        %2454 = vmatprep.subr.bf16.mxu0 0
        %2455 = vmatpush1.bf16.msra.mxu0 0
        %2456 = vmatprep.subr.bf16.mxu0 0
        %2457 = vmatpush1.bf16.msra.mxu0 0
        %2458 = vmatprep.subr.bf16.mxu0 0
        %2459 = vmatpush1.bf16.msra.mxu0 0
        %2460 = vmatprep.subr.bf16.mxu0 0
        %2461 = vmatpush1.bf16.msra.mxu0 0
        %2462 = vmatprep.subr.bf16.mxu0 0
        %2463 = vmatpush1.bf16.msra.mxu0 0
        %2464 = vmatprep.subr.bf16.mxu0 %v2433
        %2465 = vmatpush1.bf16.msra.mxu0 %v2430
        %2466 = vmatprep.subr.bf16.mxu0 0
        %2467 = vmatpush2.bf16.msra.mxu0 0
        %2468 = vmatprep.subr.bf16.mxu0 0
        %2469 = vmatpush2.bf16.msra.mxu0 0
        %2470 = vmatprep.subr.bf16.mxu0 0
        %2471 = vmatpush2.bf16.msra.mxu0 0
        %2472 = vmatprep.subr.bf16.mxu0 0
        %2473 = vmatpush2.bf16.msra.mxu0 0
        %2474 = vmatprep.subr.bf16.mxu0 0
        %2475 = vmatpush2.bf16.msra.mxu0 0
        %2476 = vmatprep.subr.bf16.mxu0 0
        %2477 = vmatpush2.bf16.msra.mxu0 0
        %2478 = vmatprep.subr.bf16.mxu0 0
        %2479 = vmatpush2.bf16.msra.mxu0 0
        %2480 = vmatprep.subr.bf16.mxu0 0
        %2481 = vmatpush2.bf16.msra.mxu0 0
        %2482 = vmatprep.mubr.bf16.mxu0 0
        %2483 = vmatmul.mubr.bf16.gmra.mxu0 %v2427
        %v2484 = vpop.f32.mrf.mxu0
        %v2485 = vadd.f32 0.0, %v2484
        %v2486 = vpop.f32.mrf.mxu0
        %v2487 = vadd.f32 0.0, %v2486
        %v2488 = vpop.f32.mrf.mxu0
        %v2489 = vpop.f32.mrf.mxu0
        %2490 = vdwg.mxu0
        %2491 = vmatprep.subr.bf16.mxu0 0
        %2492 = vmatpush1.bf16.msra.mxu0 0
        %2493 = vmatprep.subr.bf16.mxu0 0
        %2494 = vmatpush1.bf16.msra.mxu0 0
        %2495 = vmatprep.subr.bf16.mxu0 0
        %2496 = vmatpush1.bf16.msra.mxu0 0
        %2497 = vmatprep.subr.bf16.mxu0 0
        %2498 = vmatpush1.bf16.msra.mxu0 0
        %2499 = vmatprep.subr.bf16.mxu0 0
        %2500 = vmatpush1.bf16.msra.mxu0 0
        %2501 = vmatprep.subr.bf16.mxu0 0
        %2502 = vmatpush1.bf16.msra.mxu0 0
        %2503 = vmatprep.subr.bf16.mxu0 0
        %2504 = vmatpush1.bf16.msra.mxu0 0
        %2505 = vmatprep.subr.bf16.mxu0 %v2439
        %2506 = vmatpush1.bf16.msra.mxu0 %v2436
        %2507 = vmatprep.subr.bf16.mxu0 0
        %2508 = vmatpush2.bf16.msra.mxu0 0
        %2509 = vmatprep.subr.bf16.mxu0 0
        %2510 = vmatpush2.bf16.msra.mxu0 0
        %2511 = vmatprep.subr.bf16.mxu0 0
        %2512 = vmatpush2.bf16.msra.mxu0 0
        %2513 = vmatprep.subr.bf16.mxu0 0
        %2514 = vmatpush2.bf16.msra.mxu0 0
        %2515 = vmatprep.subr.bf16.mxu0 0
        %2516 = vmatpush2.bf16.msra.mxu0 0
        %2517 = vmatprep.subr.bf16.mxu0 0
        %2518 = vmatpush2.bf16.msra.mxu0 0
        %2519 = vmatprep.subr.bf16.mxu0 0
        %2520 = vmatpush2.bf16.msra.mxu0 0
        %2521 = vmatprep.subr.bf16.mxu0 0
        %2522 = vmatpush2.bf16.msra.mxu0 0
        %2523 = vmatprep.mubr.bf16.mxu0 0
        %2524 = vmatmul.mubr.bf16.gmra.mxu0 %v2427
        %v2525 = vpop.f32.mrf.mxu0
        %v2526 = vadd.f32 0.0, %v2525
        %v2527 = vpop.f32.mrf.mxu0
        %v2528 = vadd.f32 0.0, %v2527
        %v2529 = vpop.f32.mrf.mxu0
        %v2530 = vpop.f32.mrf.mxu0
        %2531 = vdwg.mxu0
        %2532 = vmatprep.subr.bf16.mxu0 0
        %2533 = vmatpush1.bf16.msra.mxu0 0
        %2534 = vmatprep.subr.bf16.mxu0 0
        %2535 = vmatpush1.bf16.msra.mxu0 0
        %2536 = vmatprep.subr.bf16.mxu0 0
        %2537 = vmatpush1.bf16.msra.mxu0 0
        %2538 = vmatprep.subr.bf16.mxu0 0
        %2539 = vmatpush1.bf16.msra.mxu0 0
        %2540 = vmatprep.subr.bf16.mxu0 0
        %2541 = vmatpush1.bf16.msra.mxu0 0
        %2542 = vmatprep.subr.bf16.mxu0 0
        %2543 = vmatpush1.bf16.msra.mxu0 0
        %2544 = vmatprep.subr.bf16.mxu0 0
        %2545 = vmatpush1.bf16.msra.mxu0 0
        %2546 = vmatprep.subr.bf16.mxu0 %v2445
        %2547 = vmatpush1.bf16.msra.mxu0 %v2442
        %2548 = vmatprep.subr.bf16.mxu0 0
        %2549 = vmatpush2.bf16.msra.mxu0 0
        %2550 = vmatprep.subr.bf16.mxu0 0
        %2551 = vmatpush2.bf16.msra.mxu0 0
        %2552 = vmatprep.subr.bf16.mxu0 0
        %2553 = vmatpush2.bf16.msra.mxu0 0
        %2554 = vmatprep.subr.bf16.mxu0 0
        %2555 = vmatpush2.bf16.msra.mxu0 0
        %2556 = vmatprep.subr.bf16.mxu0 0
        %2557 = vmatpush2.bf16.msra.mxu0 0
        %2558 = vmatprep.subr.bf16.mxu0 0
        %2559 = vmatpush2.bf16.msra.mxu0 0
        %2560 = vmatprep.subr.bf16.mxu0 0
        %2561 = vmatpush2.bf16.msra.mxu0 0
        %2562 = vmatprep.subr.bf16.mxu0 0
        %2563 = vmatpush2.bf16.msra.mxu0 0
        %2564 = vmatprep.mubr.bf16.mxu0 0
        %2565 = vmatmul.mubr.bf16.gmra.mxu0 %v2427
        %v2566 = vpop.f32.mrf.mxu0
        %v2567 = vadd.f32 0.0, %v2566
        %v2568 = vpop.f32.mrf.mxu0
        %v2569 = vadd.f32 0.0, %v2568
        %v2570 = vpop.f32.mrf.mxu0
        %v2571 = vpop.f32.mrf.mxu0
        %2572 = vdwg.mxu0
        %2573 = vmatprep.subr.bf16.mxu0 0
        %2574 = vmatpush1.bf16.msra.mxu0 0
        %2575 = vmatprep.subr.bf16.mxu0 0
        %2576 = vmatpush1.bf16.msra.mxu0 0
        %2577 = vmatprep.subr.bf16.mxu0 0
        %2578 = vmatpush1.bf16.msra.mxu0 0
        %2579 = vmatprep.subr.bf16.mxu0 0
        %2580 = vmatpush1.bf16.msra.mxu0 0
        %2581 = vmatprep.subr.bf16.mxu0 0
        %2582 = vmatpush1.bf16.msra.mxu0 0
        %2583 = vmatprep.subr.bf16.mxu0 0
        %2584 = vmatpush1.bf16.msra.mxu0 0
        %2585 = vmatprep.subr.bf16.mxu0 0
        %2586 = vmatpush1.bf16.msra.mxu0 0
        %2587 = vmatprep.subr.bf16.mxu0 0
        %2588 = vmatpush1.bf16.msra.mxu0 %v2448
        %2589 = vmatprep.subr.bf16.mxu0 0
        %2590 = vmatpush2.bf16.msra.mxu0 0
        %2591 = vmatprep.subr.bf16.mxu0 0
        %2592 = vmatpush2.bf16.msra.mxu0 0
        %2593 = vmatprep.subr.bf16.mxu0 0
        %2594 = vmatpush2.bf16.msra.mxu0 0
        %2595 = vmatprep.subr.bf16.mxu0 0
        %2596 = vmatpush2.bf16.msra.mxu0 0
        %2597 = vmatprep.subr.bf16.mxu0 0
        %2598 = vmatpush2.bf16.msra.mxu0 0
        %2599 = vmatprep.subr.bf16.mxu0 0
        %2600 = vmatpush2.bf16.msra.mxu0 0
        %2601 = vmatprep.subr.bf16.mxu0 0
        %2602 = vmatpush2.bf16.msra.mxu0 0
        %2603 = vmatprep.subr.bf16.mxu0 0
        %2604 = vmatpush2.bf16.msra.mxu0 0
        %2605 = vmatprep.mubr.bf16.mxu0 0
        %2606 = vmatmul.mubr.bf16.gmra.mxu0 %v2427
        %v2607 = vpop.f32.mrf.mxu0
        %v2608 = vadd.f32 0.0, %v2607
        %v2609 = vpop.f32.mrf.mxu0
        %v2610 = vpop.f32.mrf.mxu0
        %v2611 = vpop.f32.mrf.mxu0
        %2612 = vdwg.mxu0
        %v2613 = vadd.f32 %v2393, %v2485
        %v2614 = vadd.f32 %v2394, %v2487
        %v2615 = vadd.f32 %v2395, %v2526
        %v2616 = vadd.f32 %v2396, %v2528
        %v2617 = vadd.f32 %v2397, %v2567
        %v2618 = vadd.f32 %v2398, %v2569
        %v2619 = vadd.f32 %v2399, %v2608
        %s2620 = scalar_lea.vmem %s1, 44
        %v2621 = vld [vmem:[%s2620] sm:$0xf]
        %2622 = vrot.lane.b32.xlu0 %v213, 26
        %v2623 = vpop.permute.xlu0 %2622
        %2624 = vrot.lane.b32.xlu0 %v221, 26
        %v2625 = vpop.permute.xlu0 %2624
        %2626 = vrot.lane.b32.xlu0 %v220, 26
        %v2627 = vpop.permute.xlu0 %2626
        %2628 = vrot.lane.b32.xlu0 %v222, 26
        %v2629 = vpop.permute.xlu0 %2628
        %2630 = vrot.lane.b32.xlu0 %v230, 26
        %v2631 = vpop.permute.xlu0 %2630
        %2632 = vrot.lane.b32.xlu0 %v238, 26
        %v2633 = vpop.permute.xlu0 %2632
        %2634 = vrot.lane.b32.xlu0 %v237, 26
        %v2635 = vpop.permute.xlu0 %2634
        %2636 = vrot.lane.b32.xlu0 %v239, 26
        %v2637 = vpop.permute.xlu0 %2636
        %vm2638 = vcmask 211968
        %v2639 = vsel %vm2638, %v2623, %v2625
        %v2640 = vsel %vm2638, %v2625, %v2627
        %v2641 = vsel %vm2638, %v2627, %v2629
        %v2642 = vsel %vm2638, %v2629, %v2631
        %v2643 = vsel %vm2638, %v2631, %v2633
        %v2644 = vsel %vm2638, %v2633, %v2635
        %v2645 = vsel %vm2638, %v2635, %v2637
        %v2647 = vsel %vm264, %v2621, 0
        %v2650 = vsel %vm268, %v2639, 0
        %v2653 = vsel %vm268, %v2640, 0
        %v2656 = vsel %vm268, %v2641, 0
        %v2659 = vsel %vm268, %v2642, 0
        %v2662 = vsel %vm268, %v2643, 0
        %v2665 = vsel %vm268, %v2644, 0
        %v2668 = vsel %vm268, %v2645, 0
        %2670 = vmatprep.subr.bf16.mxu0 0
        %2671 = vmatpush1.bf16.msra.mxu0 0
        %2672 = vmatprep.subr.bf16.mxu0 0
        %2673 = vmatpush1.bf16.msra.mxu0 0
        %2674 = vmatprep.subr.bf16.mxu0 0
        %2675 = vmatpush1.bf16.msra.mxu0 0
        %2676 = vmatprep.subr.bf16.mxu0 0
        %2677 = vmatpush1.bf16.msra.mxu0 0
        %2678 = vmatprep.subr.bf16.mxu0 0
        %2679 = vmatpush1.bf16.msra.mxu0 0
        %2680 = vmatprep.subr.bf16.mxu0 0
        %2681 = vmatpush1.bf16.msra.mxu0 0
        %2682 = vmatprep.subr.bf16.mxu0 0
        %2683 = vmatpush1.bf16.msra.mxu0 0
        %2684 = vmatprep.subr.bf16.mxu0 %v2653
        %2685 = vmatpush1.bf16.msra.mxu0 %v2650
        %2686 = vmatprep.subr.bf16.mxu0 0
        %2687 = vmatpush2.bf16.msra.mxu0 0
        %2688 = vmatprep.subr.bf16.mxu0 0
        %2689 = vmatpush2.bf16.msra.mxu0 0
        %2690 = vmatprep.subr.bf16.mxu0 0
        %2691 = vmatpush2.bf16.msra.mxu0 0
        %2692 = vmatprep.subr.bf16.mxu0 0
        %2693 = vmatpush2.bf16.msra.mxu0 0
        %2694 = vmatprep.subr.bf16.mxu0 0
        %2695 = vmatpush2.bf16.msra.mxu0 0
        %2696 = vmatprep.subr.bf16.mxu0 0
        %2697 = vmatpush2.bf16.msra.mxu0 0
        %2698 = vmatprep.subr.bf16.mxu0 0
        %2699 = vmatpush2.bf16.msra.mxu0 0
        %2700 = vmatprep.subr.bf16.mxu0 0
        %2701 = vmatpush2.bf16.msra.mxu0 0
        %2702 = vmatprep.mubr.bf16.mxu0 0
        %2703 = vmatmul.mubr.bf16.gmra.mxu0 %v2647
        %v2704 = vpop.f32.mrf.mxu0
        %v2705 = vadd.f32 0.0, %v2704
        %v2706 = vpop.f32.mrf.mxu0
        %v2707 = vadd.f32 0.0, %v2706
        %v2708 = vpop.f32.mrf.mxu0
        %v2709 = vpop.f32.mrf.mxu0
        %2710 = vdwg.mxu0
        %2711 = vmatprep.subr.bf16.mxu0 0
        %2712 = vmatpush1.bf16.msra.mxu0 0
        %2713 = vmatprep.subr.bf16.mxu0 0
        %2714 = vmatpush1.bf16.msra.mxu0 0
        %2715 = vmatprep.subr.bf16.mxu0 0
        %2716 = vmatpush1.bf16.msra.mxu0 0
        %2717 = vmatprep.subr.bf16.mxu0 0
        %2718 = vmatpush1.bf16.msra.mxu0 0
        %2719 = vmatprep.subr.bf16.mxu0 0
        %2720 = vmatpush1.bf16.msra.mxu0 0
        %2721 = vmatprep.subr.bf16.mxu0 0
        %2722 = vmatpush1.bf16.msra.mxu0 0
        %2723 = vmatprep.subr.bf16.mxu0 0
        %2724 = vmatpush1.bf16.msra.mxu0 0
        %2725 = vmatprep.subr.bf16.mxu0 %v2659
        %2726 = vmatpush1.bf16.msra.mxu0 %v2656
        %2727 = vmatprep.subr.bf16.mxu0 0
        %2728 = vmatpush2.bf16.msra.mxu0 0
        %2729 = vmatprep.subr.bf16.mxu0 0
        %2730 = vmatpush2.bf16.msra.mxu0 0
        %2731 = vmatprep.subr.bf16.mxu0 0
        %2732 = vmatpush2.bf16.msra.mxu0 0
        %2733 = vmatprep.subr.bf16.mxu0 0
        %2734 = vmatpush2.bf16.msra.mxu0 0
        %2735 = vmatprep.subr.bf16.mxu0 0
        %2736 = vmatpush2.bf16.msra.mxu0 0
        %2737 = vmatprep.subr.bf16.mxu0 0
        %2738 = vmatpush2.bf16.msra.mxu0 0
        %2739 = vmatprep.subr.bf16.mxu0 0
        %2740 = vmatpush2.bf16.msra.mxu0 0
        %2741 = vmatprep.subr.bf16.mxu0 0
        %2742 = vmatpush2.bf16.msra.mxu0 0
        %2743 = vmatprep.mubr.bf16.mxu0 0
        %2744 = vmatmul.mubr.bf16.gmra.mxu0 %v2647
        %v2745 = vpop.f32.mrf.mxu0
        %v2746 = vadd.f32 0.0, %v2745
        %v2747 = vpop.f32.mrf.mxu0
        %v2748 = vadd.f32 0.0, %v2747
        %v2749 = vpop.f32.mrf.mxu0
        %v2750 = vpop.f32.mrf.mxu0
        %2751 = vdwg.mxu0
        %2752 = vmatprep.subr.bf16.mxu0 0
        %2753 = vmatpush1.bf16.msra.mxu0 0
        %2754 = vmatprep.subr.bf16.mxu0 0
        %2755 = vmatpush1.bf16.msra.mxu0 0
        %2756 = vmatprep.subr.bf16.mxu0 0
        %2757 = vmatpush1.bf16.msra.mxu0 0
        %2758 = vmatprep.subr.bf16.mxu0 0
        %2759 = vmatpush1.bf16.msra.mxu0 0
        %2760 = vmatprep.subr.bf16.mxu0 0
        %2761 = vmatpush1.bf16.msra.mxu0 0
        %2762 = vmatprep.subr.bf16.mxu0 0
        %2763 = vmatpush1.bf16.msra.mxu0 0
        %2764 = vmatprep.subr.bf16.mxu0 0
        %2765 = vmatpush1.bf16.msra.mxu0 0
        %2766 = vmatprep.subr.bf16.mxu0 %v2665
        %2767 = vmatpush1.bf16.msra.mxu0 %v2662
        %2768 = vmatprep.subr.bf16.mxu0 0
        %2769 = vmatpush2.bf16.msra.mxu0 0
        %2770 = vmatprep.subr.bf16.mxu0 0
        %2771 = vmatpush2.bf16.msra.mxu0 0
        %2772 = vmatprep.subr.bf16.mxu0 0
        %2773 = vmatpush2.bf16.msra.mxu0 0
        %2774 = vmatprep.subr.bf16.mxu0 0
        %2775 = vmatpush2.bf16.msra.mxu0 0
        %2776 = vmatprep.subr.bf16.mxu0 0
        %2777 = vmatpush2.bf16.msra.mxu0 0
        %2778 = vmatprep.subr.bf16.mxu0 0
        %2779 = vmatpush2.bf16.msra.mxu0 0
        %2780 = vmatprep.subr.bf16.mxu0 0
        %2781 = vmatpush2.bf16.msra.mxu0 0
        %2782 = vmatprep.subr.bf16.mxu0 0
        %2783 = vmatpush2.bf16.msra.mxu0 0
        %2784 = vmatprep.mubr.bf16.mxu0 0
        %2785 = vmatmul.mubr.bf16.gmra.mxu0 %v2647
        %v2786 = vpop.f32.mrf.mxu0
        %v2787 = vadd.f32 0.0, %v2786
        %v2788 = vpop.f32.mrf.mxu0
        %v2789 = vadd.f32 0.0, %v2788
        %v2790 = vpop.f32.mrf.mxu0
        %v2791 = vpop.f32.mrf.mxu0
        %2792 = vdwg.mxu0
        %2793 = vmatprep.subr.bf16.mxu0 0
        %2794 = vmatpush1.bf16.msra.mxu0 0
        %2795 = vmatprep.subr.bf16.mxu0 0
        %2796 = vmatpush1.bf16.msra.mxu0 0
        %2797 = vmatprep.subr.bf16.mxu0 0
        %2798 = vmatpush1.bf16.msra.mxu0 0
        %2799 = vmatprep.subr.bf16.mxu0 0
        %2800 = vmatpush1.bf16.msra.mxu0 0
        %2801 = vmatprep.subr.bf16.mxu0 0
        %2802 = vmatpush1.bf16.msra.mxu0 0
        %2803 = vmatprep.subr.bf16.mxu0 0
        %2804 = vmatpush1.bf16.msra.mxu0 0
        %2805 = vmatprep.subr.bf16.mxu0 0
        %2806 = vmatpush1.bf16.msra.mxu0 0
        %2807 = vmatprep.subr.bf16.mxu0 0
        %2808 = vmatpush1.bf16.msra.mxu0 %v2668
        %2809 = vmatprep.subr.bf16.mxu0 0
        %2810 = vmatpush2.bf16.msra.mxu0 0
        %2811 = vmatprep.subr.bf16.mxu0 0
        %2812 = vmatpush2.bf16.msra.mxu0 0
        %2813 = vmatprep.subr.bf16.mxu0 0
        %2814 = vmatpush2.bf16.msra.mxu0 0
        %2815 = vmatprep.subr.bf16.mxu0 0
        %2816 = vmatpush2.bf16.msra.mxu0 0
        %2817 = vmatprep.subr.bf16.mxu0 0
        %2818 = vmatpush2.bf16.msra.mxu0 0
        %2819 = vmatprep.subr.bf16.mxu0 0
        %2820 = vmatpush2.bf16.msra.mxu0 0
        %2821 = vmatprep.subr.bf16.mxu0 0
        %2822 = vmatpush2.bf16.msra.mxu0 0
        %2823 = vmatprep.subr.bf16.mxu0 0
        %2824 = vmatpush2.bf16.msra.mxu0 0
        %2825 = vmatprep.mubr.bf16.mxu0 0
        %2826 = vmatmul.mubr.bf16.gmra.mxu0 %v2647
        %v2827 = vpop.f32.mrf.mxu0
        %v2828 = vadd.f32 0.0, %v2827
        %v2829 = vpop.f32.mrf.mxu0
        %v2830 = vpop.f32.mrf.mxu0
        %v2831 = vpop.f32.mrf.mxu0
        %2832 = vdwg.mxu0
        %v2833 = vadd.f32 %v2613, %v2705
        %v2834 = vadd.f32 %v2614, %v2707
        %v2835 = vadd.f32 %v2615, %v2746
        %v2836 = vadd.f32 %v2616, %v2748
        %v2837 = vadd.f32 %v2617, %v2787
        %v2838 = vadd.f32 %v2618, %v2789
        %v2839 = vadd.f32 %v2619, %v2828
        %s2840 = scalar_lea.vmem %s1, 48
        %v2841 = vld [vmem:[%s2840] sm:$0xf]
        %2842 = vrot.lane.b32.xlu0 %v213, 18
        %v2843 = vpop.permute.xlu0 %2842
        %2844 = vrot.lane.b32.xlu0 %v221, 18
        %v2845 = vpop.permute.xlu0 %2844
        %2846 = vrot.lane.b32.xlu0 %v220, 18
        %v2847 = vpop.permute.xlu0 %2846
        %2848 = vrot.lane.b32.xlu0 %v222, 18
        %v2849 = vpop.permute.xlu0 %2848
        %2850 = vrot.lane.b32.xlu0 %v230, 18
        %v2851 = vpop.permute.xlu0 %2850
        %2852 = vrot.lane.b32.xlu0 %v238, 18
        %v2853 = vpop.permute.xlu0 %2852
        %2854 = vrot.lane.b32.xlu0 %v237, 18
        %v2855 = vpop.permute.xlu0 %2854
        %2856 = vrot.lane.b32.xlu0 %v239, 18
        %v2857 = vpop.permute.xlu0 %2856
        %vm2858 = vcmask 146432
        %v2859 = vsel %vm2858, %v2843, %v2845
        %v2860 = vsel %vm2858, %v2845, %v2847
        %v2861 = vsel %vm2858, %v2847, %v2849
        %v2862 = vsel %vm2858, %v2849, %v2851
        %v2863 = vsel %vm2858, %v2851, %v2853
        %v2864 = vsel %vm2858, %v2853, %v2855
        %v2865 = vsel %vm2858, %v2855, %v2857
        %v2867 = vsel %vm264, %v2841, 0
        %v2870 = vsel %vm268, %v2859, 0
        %v2873 = vsel %vm268, %v2860, 0
        %v2876 = vsel %vm268, %v2861, 0
        %v2879 = vsel %vm268, %v2862, 0
        %v2882 = vsel %vm268, %v2863, 0
        %v2885 = vsel %vm268, %v2864, 0
        %v2888 = vsel %vm268, %v2865, 0
        %2890 = vmatprep.subr.bf16.mxu0 0
        %2891 = vmatpush1.bf16.msra.mxu0 0
        %2892 = vmatprep.subr.bf16.mxu0 0
        %2893 = vmatpush1.bf16.msra.mxu0 0
        %2894 = vmatprep.subr.bf16.mxu0 0
        %2895 = vmatpush1.bf16.msra.mxu0 0
        %2896 = vmatprep.subr.bf16.mxu0 0
        %2897 = vmatpush1.bf16.msra.mxu0 0
        %2898 = vmatprep.subr.bf16.mxu0 0
        %2899 = vmatpush1.bf16.msra.mxu0 0
        %2900 = vmatprep.subr.bf16.mxu0 0
        %2901 = vmatpush1.bf16.msra.mxu0 0
        %2902 = vmatprep.subr.bf16.mxu0 0
        %2903 = vmatpush1.bf16.msra.mxu0 0
        %2904 = vmatprep.subr.bf16.mxu0 %v2873
        %2905 = vmatpush1.bf16.msra.mxu0 %v2870
        %2906 = vmatprep.subr.bf16.mxu0 0
        %2907 = vmatpush2.bf16.msra.mxu0 0
        %2908 = vmatprep.subr.bf16.mxu0 0
        %2909 = vmatpush2.bf16.msra.mxu0 0
        %2910 = vmatprep.subr.bf16.mxu0 0
        %2911 = vmatpush2.bf16.msra.mxu0 0
        %2912 = vmatprep.subr.bf16.mxu0 0
        %2913 = vmatpush2.bf16.msra.mxu0 0
        %2914 = vmatprep.subr.bf16.mxu0 0
        %2915 = vmatpush2.bf16.msra.mxu0 0
        %2916 = vmatprep.subr.bf16.mxu0 0
        %2917 = vmatpush2.bf16.msra.mxu0 0
        %2918 = vmatprep.subr.bf16.mxu0 0
        %2919 = vmatpush2.bf16.msra.mxu0 0
        %2920 = vmatprep.subr.bf16.mxu0 0
        %2921 = vmatpush2.bf16.msra.mxu0 0
        %2922 = vmatprep.mubr.bf16.mxu0 0
        %2923 = vmatmul.mubr.bf16.gmra.mxu0 %v2867
        %v2924 = vpop.f32.mrf.mxu0
        %v2925 = vadd.f32 0.0, %v2924
        %v2926 = vpop.f32.mrf.mxu0
        %v2927 = vadd.f32 0.0, %v2926
        %v2928 = vpop.f32.mrf.mxu0
        %v2929 = vpop.f32.mrf.mxu0
        %2930 = vdwg.mxu0
        %2931 = vmatprep.subr.bf16.mxu0 0
        %2932 = vmatpush1.bf16.msra.mxu0 0
        %2933 = vmatprep.subr.bf16.mxu0 0
        %2934 = vmatpush1.bf16.msra.mxu0 0
        %2935 = vmatprep.subr.bf16.mxu0 0
        %2936 = vmatpush1.bf16.msra.mxu0 0
        %2937 = vmatprep.subr.bf16.mxu0 0
        %2938 = vmatpush1.bf16.msra.mxu0 0
        %2939 = vmatprep.subr.bf16.mxu0 0
        %2940 = vmatpush1.bf16.msra.mxu0 0
        %2941 = vmatprep.subr.bf16.mxu0 0
        %2942 = vmatpush1.bf16.msra.mxu0 0
        %2943 = vmatprep.subr.bf16.mxu0 0
        %2944 = vmatpush1.bf16.msra.mxu0 0
        %2945 = vmatprep.subr.bf16.mxu0 %v2879
        %2946 = vmatpush1.bf16.msra.mxu0 %v2876
        %2947 = vmatprep.subr.bf16.mxu0 0
        %2948 = vmatpush2.bf16.msra.mxu0 0
        %2949 = vmatprep.subr.bf16.mxu0 0
        %2950 = vmatpush2.bf16.msra.mxu0 0
        %2951 = vmatprep.subr.bf16.mxu0 0
        %2952 = vmatpush2.bf16.msra.mxu0 0
        %2953 = vmatprep.subr.bf16.mxu0 0
        %2954 = vmatpush2.bf16.msra.mxu0 0
        %2955 = vmatprep.subr.bf16.mxu0 0
        %2956 = vmatpush2.bf16.msra.mxu0 0
        %2957 = vmatprep.subr.bf16.mxu0 0
        %2958 = vmatpush2.bf16.msra.mxu0 0
        %2959 = vmatprep.subr.bf16.mxu0 0
        %2960 = vmatpush2.bf16.msra.mxu0 0
        %2961 = vmatprep.subr.bf16.mxu0 0
        %2962 = vmatpush2.bf16.msra.mxu0 0
        %2963 = vmatprep.mubr.bf16.mxu0 0
        %2964 = vmatmul.mubr.bf16.gmra.mxu0 %v2867
        %v2965 = vpop.f32.mrf.mxu0
        %v2966 = vadd.f32 0.0, %v2965
        %v2967 = vpop.f32.mrf.mxu0
        %v2968 = vadd.f32 0.0, %v2967
        %v2969 = vpop.f32.mrf.mxu0
        %v2970 = vpop.f32.mrf.mxu0
        %2971 = vdwg.mxu0
        %2972 = vmatprep.subr.bf16.mxu0 0
        %2973 = vmatpush1.bf16.msra.mxu0 0
        %2974 = vmatprep.subr.bf16.mxu0 0
        %2975 = vmatpush1.bf16.msra.mxu0 0
        %2976 = vmatprep.subr.bf16.mxu0 0
        %2977 = vmatpush1.bf16.msra.mxu0 0
        %2978 = vmatprep.subr.bf16.mxu0 0
        %2979 = vmatpush1.bf16.msra.mxu0 0
        %2980 = vmatprep.subr.bf16.mxu0 0
        %2981 = vmatpush1.bf16.msra.mxu0 0
        %2982 = vmatprep.subr.bf16.mxu0 0
        %2983 = vmatpush1.bf16.msra.mxu0 0
        %2984 = vmatprep.subr.bf16.mxu0 0
        %2985 = vmatpush1.bf16.msra.mxu0 0
        %2986 = vmatprep.subr.bf16.mxu0 %v2885
        %2987 = vmatpush1.bf16.msra.mxu0 %v2882
        %2988 = vmatprep.subr.bf16.mxu0 0
        %2989 = vmatpush2.bf16.msra.mxu0 0
        %2990 = vmatprep.subr.bf16.mxu0 0
        %2991 = vmatpush2.bf16.msra.mxu0 0
        %2992 = vmatprep.subr.bf16.mxu0 0
        %2993 = vmatpush2.bf16.msra.mxu0 0
        %2994 = vmatprep.subr.bf16.mxu0 0
        %2995 = vmatpush2.bf16.msra.mxu0 0
        %2996 = vmatprep.subr.bf16.mxu0 0
        %2997 = vmatpush2.bf16.msra.mxu0 0
        %2998 = vmatprep.subr.bf16.mxu0 0
        %2999 = vmatpush2.bf16.msra.mxu0 0
        %3000 = vmatprep.subr.bf16.mxu0 0
        %3001 = vmatpush2.bf16.msra.mxu0 0
        %3002 = vmatprep.subr.bf16.mxu0 0
        %3003 = vmatpush2.bf16.msra.mxu0 0
        %3004 = vmatprep.mubr.bf16.mxu0 0
        %3005 = vmatmul.mubr.bf16.gmra.mxu0 %v2867
        %v3006 = vpop.f32.mrf.mxu0
        %v3007 = vadd.f32 0.0, %v3006
        %v3008 = vpop.f32.mrf.mxu0
        %v3009 = vadd.f32 0.0, %v3008
        %v3010 = vpop.f32.mrf.mxu0
        %v3011 = vpop.f32.mrf.mxu0
        %3012 = vdwg.mxu0
        %3013 = vmatprep.subr.bf16.mxu0 0
        %3014 = vmatpush1.bf16.msra.mxu0 0
        %3015 = vmatprep.subr.bf16.mxu0 0
        %3016 = vmatpush1.bf16.msra.mxu0 0
        %3017 = vmatprep.subr.bf16.mxu0 0
        %3018 = vmatpush1.bf16.msra.mxu0 0
        %3019 = vmatprep.subr.bf16.mxu0 0
        %3020 = vmatpush1.bf16.msra.mxu0 0
        %3021 = vmatprep.subr.bf16.mxu0 0
        %3022 = vmatpush1.bf16.msra.mxu0 0
        %3023 = vmatprep.subr.bf16.mxu0 0
        %3024 = vmatpush1.bf16.msra.mxu0 0
        %3025 = vmatprep.subr.bf16.mxu0 0
        %3026 = vmatpush1.bf16.msra.mxu0 0
        %3027 = vmatprep.subr.bf16.mxu0 0
        %3028 = vmatpush1.bf16.msra.mxu0 %v2888
        %3029 = vmatprep.subr.bf16.mxu0 0
        %3030 = vmatpush2.bf16.msra.mxu0 0
        %3031 = vmatprep.subr.bf16.mxu0 0
        %3032 = vmatpush2.bf16.msra.mxu0 0
        %3033 = vmatprep.subr.bf16.mxu0 0
        %3034 = vmatpush2.bf16.msra.mxu0 0
        %3035 = vmatprep.subr.bf16.mxu0 0
        %3036 = vmatpush2.bf16.msra.mxu0 0
        %3037 = vmatprep.subr.bf16.mxu0 0
        %3038 = vmatpush2.bf16.msra.mxu0 0
        %3039 = vmatprep.subr.bf16.mxu0 0
        %3040 = vmatpush2.bf16.msra.mxu0 0
        %3041 = vmatprep.subr.bf16.mxu0 0
        %3042 = vmatpush2.bf16.msra.mxu0 0
        %3043 = vmatprep.subr.bf16.mxu0 0
        %3044 = vmatpush2.bf16.msra.mxu0 0
        %3045 = vmatprep.mubr.bf16.mxu0 0
        %3046 = vmatmul.mubr.bf16.gmra.mxu0 %v2867
        %v3047 = vpop.f32.mrf.mxu0
        %v3048 = vadd.f32 0.0, %v3047
        %v3049 = vpop.f32.mrf.mxu0
        %v3050 = vpop.f32.mrf.mxu0
        %v3051 = vpop.f32.mrf.mxu0
        %3052 = vdwg.mxu0
        %v3053 = vadd.f32 %v2833, %v2925
        %v3054 = vadd.f32 %v2834, %v2927
        %v3055 = vadd.f32 %v2835, %v2966
        %v3056 = vadd.f32 %v2836, %v2968
        %v3057 = vadd.f32 %v2837, %v3007
        %v3058 = vadd.f32 %v2838, %v3009
        %v3059 = vadd.f32 %v2839, %v3048
        %s3060 = scalar_lea.vmem %s1, 52
        %v3061 = vld [vmem:[%s3060] sm:$0xf]
        %3062 = vrot.lane.b32.xlu0 %v213, 17
        %v3063 = vpop.permute.xlu0 %3062
        %3064 = vrot.lane.b32.xlu0 %v221, 17
        %v3065 = vpop.permute.xlu0 %3064
        %3066 = vrot.lane.b32.xlu0 %v220, 17
        %v3067 = vpop.permute.xlu0 %3066
        %3068 = vrot.lane.b32.xlu0 %v222, 17
        %v3069 = vpop.permute.xlu0 %3068
        %3070 = vrot.lane.b32.xlu0 %v230, 17
        %v3071 = vpop.permute.xlu0 %3070
        %3072 = vrot.lane.b32.xlu0 %v238, 17
        %v3073 = vpop.permute.xlu0 %3072
        %3074 = vrot.lane.b32.xlu0 %v237, 17
        %v3075 = vpop.permute.xlu0 %3074
        %3076 = vrot.lane.b32.xlu0 %v239, 17
        %v3077 = vpop.permute.xlu0 %3076
        %vm3078 = vcmask 138240
        %v3079 = vsel %vm3078, %v3063, %v3065
        %v3080 = vsel %vm3078, %v3065, %v3067
        %v3081 = vsel %vm3078, %v3067, %v3069
        %v3082 = vsel %vm3078, %v3069, %v3071
        %v3083 = vsel %vm3078, %v3071, %v3073
        %v3084 = vsel %vm3078, %v3073, %v3075
        %v3085 = vsel %vm3078, %v3075, %v3077
        %v3087 = vsel %vm264, %v3061, 0
        %v3090 = vsel %vm268, %v3079, 0
        %v3093 = vsel %vm268, %v3080, 0
        %v3096 = vsel %vm268, %v3081, 0
        %v3099 = vsel %vm268, %v3082, 0
        %v3102 = vsel %vm268, %v3083, 0
        %v3105 = vsel %vm268, %v3084, 0
        %v3108 = vsel %vm268, %v3085, 0
        %3110 = vmatprep.subr.bf16.mxu0 0
        %3111 = vmatpush1.bf16.msra.mxu0 0
        %3112 = vmatprep.subr.bf16.mxu0 0
        %3113 = vmatpush1.bf16.msra.mxu0 0
        %3114 = vmatprep.subr.bf16.mxu0 0
        %3115 = vmatpush1.bf16.msra.mxu0 0
        %3116 = vmatprep.subr.bf16.mxu0 0
        %3117 = vmatpush1.bf16.msra.mxu0 0
        %3118 = vmatprep.subr.bf16.mxu0 0
        %3119 = vmatpush1.bf16.msra.mxu0 0
        %3120 = vmatprep.subr.bf16.mxu0 0
        %3121 = vmatpush1.bf16.msra.mxu0 0
        %3122 = vmatprep.subr.bf16.mxu0 0
        %3123 = vmatpush1.bf16.msra.mxu0 0
        %3124 = vmatprep.subr.bf16.mxu0 %v3093
        %3125 = vmatpush1.bf16.msra.mxu0 %v3090
        %3126 = vmatprep.subr.bf16.mxu0 0
        %3127 = vmatpush2.bf16.msra.mxu0 0
        %3128 = vmatprep.subr.bf16.mxu0 0
        %3129 = vmatpush2.bf16.msra.mxu0 0
        %3130 = vmatprep.subr.bf16.mxu0 0
        %3131 = vmatpush2.bf16.msra.mxu0 0
        %3132 = vmatprep.subr.bf16.mxu0 0
        %3133 = vmatpush2.bf16.msra.mxu0 0
        %3134 = vmatprep.subr.bf16.mxu0 0
        %3135 = vmatpush2.bf16.msra.mxu0 0
        %3136 = vmatprep.subr.bf16.mxu0 0
        %3137 = vmatpush2.bf16.msra.mxu0 0
        %3138 = vmatprep.subr.bf16.mxu0 0
        %3139 = vmatpush2.bf16.msra.mxu0 0
        %3140 = vmatprep.subr.bf16.mxu0 0
        %3141 = vmatpush2.bf16.msra.mxu0 0
        %3142 = vmatprep.mubr.bf16.mxu0 0
        %3143 = vmatmul.mubr.bf16.gmra.mxu0 %v3087
        %v3144 = vpop.f32.mrf.mxu0
        %v3145 = vadd.f32 0.0, %v3144
        %v3146 = vpop.f32.mrf.mxu0
        %v3147 = vadd.f32 0.0, %v3146
        %v3148 = vpop.f32.mrf.mxu0
        %v3149 = vpop.f32.mrf.mxu0
        %3150 = vdwg.mxu0
        %3151 = vmatprep.subr.bf16.mxu0 0
        %3152 = vmatpush1.bf16.msra.mxu0 0
        %3153 = vmatprep.subr.bf16.mxu0 0
        %3154 = vmatpush1.bf16.msra.mxu0 0
        %3155 = vmatprep.subr.bf16.mxu0 0
        %3156 = vmatpush1.bf16.msra.mxu0 0
        %3157 = vmatprep.subr.bf16.mxu0 0
        %3158 = vmatpush1.bf16.msra.mxu0 0
        %3159 = vmatprep.subr.bf16.mxu0 0
        %3160 = vmatpush1.bf16.msra.mxu0 0
        %3161 = vmatprep.subr.bf16.mxu0 0
        %3162 = vmatpush1.bf16.msra.mxu0 0
        %3163 = vmatprep.subr.bf16.mxu0 0
        %3164 = vmatpush1.bf16.msra.mxu0 0
        %3165 = vmatprep.subr.bf16.mxu0 %v3099
        %3166 = vmatpush1.bf16.msra.mxu0 %v3096
        %3167 = vmatprep.subr.bf16.mxu0 0
        %3168 = vmatpush2.bf16.msra.mxu0 0
        %3169 = vmatprep.subr.bf16.mxu0 0
        %3170 = vmatpush2.bf16.msra.mxu0 0
        %3171 = vmatprep.subr.bf16.mxu0 0
        %3172 = vmatpush2.bf16.msra.mxu0 0
        %3173 = vmatprep.subr.bf16.mxu0 0
        %3174 = vmatpush2.bf16.msra.mxu0 0
        %3175 = vmatprep.subr.bf16.mxu0 0
        %3176 = vmatpush2.bf16.msra.mxu0 0
        %3177 = vmatprep.subr.bf16.mxu0 0
        %3178 = vmatpush2.bf16.msra.mxu0 0
        %3179 = vmatprep.subr.bf16.mxu0 0
        %3180 = vmatpush2.bf16.msra.mxu0 0
        %3181 = vmatprep.subr.bf16.mxu0 0
        %3182 = vmatpush2.bf16.msra.mxu0 0
        %3183 = vmatprep.mubr.bf16.mxu0 0
        %3184 = vmatmul.mubr.bf16.gmra.mxu0 %v3087
        %v3185 = vpop.f32.mrf.mxu0
        %v3186 = vadd.f32 0.0, %v3185
        %v3187 = vpop.f32.mrf.mxu0
        %v3188 = vadd.f32 0.0, %v3187
        %v3189 = vpop.f32.mrf.mxu0
        %v3190 = vpop.f32.mrf.mxu0
        %3191 = vdwg.mxu0
        %3192 = vmatprep.subr.bf16.mxu0 0
        %3193 = vmatpush1.bf16.msra.mxu0 0
        %3194 = vmatprep.subr.bf16.mxu0 0
        %3195 = vmatpush1.bf16.msra.mxu0 0
        %3196 = vmatprep.subr.bf16.mxu0 0
        %3197 = vmatpush1.bf16.msra.mxu0 0
        %3198 = vmatprep.subr.bf16.mxu0 0
        %3199 = vmatpush1.bf16.msra.mxu0 0
        %3200 = vmatprep.subr.bf16.mxu0 0
        %3201 = vmatpush1.bf16.msra.mxu0 0
        %3202 = vmatprep.subr.bf16.mxu0 0
        %3203 = vmatpush1.bf16.msra.mxu0 0
        %3204 = vmatprep.subr.bf16.mxu0 0
        %3205 = vmatpush1.bf16.msra.mxu0 0
        %3206 = vmatprep.subr.bf16.mxu0 %v3105
        %3207 = vmatpush1.bf16.msra.mxu0 %v3102
        %3208 = vmatprep.subr.bf16.mxu0 0
        %3209 = vmatpush2.bf16.msra.mxu0 0
        %3210 = vmatprep.subr.bf16.mxu0 0
        %3211 = vmatpush2.bf16.msra.mxu0 0
        %3212 = vmatprep.subr.bf16.mxu0 0
        %3213 = vmatpush2.bf16.msra.mxu0 0
        %3214 = vmatprep.subr.bf16.mxu0 0
        %3215 = vmatpush2.bf16.msra.mxu0 0
        %3216 = vmatprep.subr.bf16.mxu0 0
        %3217 = vmatpush2.bf16.msra.mxu0 0
        %3218 = vmatprep.subr.bf16.mxu0 0
        %3219 = vmatpush2.bf16.msra.mxu0 0
        %3220 = vmatprep.subr.bf16.mxu0 0
        %3221 = vmatpush2.bf16.msra.mxu0 0
        %3222 = vmatprep.subr.bf16.mxu0 0
        %3223 = vmatpush2.bf16.msra.mxu0 0
        %3224 = vmatprep.mubr.bf16.mxu0 0
        %3225 = vmatmul.mubr.bf16.gmra.mxu0 %v3087
        %v3226 = vpop.f32.mrf.mxu0
        %v3227 = vadd.f32 0.0, %v3226
        %v3228 = vpop.f32.mrf.mxu0
        %v3229 = vadd.f32 0.0, %v3228
        %v3230 = vpop.f32.mrf.mxu0
        %v3231 = vpop.f32.mrf.mxu0
        %3232 = vdwg.mxu0
        %3233 = vmatprep.subr.bf16.mxu0 0
        %3234 = vmatpush1.bf16.msra.mxu0 0
        %3235 = vmatprep.subr.bf16.mxu0 0
        %3236 = vmatpush1.bf16.msra.mxu0 0
        %3237 = vmatprep.subr.bf16.mxu0 0
        %3238 = vmatpush1.bf16.msra.mxu0 0
        %3239 = vmatprep.subr.bf16.mxu0 0
        %3240 = vmatpush1.bf16.msra.mxu0 0
        %3241 = vmatprep.subr.bf16.mxu0 0
        %3242 = vmatpush1.bf16.msra.mxu0 0
        %3243 = vmatprep.subr.bf16.mxu0 0
        %3244 = vmatpush1.bf16.msra.mxu0 0
        %3245 = vmatprep.subr.bf16.mxu0 0
        %3246 = vmatpush1.bf16.msra.mxu0 0
        %3247 = vmatprep.subr.bf16.mxu0 0
        %3248 = vmatpush1.bf16.msra.mxu0 %v3108
        %3249 = vmatprep.subr.bf16.mxu0 0
        %3250 = vmatpush2.bf16.msra.mxu0 0
        %3251 = vmatprep.subr.bf16.mxu0 0
        %3252 = vmatpush2.bf16.msra.mxu0 0
        %3253 = vmatprep.subr.bf16.mxu0 0
        %3254 = vmatpush2.bf16.msra.mxu0 0
        %3255 = vmatprep.subr.bf16.mxu0 0
        %3256 = vmatpush2.bf16.msra.mxu0 0
        %3257 = vmatprep.subr.bf16.mxu0 0
        %3258 = vmatpush2.bf16.msra.mxu0 0
        %3259 = vmatprep.subr.bf16.mxu0 0
        %3260 = vmatpush2.bf16.msra.mxu0 0
        %3261 = vmatprep.subr.bf16.mxu0 0
        %3262 = vmatpush2.bf16.msra.mxu0 0
        %3263 = vmatprep.subr.bf16.mxu0 0
        %3264 = vmatpush2.bf16.msra.mxu0 0
        %3265 = vmatprep.mubr.bf16.mxu0 0
        %3266 = vmatmul.mubr.bf16.gmra.mxu0 %v3087
        %v3267 = vpop.f32.mrf.mxu0
        %v3268 = vadd.f32 0.0, %v3267
        %v3269 = vpop.f32.mrf.mxu0
        %v3270 = vpop.f32.mrf.mxu0
        %v3271 = vpop.f32.mrf.mxu0
        %3272 = vdwg.mxu0
        %v3273 = vadd.f32 %v3053, %v3145
        %v3274 = vadd.f32 %v3054, %v3147
        %v3275 = vadd.f32 %v3055, %v3186
        %v3276 = vadd.f32 %v3056, %v3188
        %v3277 = vadd.f32 %v3057, %v3227
        %v3278 = vadd.f32 %v3058, %v3229
        %v3279 = vadd.f32 %v3059, %v3268
        %s3280 = scalar_lea.vmem %s1, 56
        %v3281 = vld [vmem:[%s3280] sm:$0xf]
        %3282 = vrot.lane.b32.xlu0 %v213, 16
        %v3283 = vpop.permute.xlu0 %3282
        %3284 = vrot.lane.b32.xlu0 %v221, 16
        %v3285 = vpop.permute.xlu0 %3284
        %3286 = vrot.lane.b32.xlu0 %v220, 16
        %v3287 = vpop.permute.xlu0 %3286
        %3288 = vrot.lane.b32.xlu0 %v222, 16
        %v3289 = vpop.permute.xlu0 %3288
        %3290 = vrot.lane.b32.xlu0 %v230, 16
        %v3291 = vpop.permute.xlu0 %3290
        %3292 = vrot.lane.b32.xlu0 %v238, 16
        %v3293 = vpop.permute.xlu0 %3292
        %3294 = vrot.lane.b32.xlu0 %v237, 16
        %v3295 = vpop.permute.xlu0 %3294
        %3296 = vrot.lane.b32.xlu0 %v239, 16
        %v3297 = vpop.permute.xlu0 %3296
        %vm3298 = vcmask 130048
        %v3299 = vsel %vm3298, %v3283, %v3285
        %v3300 = vsel %vm3298, %v3285, %v3287
        %v3301 = vsel %vm3298, %v3287, %v3289
        %v3302 = vsel %vm3298, %v3289, %v3291
        %v3303 = vsel %vm3298, %v3291, %v3293
        %v3304 = vsel %vm3298, %v3293, %v3295
        %v3305 = vsel %vm3298, %v3295, %v3297
        %v3307 = vsel %vm264, %v3281, 0
        %v3310 = vsel %vm268, %v3299, 0
        %v3313 = vsel %vm268, %v3300, 0
        %v3316 = vsel %vm268, %v3301, 0
        %v3319 = vsel %vm268, %v3302, 0
        %v3322 = vsel %vm268, %v3303, 0
        %v3325 = vsel %vm268, %v3304, 0
        %v3328 = vsel %vm268, %v3305, 0
        %3330 = vmatprep.subr.bf16.mxu0 0
        %3331 = vmatpush1.bf16.msra.mxu0 0
        %3332 = vmatprep.subr.bf16.mxu0 0
        %3333 = vmatpush1.bf16.msra.mxu0 0
        %3334 = vmatprep.subr.bf16.mxu0 0
        %3335 = vmatpush1.bf16.msra.mxu0 0
        %3336 = vmatprep.subr.bf16.mxu0 0
        %3337 = vmatpush1.bf16.msra.mxu0 0
        %3338 = vmatprep.subr.bf16.mxu0 0
        %3339 = vmatpush1.bf16.msra.mxu0 0
        %3340 = vmatprep.subr.bf16.mxu0 0
        %3341 = vmatpush1.bf16.msra.mxu0 0
        %3342 = vmatprep.subr.bf16.mxu0 0
        %3343 = vmatpush1.bf16.msra.mxu0 0
        %3344 = vmatprep.subr.bf16.mxu0 %v3313
        %3345 = vmatpush1.bf16.msra.mxu0 %v3310
        %3346 = vmatprep.subr.bf16.mxu0 0
        %3347 = vmatpush2.bf16.msra.mxu0 0
        %3348 = vmatprep.subr.bf16.mxu0 0
        %3349 = vmatpush2.bf16.msra.mxu0 0
        %3350 = vmatprep.subr.bf16.mxu0 0
        %3351 = vmatpush2.bf16.msra.mxu0 0
        %3352 = vmatprep.subr.bf16.mxu0 0
        %3353 = vmatpush2.bf16.msra.mxu0 0
        %3354 = vmatprep.subr.bf16.mxu0 0
        %3355 = vmatpush2.bf16.msra.mxu0 0
        %3356 = vmatprep.subr.bf16.mxu0 0
        %3357 = vmatpush2.bf16.msra.mxu0 0
        %3358 = vmatprep.subr.bf16.mxu0 0
        %3359 = vmatpush2.bf16.msra.mxu0 0
        %3360 = vmatprep.subr.bf16.mxu0 0
        %3361 = vmatpush2.bf16.msra.mxu0 0
        %3362 = vmatprep.mubr.bf16.mxu0 0
        %3363 = vmatmul.mubr.bf16.gmra.mxu0 %v3307
        %v3364 = vpop.f32.mrf.mxu0
        %v3365 = vadd.f32 0.0, %v3364
        %v3366 = vpop.f32.mrf.mxu0
        %v3367 = vadd.f32 0.0, %v3366
        %v3368 = vpop.f32.mrf.mxu0
        %v3369 = vpop.f32.mrf.mxu0
        %3370 = vdwg.mxu0
        %3371 = vmatprep.subr.bf16.mxu0 0
        %3372 = vmatpush1.bf16.msra.mxu0 0
        %3373 = vmatprep.subr.bf16.mxu0 0
        %3374 = vmatpush1.bf16.msra.mxu0 0
        %3375 = vmatprep.subr.bf16.mxu0 0
        %3376 = vmatpush1.bf16.msra.mxu0 0
        %3377 = vmatprep.subr.bf16.mxu0 0
        %3378 = vmatpush1.bf16.msra.mxu0 0
        %3379 = vmatprep.subr.bf16.mxu0 0
        %3380 = vmatpush1.bf16.msra.mxu0 0
        %3381 = vmatprep.subr.bf16.mxu0 0
        %3382 = vmatpush1.bf16.msra.mxu0 0
        %3383 = vmatprep.subr.bf16.mxu0 0
        %3384 = vmatpush1.bf16.msra.mxu0 0
        %3385 = vmatprep.subr.bf16.mxu0 %v3319
        %3386 = vmatpush1.bf16.msra.mxu0 %v3316
        %3387 = vmatprep.subr.bf16.mxu0 0
        %3388 = vmatpush2.bf16.msra.mxu0 0
        %3389 = vmatprep.subr.bf16.mxu0 0
        %3390 = vmatpush2.bf16.msra.mxu0 0
        %3391 = vmatprep.subr.bf16.mxu0 0
        %3392 = vmatpush2.bf16.msra.mxu0 0
        %3393 = vmatprep.subr.bf16.mxu0 0
        %3394 = vmatpush2.bf16.msra.mxu0 0
        %3395 = vmatprep.subr.bf16.mxu0 0
        %3396 = vmatpush2.bf16.msra.mxu0 0
        %3397 = vmatprep.subr.bf16.mxu0 0
        %3398 = vmatpush2.bf16.msra.mxu0 0
        %3399 = vmatprep.subr.bf16.mxu0 0
        %3400 = vmatpush2.bf16.msra.mxu0 0
        %3401 = vmatprep.subr.bf16.mxu0 0
        %3402 = vmatpush2.bf16.msra.mxu0 0
        %3403 = vmatprep.mubr.bf16.mxu0 0
        %3404 = vmatmul.mubr.bf16.gmra.mxu0 %v3307
        %v3405 = vpop.f32.mrf.mxu0
        %v3406 = vadd.f32 0.0, %v3405
        %v3407 = vpop.f32.mrf.mxu0
        %v3408 = vadd.f32 0.0, %v3407
        %v3409 = vpop.f32.mrf.mxu0
        %v3410 = vpop.f32.mrf.mxu0
        %3411 = vdwg.mxu0
        %3412 = vmatprep.subr.bf16.mxu0 0
        %3413 = vmatpush1.bf16.msra.mxu0 0
        %3414 = vmatprep.subr.bf16.mxu0 0
        %3415 = vmatpush1.bf16.msra.mxu0 0
        %3416 = vmatprep.subr.bf16.mxu0 0
        %3417 = vmatpush1.bf16.msra.mxu0 0
        %3418 = vmatprep.subr.bf16.mxu0 0
        %3419 = vmatpush1.bf16.msra.mxu0 0
        %3420 = vmatprep.subr.bf16.mxu0 0
        %3421 = vmatpush1.bf16.msra.mxu0 0
        %3422 = vmatprep.subr.bf16.mxu0 0
        %3423 = vmatpush1.bf16.msra.mxu0 0
        %3424 = vmatprep.subr.bf16.mxu0 0
        %3425 = vmatpush1.bf16.msra.mxu0 0
        %3426 = vmatprep.subr.bf16.mxu0 %v3325
        %3427 = vmatpush1.bf16.msra.mxu0 %v3322
        %3428 = vmatprep.subr.bf16.mxu0 0
        %3429 = vmatpush2.bf16.msra.mxu0 0
        %3430 = vmatprep.subr.bf16.mxu0 0
        %3431 = vmatpush2.bf16.msra.mxu0 0
        %3432 = vmatprep.subr.bf16.mxu0 0
        %3433 = vmatpush2.bf16.msra.mxu0 0
        %3434 = vmatprep.subr.bf16.mxu0 0
        %3435 = vmatpush2.bf16.msra.mxu0 0
        %3436 = vmatprep.subr.bf16.mxu0 0
        %3437 = vmatpush2.bf16.msra.mxu0 0
        %3438 = vmatprep.subr.bf16.mxu0 0
        %3439 = vmatpush2.bf16.msra.mxu0 0
        %3440 = vmatprep.subr.bf16.mxu0 0
        %3441 = vmatpush2.bf16.msra.mxu0 0
        %3442 = vmatprep.subr.bf16.mxu0 0
        %3443 = vmatpush2.bf16.msra.mxu0 0
        %3444 = vmatprep.mubr.bf16.mxu0 0
        %3445 = vmatmul.mubr.bf16.gmra.mxu0 %v3307
        %v3446 = vpop.f32.mrf.mxu0
        %v3447 = vadd.f32 0.0, %v3446
        %v3448 = vpop.f32.mrf.mxu0
        %v3449 = vadd.f32 0.0, %v3448
        %v3450 = vpop.f32.mrf.mxu0
        %v3451 = vpop.f32.mrf.mxu0
        %3452 = vdwg.mxu0
        %3453 = vmatprep.subr.bf16.mxu0 0
        %3454 = vmatpush1.bf16.msra.mxu0 0
        %3455 = vmatprep.subr.bf16.mxu0 0
        %3456 = vmatpush1.bf16.msra.mxu0 0
        %3457 = vmatprep.subr.bf16.mxu0 0
        %3458 = vmatpush1.bf16.msra.mxu0 0
        %3459 = vmatprep.subr.bf16.mxu0 0
        %3460 = vmatpush1.bf16.msra.mxu0 0
        %3461 = vmatprep.subr.bf16.mxu0 0
        %3462 = vmatpush1.bf16.msra.mxu0 0
        %3463 = vmatprep.subr.bf16.mxu0 0
        %3464 = vmatpush1.bf16.msra.mxu0 0
        %3465 = vmatprep.subr.bf16.mxu0 0
        %3466 = vmatpush1.bf16.msra.mxu0 0
        %3467 = vmatprep.subr.bf16.mxu0 0
        %3468 = vmatpush1.bf16.msra.mxu0 %v3328
        %3469 = vmatprep.subr.bf16.mxu0 0
        %3470 = vmatpush2.bf16.msra.mxu0 0
        %3471 = vmatprep.subr.bf16.mxu0 0
        %3472 = vmatpush2.bf16.msra.mxu0 0
        %3473 = vmatprep.subr.bf16.mxu0 0
        %3474 = vmatpush2.bf16.msra.mxu0 0
        %3475 = vmatprep.subr.bf16.mxu0 0
        %3476 = vmatpush2.bf16.msra.mxu0 0
        %3477 = vmatprep.subr.bf16.mxu0 0
        %3478 = vmatpush2.bf16.msra.mxu0 0
        %3479 = vmatprep.subr.bf16.mxu0 0
        %3480 = vmatpush2.bf16.msra.mxu0 0
        %3481 = vmatprep.subr.bf16.mxu0 0
        %3482 = vmatpush2.bf16.msra.mxu0 0
        %3483 = vmatprep.subr.bf16.mxu0 0
        %3484 = vmatpush2.bf16.msra.mxu0 0
        %3485 = vmatprep.mubr.bf16.mxu0 0
        %3486 = vmatmul.mubr.bf16.gmra.mxu0 %v3307
        %v3487 = vpop.f32.mrf.mxu0
        %v3488 = vadd.f32 0.0, %v3487
        %v3489 = vpop.f32.mrf.mxu0
        %v3490 = vpop.f32.mrf.mxu0
        %v3491 = vpop.f32.mrf.mxu0
        %3492 = vdwg.mxu0
        %v3493 = vadd.f32 %v3273, %v3365
        %v3494 = vadd.f32 %v3274, %v3367
        %v3495 = vadd.f32 %v3275, %v3406
        %v3496 = vadd.f32 %v3276, %v3408
        %v3497 = vadd.f32 %v3277, %v3447
        %v3498 = vadd.f32 %v3278, %v3449
        %v3499 = vadd.f32 %v3279, %v3488
        %s3500 = scalar_lea.vmem %s1, 60
        %v3501 = vld [vmem:[%s3500] sm:$0xf]
        %3502 = vrot.lane.b32.xlu0 %v213, 8
        %v3503 = vpop.permute.xlu0 %3502
        %3504 = vrot.lane.b32.xlu0 %v221, 8
        %v3505 = vpop.permute.xlu0 %3504
        %3506 = vrot.lane.b32.xlu0 %v220, 8
        %v3507 = vpop.permute.xlu0 %3506
        %3508 = vrot.lane.b32.xlu0 %v222, 8
        %v3509 = vpop.permute.xlu0 %3508
        %3510 = vrot.lane.b32.xlu0 %v230, 8
        %v3511 = vpop.permute.xlu0 %3510
        %3512 = vrot.lane.b32.xlu0 %v238, 8
        %v3513 = vpop.permute.xlu0 %3512
        %3514 = vrot.lane.b32.xlu0 %v237, 8
        %v3515 = vpop.permute.xlu0 %3514
        %3516 = vrot.lane.b32.xlu0 %v239, 8
        %v3517 = vpop.permute.xlu0 %3516
        %vm3518 = vcmask 64512
        %v3519 = vsel %vm3518, %v3503, %v3505
        %v3520 = vsel %vm3518, %v3505, %v3507
        %v3521 = vsel %vm3518, %v3507, %v3509
        %v3522 = vsel %vm3518, %v3509, %v3511
        %v3523 = vsel %vm3518, %v3511, %v3513
        %v3524 = vsel %vm3518, %v3513, %v3515
        %v3525 = vsel %vm3518, %v3515, %v3517
        %v3527 = vsel %vm264, %v3501, 0
        %v3530 = vsel %vm268, %v3519, 0
        %v3533 = vsel %vm268, %v3520, 0
        %v3536 = vsel %vm268, %v3521, 0
        %v3539 = vsel %vm268, %v3522, 0
        %v3542 = vsel %vm268, %v3523, 0
        %v3545 = vsel %vm268, %v3524, 0
        %v3548 = vsel %vm268, %v3525, 0
        %3550 = vmatprep.subr.bf16.mxu0 0
        %3551 = vmatpush1.bf16.msra.mxu0 0
        %3552 = vmatprep.subr.bf16.mxu0 0
        %3553 = vmatpush1.bf16.msra.mxu0 0
        %3554 = vmatprep.subr.bf16.mxu0 0
        %3555 = vmatpush1.bf16.msra.mxu0 0
        %3556 = vmatprep.subr.bf16.mxu0 0
        %3557 = vmatpush1.bf16.msra.mxu0 0
        %3558 = vmatprep.subr.bf16.mxu0 0
        %3559 = vmatpush1.bf16.msra.mxu0 0
        %3560 = vmatprep.subr.bf16.mxu0 0
        %3561 = vmatpush1.bf16.msra.mxu0 0
        %3562 = vmatprep.subr.bf16.mxu0 0
        %3563 = vmatpush1.bf16.msra.mxu0 0
        %3564 = vmatprep.subr.bf16.mxu0 %v3533
        %3565 = vmatpush1.bf16.msra.mxu0 %v3530
        %3566 = vmatprep.subr.bf16.mxu0 0
        %3567 = vmatpush2.bf16.msra.mxu0 0
        %3568 = vmatprep.subr.bf16.mxu0 0
        %3569 = vmatpush2.bf16.msra.mxu0 0
        %3570 = vmatprep.subr.bf16.mxu0 0
        %3571 = vmatpush2.bf16.msra.mxu0 0
        %3572 = vmatprep.subr.bf16.mxu0 0
        %3573 = vmatpush2.bf16.msra.mxu0 0
        %3574 = vmatprep.subr.bf16.mxu0 0
        %3575 = vmatpush2.bf16.msra.mxu0 0
        %3576 = vmatprep.subr.bf16.mxu0 0
        %3577 = vmatpush2.bf16.msra.mxu0 0
        %3578 = vmatprep.subr.bf16.mxu0 0
        %3579 = vmatpush2.bf16.msra.mxu0 0
        %3580 = vmatprep.subr.bf16.mxu0 0
        %3581 = vmatpush2.bf16.msra.mxu0 0
        %3582 = vmatprep.mubr.bf16.mxu0 0
        %3583 = vmatmul.mubr.bf16.gmra.mxu0 %v3527
        %v3584 = vpop.f32.mrf.mxu0
        %v3585 = vadd.f32 0.0, %v3584
        %v3586 = vpop.f32.mrf.mxu0
        %v3587 = vadd.f32 0.0, %v3586
        %v3588 = vpop.f32.mrf.mxu0
        %v3589 = vpop.f32.mrf.mxu0
        %3590 = vdwg.mxu0
        %3591 = vmatprep.subr.bf16.mxu0 0
        %3592 = vmatpush1.bf16.msra.mxu0 0
        %3593 = vmatprep.subr.bf16.mxu0 0
        %3594 = vmatpush1.bf16.msra.mxu0 0
        %3595 = vmatprep.subr.bf16.mxu0 0
        %3596 = vmatpush1.bf16.msra.mxu0 0
        %3597 = vmatprep.subr.bf16.mxu0 0
        %3598 = vmatpush1.bf16.msra.mxu0 0
        %3599 = vmatprep.subr.bf16.mxu0 0
        %3600 = vmatpush1.bf16.msra.mxu0 0
        %3601 = vmatprep.subr.bf16.mxu0 0
        %3602 = vmatpush1.bf16.msra.mxu0 0
        %3603 = vmatprep.subr.bf16.mxu0 0
        %3604 = vmatpush1.bf16.msra.mxu0 0
        %3605 = vmatprep.subr.bf16.mxu0 %v3539
        %3606 = vmatpush1.bf16.msra.mxu0 %v3536
        %3607 = vmatprep.subr.bf16.mxu0 0
        %3608 = vmatpush2.bf16.msra.mxu0 0
        %3609 = vmatprep.subr.bf16.mxu0 0
        %3610 = vmatpush2.bf16.msra.mxu0 0
        %3611 = vmatprep.subr.bf16.mxu0 0
        %3612 = vmatpush2.bf16.msra.mxu0 0
        %3613 = vmatprep.subr.bf16.mxu0 0
        %3614 = vmatpush2.bf16.msra.mxu0 0
        %3615 = vmatprep.subr.bf16.mxu0 0
        %3616 = vmatpush2.bf16.msra.mxu0 0
        %3617 = vmatprep.subr.bf16.mxu0 0
        %3618 = vmatpush2.bf16.msra.mxu0 0
        %3619 = vmatprep.subr.bf16.mxu0 0
        %3620 = vmatpush2.bf16.msra.mxu0 0
        %3621 = vmatprep.subr.bf16.mxu0 0
        %3622 = vmatpush2.bf16.msra.mxu0 0
        %3623 = vmatprep.mubr.bf16.mxu0 0
        %3624 = vmatmul.mubr.bf16.gmra.mxu0 %v3527
        %v3625 = vpop.f32.mrf.mxu0
        %v3626 = vadd.f32 0.0, %v3625
        %v3627 = vpop.f32.mrf.mxu0
        %v3628 = vadd.f32 0.0, %v3627
        %v3629 = vpop.f32.mrf.mxu0
        %v3630 = vpop.f32.mrf.mxu0
        %3631 = vdwg.mxu0
        %3632 = vmatprep.subr.bf16.mxu0 0
        %3633 = vmatpush1.bf16.msra.mxu0 0
        %3634 = vmatprep.subr.bf16.mxu0 0
        %3635 = vmatpush1.bf16.msra.mxu0 0
        %3636 = vmatprep.subr.bf16.mxu0 0
        %3637 = vmatpush1.bf16.msra.mxu0 0
        %3638 = vmatprep.subr.bf16.mxu0 0
        %3639 = vmatpush1.bf16.msra.mxu0 0
        %3640 = vmatprep.subr.bf16.mxu0 0
        %3641 = vmatpush1.bf16.msra.mxu0 0
        %3642 = vmatprep.subr.bf16.mxu0 0
        %3643 = vmatpush1.bf16.msra.mxu0 0
        %3644 = vmatprep.subr.bf16.mxu0 0
        %3645 = vmatpush1.bf16.msra.mxu0 0
        %3646 = vmatprep.subr.bf16.mxu0 %v3545
        %3647 = vmatpush1.bf16.msra.mxu0 %v3542
        %3648 = vmatprep.subr.bf16.mxu0 0
        %3649 = vmatpush2.bf16.msra.mxu0 0
        %3650 = vmatprep.subr.bf16.mxu0 0
        %3651 = vmatpush2.bf16.msra.mxu0 0
        %3652 = vmatprep.subr.bf16.mxu0 0
        %3653 = vmatpush2.bf16.msra.mxu0 0
        %3654 = vmatprep.subr.bf16.mxu0 0
        %3655 = vmatpush2.bf16.msra.mxu0 0
        %3656 = vmatprep.subr.bf16.mxu0 0
        %3657 = vmatpush2.bf16.msra.mxu0 0
        %3658 = vmatprep.subr.bf16.mxu0 0
        %3659 = vmatpush2.bf16.msra.mxu0 0
        %3660 = vmatprep.subr.bf16.mxu0 0
        %3661 = vmatpush2.bf16.msra.mxu0 0
        %3662 = vmatprep.subr.bf16.mxu0 0
        %3663 = vmatpush2.bf16.msra.mxu0 0
        %3664 = vmatprep.mubr.bf16.mxu0 0
        %3665 = vmatmul.mubr.bf16.gmra.mxu0 %v3527
        %v3666 = vpop.f32.mrf.mxu0
        %v3667 = vadd.f32 0.0, %v3666
        %v3668 = vpop.f32.mrf.mxu0
        %v3669 = vadd.f32 0.0, %v3668
        %v3670 = vpop.f32.mrf.mxu0
        %v3671 = vpop.f32.mrf.mxu0
        %3672 = vdwg.mxu0
        %3673 = vmatprep.subr.bf16.mxu0 0
        %3674 = vmatpush1.bf16.msra.mxu0 0
        %3675 = vmatprep.subr.bf16.mxu0 0
        %3676 = vmatpush1.bf16.msra.mxu0 0
        %3677 = vmatprep.subr.bf16.mxu0 0
        %3678 = vmatpush1.bf16.msra.mxu0 0
        %3679 = vmatprep.subr.bf16.mxu0 0
        %3680 = vmatpush1.bf16.msra.mxu0 0
        %3681 = vmatprep.subr.bf16.mxu0 0
        %3682 = vmatpush1.bf16.msra.mxu0 0
        %3683 = vmatprep.subr.bf16.mxu0 0
        %3684 = vmatpush1.bf16.msra.mxu0 0
        %3685 = vmatprep.subr.bf16.mxu0 0
        %3686 = vmatpush1.bf16.msra.mxu0 0
        %3687 = vmatprep.subr.bf16.mxu0 0
        %3688 = vmatpush1.bf16.msra.mxu0 %v3548
        %3689 = vmatprep.subr.bf16.mxu0 0
        %3690 = vmatpush2.bf16.msra.mxu0 0
        %3691 = vmatprep.subr.bf16.mxu0 0
        %3692 = vmatpush2.bf16.msra.mxu0 0
        %3693 = vmatprep.subr.bf16.mxu0 0
        %3694 = vmatpush2.bf16.msra.mxu0 0
        %3695 = vmatprep.subr.bf16.mxu0 0
        %3696 = vmatpush2.bf16.msra.mxu0 0
        %3697 = vmatprep.subr.bf16.mxu0 0
        %3698 = vmatpush2.bf16.msra.mxu0 0
        %3699 = vmatprep.subr.bf16.mxu0 0
        %3700 = vmatpush2.bf16.msra.mxu0 0
        %3701 = vmatprep.subr.bf16.mxu0 0
        %3702 = vmatpush2.bf16.msra.mxu0 0
        %3703 = vmatprep.subr.bf16.mxu0 0
        %3704 = vmatpush2.bf16.msra.mxu0 0
        %3705 = vmatprep.mubr.bf16.mxu0 0
        %3706 = vmatmul.mubr.bf16.gmra.mxu0 %v3527
        %v3707 = vpop.f32.mrf.mxu0
        %v3708 = vadd.f32 0.0, %v3707
        %v3709 = vpop.f32.mrf.mxu0
        %v3710 = vpop.f32.mrf.mxu0
        %v3711 = vpop.f32.mrf.mxu0
        %3712 = vdwg.mxu0
        %v3713 = vadd.f32 %v3493, %v3585
        %v3714 = vadd.f32 %v3494, %v3587
        %v3715 = vadd.f32 %v3495, %v3626
        %v3716 = vadd.f32 %v3496, %v3628
        %v3717 = vadd.f32 %v3497, %v3667
        %v3718 = vadd.f32 %v3498, %v3669
        %v3719 = vadd.f32 %v3499, %v3708
        %s3720 = scalar_lea.vmem %s1, 64
        %v3721 = vld [vmem:[%s3720] sm:$0xf]
        %3722 = vrot.lane.b32.xlu0 %v213, 7
        %v3723 = vpop.permute.xlu0 %3722
        %3724 = vrot.lane.b32.xlu0 %v221, 7
        %v3725 = vpop.permute.xlu0 %3724
        %3726 = vrot.lane.b32.xlu0 %v220, 7
        %v3727 = vpop.permute.xlu0 %3726
        %3728 = vrot.lane.b32.xlu0 %v222, 7
        %v3729 = vpop.permute.xlu0 %3728
        %3730 = vrot.lane.b32.xlu0 %v230, 7
        %v3731 = vpop.permute.xlu0 %3730
        %3732 = vrot.lane.b32.xlu0 %v238, 7
        %v3733 = vpop.permute.xlu0 %3732
        %3734 = vrot.lane.b32.xlu0 %v237, 7
        %v3735 = vpop.permute.xlu0 %3734
        %3736 = vrot.lane.b32.xlu0 %v239, 7
        %v3737 = vpop.permute.xlu0 %3736
        %vm3738 = vcmask 56320
        %v3739 = vsel %vm3738, %v3723, %v3725
        %v3740 = vsel %vm3738, %v3725, %v3727
        %v3741 = vsel %vm3738, %v3727, %v3729
        %v3742 = vsel %vm3738, %v3729, %v3731
        %v3743 = vsel %vm3738, %v3731, %v3733
        %v3744 = vsel %vm3738, %v3733, %v3735
        %v3745 = vsel %vm3738, %v3735, %v3737
        %v3747 = vsel %vm264, %v3721, 0
        %v3750 = vsel %vm268, %v3739, 0
        %v3753 = vsel %vm268, %v3740, 0
        %v3756 = vsel %vm268, %v3741, 0
        %v3759 = vsel %vm268, %v3742, 0
        %v3762 = vsel %vm268, %v3743, 0
        %v3765 = vsel %vm268, %v3744, 0
        %v3768 = vsel %vm268, %v3745, 0
        %3770 = vmatprep.subr.bf16.mxu0 0
        %3771 = vmatpush1.bf16.msra.mxu0 0
        %3772 = vmatprep.subr.bf16.mxu0 0
        %3773 = vmatpush1.bf16.msra.mxu0 0
        %3774 = vmatprep.subr.bf16.mxu0 0
        %3775 = vmatpush1.bf16.msra.mxu0 0
        %3776 = vmatprep.subr.bf16.mxu0 0
        %3777 = vmatpush1.bf16.msra.mxu0 0
        %3778 = vmatprep.subr.bf16.mxu0 0
        %3779 = vmatpush1.bf16.msra.mxu0 0
        %3780 = vmatprep.subr.bf16.mxu0 0
        %3781 = vmatpush1.bf16.msra.mxu0 0
        %3782 = vmatprep.subr.bf16.mxu0 0
        %3783 = vmatpush1.bf16.msra.mxu0 0
        %3784 = vmatprep.subr.bf16.mxu0 %v3753
        %3785 = vmatpush1.bf16.msra.mxu0 %v3750
        %3786 = vmatprep.subr.bf16.mxu0 0
        %3787 = vmatpush2.bf16.msra.mxu0 0
        %3788 = vmatprep.subr.bf16.mxu0 0
        %3789 = vmatpush2.bf16.msra.mxu0 0
        %3790 = vmatprep.subr.bf16.mxu0 0
        %3791 = vmatpush2.bf16.msra.mxu0 0
        %3792 = vmatprep.subr.bf16.mxu0 0
        %3793 = vmatpush2.bf16.msra.mxu0 0
        %3794 = vmatprep.subr.bf16.mxu0 0
        %3795 = vmatpush2.bf16.msra.mxu0 0
        %3796 = vmatprep.subr.bf16.mxu0 0
        %3797 = vmatpush2.bf16.msra.mxu0 0
        %3798 = vmatprep.subr.bf16.mxu0 0
        %3799 = vmatpush2.bf16.msra.mxu0 0
        %3800 = vmatprep.subr.bf16.mxu0 0
        %3801 = vmatpush2.bf16.msra.mxu0 0
        %3802 = vmatprep.mubr.bf16.mxu0 0
        %3803 = vmatmul.mubr.bf16.gmra.mxu0 %v3747
        %v3804 = vpop.f32.mrf.mxu0
        %v3805 = vadd.f32 0.0, %v3804
        %v3806 = vpop.f32.mrf.mxu0
        %v3807 = vadd.f32 0.0, %v3806
        %v3808 = vpop.f32.mrf.mxu0
        %v3809 = vpop.f32.mrf.mxu0
        %3810 = vdwg.mxu0
        %3811 = vmatprep.subr.bf16.mxu0 0
        %3812 = vmatpush1.bf16.msra.mxu0 0
        %3813 = vmatprep.subr.bf16.mxu0 0
        %3814 = vmatpush1.bf16.msra.mxu0 0
        %3815 = vmatprep.subr.bf16.mxu0 0
        %3816 = vmatpush1.bf16.msra.mxu0 0
        %3817 = vmatprep.subr.bf16.mxu0 0
        %3818 = vmatpush1.bf16.msra.mxu0 0
        %3819 = vmatprep.subr.bf16.mxu0 0
        %3820 = vmatpush1.bf16.msra.mxu0 0
        %3821 = vmatprep.subr.bf16.mxu0 0
        %3822 = vmatpush1.bf16.msra.mxu0 0
        %3823 = vmatprep.subr.bf16.mxu0 0
        %3824 = vmatpush1.bf16.msra.mxu0 0
        %3825 = vmatprep.subr.bf16.mxu0 %v3759
        %3826 = vmatpush1.bf16.msra.mxu0 %v3756
        %3827 = vmatprep.subr.bf16.mxu0 0
        %3828 = vmatpush2.bf16.msra.mxu0 0
        %3829 = vmatprep.subr.bf16.mxu0 0
        %3830 = vmatpush2.bf16.msra.mxu0 0
        %3831 = vmatprep.subr.bf16.mxu0 0
        %3832 = vmatpush2.bf16.msra.mxu0 0
        %3833 = vmatprep.subr.bf16.mxu0 0
        %3834 = vmatpush2.bf16.msra.mxu0 0
        %3835 = vmatprep.subr.bf16.mxu0 0
        %3836 = vmatpush2.bf16.msra.mxu0 0
        %3837 = vmatprep.subr.bf16.mxu0 0
        %3838 = vmatpush2.bf16.msra.mxu0 0
        %3839 = vmatprep.subr.bf16.mxu0 0
        %3840 = vmatpush2.bf16.msra.mxu0 0
        %3841 = vmatprep.subr.bf16.mxu0 0
        %3842 = vmatpush2.bf16.msra.mxu0 0
        %3843 = vmatprep.mubr.bf16.mxu0 0
        %3844 = vmatmul.mubr.bf16.gmra.mxu0 %v3747
        %v3845 = vpop.f32.mrf.mxu0
        %v3846 = vadd.f32 0.0, %v3845
        %v3847 = vpop.f32.mrf.mxu0
        %v3848 = vadd.f32 0.0, %v3847
        %v3849 = vpop.f32.mrf.mxu0
        %v3850 = vpop.f32.mrf.mxu0
        %3851 = vdwg.mxu0
        %3852 = vmatprep.subr.bf16.mxu0 0
        %3853 = vmatpush1.bf16.msra.mxu0 0
        %3854 = vmatprep.subr.bf16.mxu0 0
        %3855 = vmatpush1.bf16.msra.mxu0 0
        %3856 = vmatprep.subr.bf16.mxu0 0
        %3857 = vmatpush1.bf16.msra.mxu0 0
        %3858 = vmatprep.subr.bf16.mxu0 0
        %3859 = vmatpush1.bf16.msra.mxu0 0
        %3860 = vmatprep.subr.bf16.mxu0 0
        %3861 = vmatpush1.bf16.msra.mxu0 0
        %3862 = vmatprep.subr.bf16.mxu0 0
        %3863 = vmatpush1.bf16.msra.mxu0 0
        %3864 = vmatprep.subr.bf16.mxu0 0
        %3865 = vmatpush1.bf16.msra.mxu0 0
        %3866 = vmatprep.subr.bf16.mxu0 %v3765
        %3867 = vmatpush1.bf16.msra.mxu0 %v3762
        %3868 = vmatprep.subr.bf16.mxu0 0
        %3869 = vmatpush2.bf16.msra.mxu0 0
        %3870 = vmatprep.subr.bf16.mxu0 0
        %3871 = vmatpush2.bf16.msra.mxu0 0
        %3872 = vmatprep.subr.bf16.mxu0 0
        %3873 = vmatpush2.bf16.msra.mxu0 0
        %3874 = vmatprep.subr.bf16.mxu0 0
        %3875 = vmatpush2.bf16.msra.mxu0 0
        %3876 = vmatprep.subr.bf16.mxu0 0
        %3877 = vmatpush2.bf16.msra.mxu0 0
        %3878 = vmatprep.subr.bf16.mxu0 0
        %3879 = vmatpush2.bf16.msra.mxu0 0
        %3880 = vmatprep.subr.bf16.mxu0 0
        %3881 = vmatpush2.bf16.msra.mxu0 0
        %3882 = vmatprep.subr.bf16.mxu0 0
        %3883 = vmatpush2.bf16.msra.mxu0 0
        %3884 = vmatprep.mubr.bf16.mxu0 0
        %3885 = vmatmul.mubr.bf16.gmra.mxu0 %v3747
        %v3886 = vpop.f32.mrf.mxu0
        %v3887 = vadd.f32 0.0, %v3886
        %v3888 = vpop.f32.mrf.mxu0
        %v3889 = vadd.f32 0.0, %v3888
        %v3890 = vpop.f32.mrf.mxu0
        %v3891 = vpop.f32.mrf.mxu0
        %3892 = vdwg.mxu0
        %3893 = vmatprep.subr.bf16.mxu0 0
        %3894 = vmatpush1.bf16.msra.mxu0 0
        %3895 = vmatprep.subr.bf16.mxu0 0
        %3896 = vmatpush1.bf16.msra.mxu0 0
        %3897 = vmatprep.subr.bf16.mxu0 0
        %3898 = vmatpush1.bf16.msra.mxu0 0
        %3899 = vmatprep.subr.bf16.mxu0 0
        %3900 = vmatpush1.bf16.msra.mxu0 0
        %3901 = vmatprep.subr.bf16.mxu0 0
        %3902 = vmatpush1.bf16.msra.mxu0 0
        %3903 = vmatprep.subr.bf16.mxu0 0
        %3904 = vmatpush1.bf16.msra.mxu0 0
        %3905 = vmatprep.subr.bf16.mxu0 0
        %3906 = vmatpush1.bf16.msra.mxu0 0
        %3907 = vmatprep.subr.bf16.mxu0 0
        %3908 = vmatpush1.bf16.msra.mxu0 %v3768
        %3909 = vmatprep.subr.bf16.mxu0 0
        %3910 = vmatpush2.bf16.msra.mxu0 0
        %3911 = vmatprep.subr.bf16.mxu0 0
        %3912 = vmatpush2.bf16.msra.mxu0 0
        %3913 = vmatprep.subr.bf16.mxu0 0
        %3914 = vmatpush2.bf16.msra.mxu0 0
        %3915 = vmatprep.subr.bf16.mxu0 0
        %3916 = vmatpush2.bf16.msra.mxu0 0
        %3917 = vmatprep.subr.bf16.mxu0 0
        %3918 = vmatpush2.bf16.msra.mxu0 0
        %3919 = vmatprep.subr.bf16.mxu0 0
        %3920 = vmatpush2.bf16.msra.mxu0 0
        %3921 = vmatprep.subr.bf16.mxu0 0
        %3922 = vmatpush2.bf16.msra.mxu0 0
        %3923 = vmatprep.subr.bf16.mxu0 0
        %3924 = vmatpush2.bf16.msra.mxu0 0
        %3925 = vmatprep.mubr.bf16.mxu0 0
        %3926 = vmatmul.mubr.bf16.gmra.mxu0 %v3747
        %v3927 = vpop.f32.mrf.mxu0
        %v3928 = vadd.f32 0.0, %v3927
        %v3929 = vpop.f32.mrf.mxu0
        %v3930 = vpop.f32.mrf.mxu0
        %v3931 = vpop.f32.mrf.mxu0
        %3932 = vdwg.mxu0
        %v3933 = vadd.f32 %v3713, %v3805
        %v3934 = vadd.f32 %v3714, %v3807
        %v3935 = vadd.f32 %v3715, %v3846
        %v3936 = vadd.f32 %v3716, %v3848
        %v3937 = vadd.f32 %v3717, %v3887
        %v3938 = vadd.f32 %v3718, %v3889
        %v3939 = vadd.f32 %v3719, %v3928
        %s3940 = scalar_lea.vmem %s1, 68
        %v3941 = vld [vmem:[%s3940] sm:$0xf]
        %3942 = vrot.lane.b32.xlu0 %v213, 6
        %v3943 = vpop.permute.xlu0 %3942
        %3944 = vrot.lane.b32.xlu0 %v221, 6
        %v3945 = vpop.permute.xlu0 %3944
        %3946 = vrot.lane.b32.xlu0 %v220, 6
        %v3947 = vpop.permute.xlu0 %3946
        %3948 = vrot.lane.b32.xlu0 %v222, 6
        %v3949 = vpop.permute.xlu0 %3948
        %3950 = vrot.lane.b32.xlu0 %v230, 6
        %v3951 = vpop.permute.xlu0 %3950
        %3952 = vrot.lane.b32.xlu0 %v238, 6
        %v3953 = vpop.permute.xlu0 %3952
        %3954 = vrot.lane.b32.xlu0 %v237, 6
        %v3955 = vpop.permute.xlu0 %3954
        %3956 = vrot.lane.b32.xlu0 %v239, 6
        %v3957 = vpop.permute.xlu0 %3956
        %vm3958 = vcmask 48128
        %v3959 = vsel %vm3958, %v3943, %v3945
        %v3960 = vsel %vm3958, %v3945, %v3947
        %v3961 = vsel %vm3958, %v3947, %v3949
        %v3962 = vsel %vm3958, %v3949, %v3951
        %v3963 = vsel %vm3958, %v3951, %v3953
        %v3964 = vsel %vm3958, %v3953, %v3955
        %v3965 = vsel %vm3958, %v3955, %v3957
        %v3967 = vsel %vm264, %v3941, 0
        %v3970 = vsel %vm268, %v3959, 0
        %v3973 = vsel %vm268, %v3960, 0
        %v3976 = vsel %vm268, %v3961, 0
        %v3979 = vsel %vm268, %v3962, 0
        %v3982 = vsel %vm268, %v3963, 0
        %v3985 = vsel %vm268, %v3964, 0
        %v3988 = vsel %vm268, %v3965, 0
        %3990 = vmatprep.subr.bf16.mxu0 0
        %3991 = vmatpush1.bf16.msra.mxu0 0
        %3992 = vmatprep.subr.bf16.mxu0 0
        %3993 = vmatpush1.bf16.msra.mxu0 0
        %3994 = vmatprep.subr.bf16.mxu0 0
        %3995 = vmatpush1.bf16.msra.mxu0 0
        %3996 = vmatprep.subr.bf16.mxu0 0
        %3997 = vmatpush1.bf16.msra.mxu0 0
        %3998 = vmatprep.subr.bf16.mxu0 0
        %3999 = vmatpush1.bf16.msra.mxu0 0
        %4000 = vmatprep.subr.bf16.mxu0 0
        %4001 = vmatpush1.bf16.msra.mxu0 0
        %4002 = vmatprep.subr.bf16.mxu0 0
        %4003 = vmatpush1.bf16.msra.mxu0 0
        %4004 = vmatprep.subr.bf16.mxu0 %v3973
        %4005 = vmatpush1.bf16.msra.mxu0 %v3970
        %4006 = vmatprep.subr.bf16.mxu0 0
        %4007 = vmatpush2.bf16.msra.mxu0 0
        %4008 = vmatprep.subr.bf16.mxu0 0
        %4009 = vmatpush2.bf16.msra.mxu0 0
        %4010 = vmatprep.subr.bf16.mxu0 0
        %4011 = vmatpush2.bf16.msra.mxu0 0
        %4012 = vmatprep.subr.bf16.mxu0 0
        %4013 = vmatpush2.bf16.msra.mxu0 0
        %4014 = vmatprep.subr.bf16.mxu0 0
        %4015 = vmatpush2.bf16.msra.mxu0 0
        %4016 = vmatprep.subr.bf16.mxu0 0
        %4017 = vmatpush2.bf16.msra.mxu0 0
        %4018 = vmatprep.subr.bf16.mxu0 0
        %4019 = vmatpush2.bf16.msra.mxu0 0
        %4020 = vmatprep.subr.bf16.mxu0 0
        %4021 = vmatpush2.bf16.msra.mxu0 0
        %4022 = vmatprep.mubr.bf16.mxu0 0
        %4023 = vmatmul.mubr.bf16.gmra.mxu0 %v3967
        %v4024 = vpop.f32.mrf.mxu0
        %v4025 = vadd.f32 0.0, %v4024
        %v4026 = vpop.f32.mrf.mxu0
        %v4027 = vadd.f32 0.0, %v4026
        %v4028 = vpop.f32.mrf.mxu0
        %v4029 = vpop.f32.mrf.mxu0
        %4030 = vdwg.mxu0
        %4031 = vmatprep.subr.bf16.mxu0 0
        %4032 = vmatpush1.bf16.msra.mxu0 0
        %4033 = vmatprep.subr.bf16.mxu0 0
        %4034 = vmatpush1.bf16.msra.mxu0 0
        %4035 = vmatprep.subr.bf16.mxu0 0
        %4036 = vmatpush1.bf16.msra.mxu0 0
        %4037 = vmatprep.subr.bf16.mxu0 0
        %4038 = vmatpush1.bf16.msra.mxu0 0
        %4039 = vmatprep.subr.bf16.mxu0 0
        %4040 = vmatpush1.bf16.msra.mxu0 0
        %4041 = vmatprep.subr.bf16.mxu0 0
        %4042 = vmatpush1.bf16.msra.mxu0 0
        %4043 = vmatprep.subr.bf16.mxu0 0
        %4044 = vmatpush1.bf16.msra.mxu0 0
        %4045 = vmatprep.subr.bf16.mxu0 %v3979
        %4046 = vmatpush1.bf16.msra.mxu0 %v3976
        %4047 = vmatprep.subr.bf16.mxu0 0
        %4048 = vmatpush2.bf16.msra.mxu0 0
        %4049 = vmatprep.subr.bf16.mxu0 0
        %4050 = vmatpush2.bf16.msra.mxu0 0
        %4051 = vmatprep.subr.bf16.mxu0 0
        %4052 = vmatpush2.bf16.msra.mxu0 0
        %4053 = vmatprep.subr.bf16.mxu0 0
        %4054 = vmatpush2.bf16.msra.mxu0 0
        %4055 = vmatprep.subr.bf16.mxu0 0
        %4056 = vmatpush2.bf16.msra.mxu0 0
        %4057 = vmatprep.subr.bf16.mxu0 0
        %4058 = vmatpush2.bf16.msra.mxu0 0
        %4059 = vmatprep.subr.bf16.mxu0 0
        %4060 = vmatpush2.bf16.msra.mxu0 0
        %4061 = vmatprep.subr.bf16.mxu0 0
        %4062 = vmatpush2.bf16.msra.mxu0 0
        %4063 = vmatprep.mubr.bf16.mxu0 0
        %4064 = vmatmul.mubr.bf16.gmra.mxu0 %v3967
        %v4065 = vpop.f32.mrf.mxu0
        %v4066 = vadd.f32 0.0, %v4065
        %v4067 = vpop.f32.mrf.mxu0
        %v4068 = vadd.f32 0.0, %v4067
        %v4069 = vpop.f32.mrf.mxu0
        %v4070 = vpop.f32.mrf.mxu0
        %4071 = vdwg.mxu0
        %4072 = vmatprep.subr.bf16.mxu0 0
        %4073 = vmatpush1.bf16.msra.mxu0 0
        %4074 = vmatprep.subr.bf16.mxu0 0
        %4075 = vmatpush1.bf16.msra.mxu0 0
        %4076 = vmatprep.subr.bf16.mxu0 0
        %4077 = vmatpush1.bf16.msra.mxu0 0
        %4078 = vmatprep.subr.bf16.mxu0 0
        %4079 = vmatpush1.bf16.msra.mxu0 0
        %4080 = vmatprep.subr.bf16.mxu0 0
        %4081 = vmatpush1.bf16.msra.mxu0 0
        %4082 = vmatprep.subr.bf16.mxu0 0
        %4083 = vmatpush1.bf16.msra.mxu0 0
        %4084 = vmatprep.subr.bf16.mxu0 0
        %4085 = vmatpush1.bf16.msra.mxu0 0
        %4086 = vmatprep.subr.bf16.mxu0 %v3985
        %4087 = vmatpush1.bf16.msra.mxu0 %v3982
        %4088 = vmatprep.subr.bf16.mxu0 0
        %4089 = vmatpush2.bf16.msra.mxu0 0
        %4090 = vmatprep.subr.bf16.mxu0 0
        %4091 = vmatpush2.bf16.msra.mxu0 0
        %4092 = vmatprep.subr.bf16.mxu0 0
        %4093 = vmatpush2.bf16.msra.mxu0 0
        %4094 = vmatprep.subr.bf16.mxu0 0
        %4095 = vmatpush2.bf16.msra.mxu0 0
        %4096 = vmatprep.subr.bf16.mxu0 0
        %4097 = vmatpush2.bf16.msra.mxu0 0
        %4098 = vmatprep.subr.bf16.mxu0 0
        %4099 = vmatpush2.bf16.msra.mxu0 0
        %4100 = vmatprep.subr.bf16.mxu0 0
        %4101 = vmatpush2.bf16.msra.mxu0 0
        %4102 = vmatprep.subr.bf16.mxu0 0
        %4103 = vmatpush2.bf16.msra.mxu0 0
        %4104 = vmatprep.mubr.bf16.mxu0 0
        %4105 = vmatmul.mubr.bf16.gmra.mxu0 %v3967
        %v4106 = vpop.f32.mrf.mxu0
        %v4107 = vadd.f32 0.0, %v4106
        %v4108 = vpop.f32.mrf.mxu0
        %v4109 = vadd.f32 0.0, %v4108
        %v4110 = vpop.f32.mrf.mxu0
        %v4111 = vpop.f32.mrf.mxu0
        %4112 = vdwg.mxu0
        %4113 = vmatprep.subr.bf16.mxu0 0
        %4114 = vmatpush1.bf16.msra.mxu0 0
        %4115 = vmatprep.subr.bf16.mxu0 0
        %4116 = vmatpush1.bf16.msra.mxu0 0
        %4117 = vmatprep.subr.bf16.mxu0 0
        %4118 = vmatpush1.bf16.msra.mxu0 0
        %4119 = vmatprep.subr.bf16.mxu0 0
        %4120 = vmatpush1.bf16.msra.mxu0 0
        %4121 = vmatprep.subr.bf16.mxu0 0
        %4122 = vmatpush1.bf16.msra.mxu0 0
        %4123 = vmatprep.subr.bf16.mxu0 0
        %4124 = vmatpush1.bf16.msra.mxu0 0
        %4125 = vmatprep.subr.bf16.mxu0 0
        %4126 = vmatpush1.bf16.msra.mxu0 0
        %4127 = vmatprep.subr.bf16.mxu0 0
        %4128 = vmatpush1.bf16.msra.mxu0 %v3988
        %4129 = vmatprep.subr.bf16.mxu0 0
        %4130 = vmatpush2.bf16.msra.mxu0 0
        %4131 = vmatprep.subr.bf16.mxu0 0
        %4132 = vmatpush2.bf16.msra.mxu0 0
        %4133 = vmatprep.subr.bf16.mxu0 0
        %4134 = vmatpush2.bf16.msra.mxu0 0
        %4135 = vmatprep.subr.bf16.mxu0 0
        %4136 = vmatpush2.bf16.msra.mxu0 0
        %4137 = vmatprep.subr.bf16.mxu0 0
        %4138 = vmatpush2.bf16.msra.mxu0 0
        %4139 = vmatprep.subr.bf16.mxu0 0
        %4140 = vmatpush2.bf16.msra.mxu0 0
        %4141 = vmatprep.subr.bf16.mxu0 0
        %4142 = vmatpush2.bf16.msra.mxu0 0
        %4143 = vmatprep.subr.bf16.mxu0 0
        %4144 = vmatpush2.bf16.msra.mxu0 0
        %4145 = vmatprep.mubr.bf16.mxu0 0
        %4146 = vmatmul.mubr.bf16.gmra.mxu0 %v3967
        %v4147 = vpop.f32.mrf.mxu0
        %v4148 = vadd.f32 0.0, %v4147
        %v4149 = vpop.f32.mrf.mxu0
        %v4150 = vpop.f32.mrf.mxu0
        %v4151 = vpop.f32.mrf.mxu0
        %4152 = vdwg.mxu0
        %v4153 = vadd.f32 %v3933, %v4025
        %v4154 = vadd.f32 %v3934, %v4027
        %v4155 = vadd.f32 %v3935, %v4066
        %v4156 = vadd.f32 %v3936, %v4068
        %v4157 = vadd.f32 %v3937, %v4107
        %v4158 = vadd.f32 %v3938, %v4109
        %v4159 = vadd.f32 %v3939, %v4148
        %s4160 = scalar_lea.vmem %s1, 72
        %v4161 = vld [vmem:[%s4160] sm:$0xf]
        %v4164 = vunpack.c.l.s4 1983009808
        %v4165 = vunpack.c.0.s8 %v4164
        %v4166 = vlaneseq
        %v4167 = vshrl.u32 %v4166, 7
        %v4168 = vsub.s32 %v4165, %v4167
        %v4169 = vrot.slane %v200, %v4168
        %4170 = vrot.lane.b32.xlu0 %v221, 56
        %v4171 = vpop.permute.xlu0 %4170
        %4172 = vrot.lane.b32.xlu0 %v220, 56
        %v4173 = vpop.permute.xlu0 %4172
        %4174 = vrot.lane.b32.xlu0 %v222, 56
        %v4175 = vpop.permute.xlu0 %4174
        %4176 = vrot.lane.b32.xlu0 %v230, 56
        %v4177 = vpop.permute.xlu0 %4176
        %4178 = vrot.lane.b32.xlu0 %v238, 56
        %v4179 = vpop.permute.xlu0 %4178
        %4180 = vrot.lane.b32.xlu0 %v237, 56
        %v4181 = vpop.permute.xlu0 %4180
        %4182 = vrot.lane.b32.xlu0 %v239, 56
        %v4183 = vpop.permute.xlu0 %4182
        %4184 = vrot.lane.b32.xlu0 %v4169, 56
        %v4185 = vpop.permute.xlu0 %4184
        %vm4186 = vcmask 457728
        %v4187 = vsel %vm4186, %v4171, %v4173
        %v4188 = vsel %vm4186, %v4173, %v4175
        %v4189 = vsel %vm4186, %v4175, %v4177
        %v4190 = vsel %vm4186, %v4177, %v4179
        %v4191 = vsel %vm4186, %v4179, %v4181
        %v4192 = vsel %vm4186, %v4181, %v4183
        %v4193 = vsel %vm4186, %v4183, %v4185
        %v4195 = vsel %vm264, %v4161, 0
        %v4198 = vsel %vm268, %v4187, 0
        %v4201 = vsel %vm268, %v4188, 0
        %v4204 = vsel %vm268, %v4189, 0
        %v4207 = vsel %vm268, %v4190, 0
        %v4210 = vsel %vm268, %v4191, 0
        %v4213 = vsel %vm268, %v4192, 0
        %v4216 = vsel %vm268, %v4193, 0
        %4218 = vmatprep.subr.bf16.mxu0 0
        %4219 = vmatpush1.bf16.msra.mxu0 0
        %4220 = vmatprep.subr.bf16.mxu0 0
        %4221 = vmatpush1.bf16.msra.mxu0 0
        %4222 = vmatprep.subr.bf16.mxu0 0
        %4223 = vmatpush1.bf16.msra.mxu0 0
        %4224 = vmatprep.subr.bf16.mxu0 0
        %4225 = vmatpush1.bf16.msra.mxu0 0
        %4226 = vmatprep.subr.bf16.mxu0 0
        %4227 = vmatpush1.bf16.msra.mxu0 0
        %4228 = vmatprep.subr.bf16.mxu0 0
        %4229 = vmatpush1.bf16.msra.mxu0 0
        %4230 = vmatprep.subr.bf16.mxu0 0
        %4231 = vmatpush1.bf16.msra.mxu0 0
        %4232 = vmatprep.subr.bf16.mxu0 %v4201
        %4233 = vmatpush1.bf16.msra.mxu0 %v4198
        %4234 = vmatprep.subr.bf16.mxu0 0
        %4235 = vmatpush2.bf16.msra.mxu0 0
        %4236 = vmatprep.subr.bf16.mxu0 0
        %4237 = vmatpush2.bf16.msra.mxu0 0
        %4238 = vmatprep.subr.bf16.mxu0 0
        %4239 = vmatpush2.bf16.msra.mxu0 0
        %4240 = vmatprep.subr.bf16.mxu0 0
        %4241 = vmatpush2.bf16.msra.mxu0 0
        %4242 = vmatprep.subr.bf16.mxu0 0
        %4243 = vmatpush2.bf16.msra.mxu0 0
        %4244 = vmatprep.subr.bf16.mxu0 0
        %4245 = vmatpush2.bf16.msra.mxu0 0
        %4246 = vmatprep.subr.bf16.mxu0 0
        %4247 = vmatpush2.bf16.msra.mxu0 0
        %4248 = vmatprep.subr.bf16.mxu0 0
        %4249 = vmatpush2.bf16.msra.mxu0 0
        %4250 = vmatprep.mubr.bf16.mxu0 0
        %4251 = vmatmul.mubr.bf16.gmra.mxu0 %v4195
        %v4252 = vpop.f32.mrf.mxu0
        %v4253 = vadd.f32 0.0, %v4252
        %v4254 = vpop.f32.mrf.mxu0
        %v4255 = vadd.f32 0.0, %v4254
        %v4256 = vpop.f32.mrf.mxu0
        %v4257 = vpop.f32.mrf.mxu0
        %4258 = vdwg.mxu0
        %4259 = vmatprep.subr.bf16.mxu0 0
        %4260 = vmatpush1.bf16.msra.mxu0 0
        %4261 = vmatprep.subr.bf16.mxu0 0
        %4262 = vmatpush1.bf16.msra.mxu0 0
        %4263 = vmatprep.subr.bf16.mxu0 0
        %4264 = vmatpush1.bf16.msra.mxu0 0
        %4265 = vmatprep.subr.bf16.mxu0 0
        %4266 = vmatpush1.bf16.msra.mxu0 0
        %4267 = vmatprep.subr.bf16.mxu0 0
        %4268 = vmatpush1.bf16.msra.mxu0 0
        %4269 = vmatprep.subr.bf16.mxu0 0
        %4270 = vmatpush1.bf16.msra.mxu0 0
        %4271 = vmatprep.subr.bf16.mxu0 0
        %4272 = vmatpush1.bf16.msra.mxu0 0
        %4273 = vmatprep.subr.bf16.mxu0 %v4207
        %4274 = vmatpush1.bf16.msra.mxu0 %v4204
        %4275 = vmatprep.subr.bf16.mxu0 0
        %4276 = vmatpush2.bf16.msra.mxu0 0
        %4277 = vmatprep.subr.bf16.mxu0 0
        %4278 = vmatpush2.bf16.msra.mxu0 0
        %4279 = vmatprep.subr.bf16.mxu0 0
        %4280 = vmatpush2.bf16.msra.mxu0 0
        %4281 = vmatprep.subr.bf16.mxu0 0
        %4282 = vmatpush2.bf16.msra.mxu0 0
        %4283 = vmatprep.subr.bf16.mxu0 0
        %4284 = vmatpush2.bf16.msra.mxu0 0
        %4285 = vmatprep.subr.bf16.mxu0 0
        %4286 = vmatpush2.bf16.msra.mxu0 0
        %4287 = vmatprep.subr.bf16.mxu0 0
        %4288 = vmatpush2.bf16.msra.mxu0 0
        %4289 = vmatprep.subr.bf16.mxu0 0
        %4290 = vmatpush2.bf16.msra.mxu0 0
        %4291 = vmatprep.mubr.bf16.mxu0 0
        %4292 = vmatmul.mubr.bf16.gmra.mxu0 %v4195
        %v4293 = vpop.f32.mrf.mxu0
        %v4294 = vadd.f32 0.0, %v4293
        %v4295 = vpop.f32.mrf.mxu0
        %v4296 = vadd.f32 0.0, %v4295
        %v4297 = vpop.f32.mrf.mxu0
        %v4298 = vpop.f32.mrf.mxu0
        %4299 = vdwg.mxu0
        %4300 = vmatprep.subr.bf16.mxu0 0
        %4301 = vmatpush1.bf16.msra.mxu0 0
        %4302 = vmatprep.subr.bf16.mxu0 0
        %4303 = vmatpush1.bf16.msra.mxu0 0
        %4304 = vmatprep.subr.bf16.mxu0 0
        %4305 = vmatpush1.bf16.msra.mxu0 0
        %4306 = vmatprep.subr.bf16.mxu0 0
        %4307 = vmatpush1.bf16.msra.mxu0 0
        %4308 = vmatprep.subr.bf16.mxu0 0
        %4309 = vmatpush1.bf16.msra.mxu0 0
        %4310 = vmatprep.subr.bf16.mxu0 0
        %4311 = vmatpush1.bf16.msra.mxu0 0
        %4312 = vmatprep.subr.bf16.mxu0 0
        %4313 = vmatpush1.bf16.msra.mxu0 0
        %4314 = vmatprep.subr.bf16.mxu0 %v4213
        %4315 = vmatpush1.bf16.msra.mxu0 %v4210
        %4316 = vmatprep.subr.bf16.mxu0 0
        %4317 = vmatpush2.bf16.msra.mxu0 0
        %4318 = vmatprep.subr.bf16.mxu0 0
        %4319 = vmatpush2.bf16.msra.mxu0 0
        %4320 = vmatprep.subr.bf16.mxu0 0
        %4321 = vmatpush2.bf16.msra.mxu0 0
        %4322 = vmatprep.subr.bf16.mxu0 0
        %4323 = vmatpush2.bf16.msra.mxu0 0
        %4324 = vmatprep.subr.bf16.mxu0 0
        %4325 = vmatpush2.bf16.msra.mxu0 0
        %4326 = vmatprep.subr.bf16.mxu0 0
        %4327 = vmatpush2.bf16.msra.mxu0 0
        %4328 = vmatprep.subr.bf16.mxu0 0
        %4329 = vmatpush2.bf16.msra.mxu0 0
        %4330 = vmatprep.subr.bf16.mxu0 0
        %4331 = vmatpush2.bf16.msra.mxu0 0
        %4332 = vmatprep.mubr.bf16.mxu0 0
        %4333 = vmatmul.mubr.bf16.gmra.mxu0 %v4195
        %v4334 = vpop.f32.mrf.mxu0
        %v4335 = vadd.f32 0.0, %v4334
        %v4336 = vpop.f32.mrf.mxu0
        %v4337 = vadd.f32 0.0, %v4336
        %v4338 = vpop.f32.mrf.mxu0
        %v4339 = vpop.f32.mrf.mxu0
        %4340 = vdwg.mxu0
        %4341 = vmatprep.subr.bf16.mxu0 0
        %4342 = vmatpush1.bf16.msra.mxu0 0
        %4343 = vmatprep.subr.bf16.mxu0 0
        %4344 = vmatpush1.bf16.msra.mxu0 0
        %4345 = vmatprep.subr.bf16.mxu0 0
        %4346 = vmatpush1.bf16.msra.mxu0 0
        %4347 = vmatprep.subr.bf16.mxu0 0
        %4348 = vmatpush1.bf16.msra.mxu0 0
        %4349 = vmatprep.subr.bf16.mxu0 0
        %4350 = vmatpush1.bf16.msra.mxu0 0
        %4351 = vmatprep.subr.bf16.mxu0 0
        %4352 = vmatpush1.bf16.msra.mxu0 0
        %4353 = vmatprep.subr.bf16.mxu0 0
        %4354 = vmatpush1.bf16.msra.mxu0 0
        %4355 = vmatprep.subr.bf16.mxu0 0
        %4356 = vmatpush1.bf16.msra.mxu0 %v4216
        %4357 = vmatprep.subr.bf16.mxu0 0
        %4358 = vmatpush2.bf16.msra.mxu0 0
        %4359 = vmatprep.subr.bf16.mxu0 0
        %4360 = vmatpush2.bf16.msra.mxu0 0
        %4361 = vmatprep.subr.bf16.mxu0 0
        %4362 = vmatpush2.bf16.msra.mxu0 0
        %4363 = vmatprep.subr.bf16.mxu0 0
        %4364 = vmatpush2.bf16.msra.mxu0 0
        %4365 = vmatprep.subr.bf16.mxu0 0
        %4366 = vmatpush2.bf16.msra.mxu0 0
        %4367 = vmatprep.subr.bf16.mxu0 0
        %4368 = vmatpush2.bf16.msra.mxu0 0
        %4369 = vmatprep.subr.bf16.mxu0 0
        %4370 = vmatpush2.bf16.msra.mxu0 0
        %4371 = vmatprep.subr.bf16.mxu0 0
        %4372 = vmatpush2.bf16.msra.mxu0 0
        %4373 = vmatprep.mubr.bf16.mxu0 0
        %4374 = vmatmul.mubr.bf16.gmra.mxu0 %v4195
        %v4375 = vpop.f32.mrf.mxu0
        %v4376 = vadd.f32 0.0, %v4375
        %v4377 = vpop.f32.mrf.mxu0
        %v4378 = vpop.f32.mrf.mxu0
        %v4379 = vpop.f32.mrf.mxu0
        %4380 = vdwg.mxu0
        %v4381 = vadd.f32 %v4153, %v4253
        %v4382 = vadd.f32 %v4154, %v4255
        %v4383 = vadd.f32 %v4155, %v4294
        %v4384 = vadd.f32 %v4156, %v4296
        %v4385 = vadd.f32 %v4157, %v4335
        %v4386 = vadd.f32 %v4158, %v4337
        %v4387 = vadd.f32 %v4159, %v4376
        %s4388 = scalar_lea.vmem %s1, 76
        %v4389 = vld [vmem:[%s4388] sm:$0xf]
        %4390 = vrot.lane.b32.xlu0 %v221, 55
        %v4391 = vpop.permute.xlu0 %4390
        %4392 = vrot.lane.b32.xlu0 %v220, 55
        %v4393 = vpop.permute.xlu0 %4392
        %4394 = vrot.lane.b32.xlu0 %v222, 55
        %v4395 = vpop.permute.xlu0 %4394
        %4396 = vrot.lane.b32.xlu0 %v230, 55
        %v4397 = vpop.permute.xlu0 %4396
        %4398 = vrot.lane.b32.xlu0 %v238, 55
        %v4399 = vpop.permute.xlu0 %4398
        %4400 = vrot.lane.b32.xlu0 %v237, 55
        %v4401 = vpop.permute.xlu0 %4400
        %4402 = vrot.lane.b32.xlu0 %v239, 55
        %v4403 = vpop.permute.xlu0 %4402
        %4404 = vrot.lane.b32.xlu0 %v4169, 55
        %v4405 = vpop.permute.xlu0 %4404
        %vm4406 = vcmask 449536
        %v4407 = vsel %vm4406, %v4391, %v4393
        %v4408 = vsel %vm4406, %v4393, %v4395
        %v4409 = vsel %vm4406, %v4395, %v4397
        %v4410 = vsel %vm4406, %v4397, %v4399
        %v4411 = vsel %vm4406, %v4399, %v4401
        %v4412 = vsel %vm4406, %v4401, %v4403
        %v4413 = vsel %vm4406, %v4403, %v4405
        %v4415 = vsel %vm264, %v4389, 0
        %v4418 = vsel %vm268, %v4407, 0
        %v4421 = vsel %vm268, %v4408, 0
        %v4424 = vsel %vm268, %v4409, 0
        %v4427 = vsel %vm268, %v4410, 0
        %v4430 = vsel %vm268, %v4411, 0
        %v4433 = vsel %vm268, %v4412, 0
        %v4436 = vsel %vm268, %v4413, 0
        %4438 = vmatprep.subr.bf16.mxu0 0
        %4439 = vmatpush1.bf16.msra.mxu0 0
        %4440 = vmatprep.subr.bf16.mxu0 0
        %4441 = vmatpush1.bf16.msra.mxu0 0
        %4442 = vmatprep.subr.bf16.mxu0 0
        %4443 = vmatpush1.bf16.msra.mxu0 0
        %4444 = vmatprep.subr.bf16.mxu0 0
        %4445 = vmatpush1.bf16.msra.mxu0 0
        %4446 = vmatprep.subr.bf16.mxu0 0
        %4447 = vmatpush1.bf16.msra.mxu0 0
        %4448 = vmatprep.subr.bf16.mxu0 0
        %4449 = vmatpush1.bf16.msra.mxu0 0
        %4450 = vmatprep.subr.bf16.mxu0 0
        %4451 = vmatpush1.bf16.msra.mxu0 0
        %4452 = vmatprep.subr.bf16.mxu0 %v4421
        %4453 = vmatpush1.bf16.msra.mxu0 %v4418
        %4454 = vmatprep.subr.bf16.mxu0 0
        %4455 = vmatpush2.bf16.msra.mxu0 0
        %4456 = vmatprep.subr.bf16.mxu0 0
        %4457 = vmatpush2.bf16.msra.mxu0 0
        %4458 = vmatprep.subr.bf16.mxu0 0
        %4459 = vmatpush2.bf16.msra.mxu0 0
        %4460 = vmatprep.subr.bf16.mxu0 0
        %4461 = vmatpush2.bf16.msra.mxu0 0
        %4462 = vmatprep.subr.bf16.mxu0 0
        %4463 = vmatpush2.bf16.msra.mxu0 0
        %4464 = vmatprep.subr.bf16.mxu0 0
        %4465 = vmatpush2.bf16.msra.mxu0 0
        %4466 = vmatprep.subr.bf16.mxu0 0
        %4467 = vmatpush2.bf16.msra.mxu0 0
        %4468 = vmatprep.subr.bf16.mxu0 0
        %4469 = vmatpush2.bf16.msra.mxu0 0
        %4470 = vmatprep.mubr.bf16.mxu0 0
        %4471 = vmatmul.mubr.bf16.gmra.mxu0 %v4415
        %v4472 = vpop.f32.mrf.mxu0
        %v4473 = vadd.f32 0.0, %v4472
        %v4474 = vpop.f32.mrf.mxu0
        %v4475 = vadd.f32 0.0, %v4474
        %v4476 = vpop.f32.mrf.mxu0
        %v4477 = vpop.f32.mrf.mxu0
        %4478 = vdwg.mxu0
        %4479 = vmatprep.subr.bf16.mxu0 0
        %4480 = vmatpush1.bf16.msra.mxu0 0
        %4481 = vmatprep.subr.bf16.mxu0 0
        %4482 = vmatpush1.bf16.msra.mxu0 0
        %4483 = vmatprep.subr.bf16.mxu0 0
        %4484 = vmatpush1.bf16.msra.mxu0 0
        %4485 = vmatprep.subr.bf16.mxu0 0
        %4486 = vmatpush1.bf16.msra.mxu0 0
        %4487 = vmatprep.subr.bf16.mxu0 0
        %4488 = vmatpush1.bf16.msra.mxu0 0
        %4489 = vmatprep.subr.bf16.mxu0 0
        %4490 = vmatpush1.bf16.msra.mxu0 0
        %4491 = vmatprep.subr.bf16.mxu0 0
        %4492 = vmatpush1.bf16.msra.mxu0 0
        %4493 = vmatprep.subr.bf16.mxu0 %v4427
        %4494 = vmatpush1.bf16.msra.mxu0 %v4424
        %4495 = vmatprep.subr.bf16.mxu0 0
        %4496 = vmatpush2.bf16.msra.mxu0 0
        %4497 = vmatprep.subr.bf16.mxu0 0
        %4498 = vmatpush2.bf16.msra.mxu0 0
        %4499 = vmatprep.subr.bf16.mxu0 0
        %4500 = vmatpush2.bf16.msra.mxu0 0
        %4501 = vmatprep.subr.bf16.mxu0 0
        %4502 = vmatpush2.bf16.msra.mxu0 0
        %4503 = vmatprep.subr.bf16.mxu0 0
        %4504 = vmatpush2.bf16.msra.mxu0 0
        %4505 = vmatprep.subr.bf16.mxu0 0
        %4506 = vmatpush2.bf16.msra.mxu0 0
        %4507 = vmatprep.subr.bf16.mxu0 0
        %4508 = vmatpush2.bf16.msra.mxu0 0
        %4509 = vmatprep.subr.bf16.mxu0 0
        %4510 = vmatpush2.bf16.msra.mxu0 0
        %4511 = vmatprep.mubr.bf16.mxu0 0
        %4512 = vmatmul.mubr.bf16.gmra.mxu0 %v4415
        %v4513 = vpop.f32.mrf.mxu0
        %v4514 = vadd.f32 0.0, %v4513
        %v4515 = vpop.f32.mrf.mxu0
        %v4516 = vadd.f32 0.0, %v4515
        %v4517 = vpop.f32.mrf.mxu0
        %v4518 = vpop.f32.mrf.mxu0
        %4519 = vdwg.mxu0
        %4520 = vmatprep.subr.bf16.mxu0 0
        %4521 = vmatpush1.bf16.msra.mxu0 0
        %4522 = vmatprep.subr.bf16.mxu0 0
        %4523 = vmatpush1.bf16.msra.mxu0 0
        %4524 = vmatprep.subr.bf16.mxu0 0
        %4525 = vmatpush1.bf16.msra.mxu0 0
        %4526 = vmatprep.subr.bf16.mxu0 0
        %4527 = vmatpush1.bf16.msra.mxu0 0
        %4528 = vmatprep.subr.bf16.mxu0 0
        %4529 = vmatpush1.bf16.msra.mxu0 0
        %4530 = vmatprep.subr.bf16.mxu0 0
        %4531 = vmatpush1.bf16.msra.mxu0 0
        %4532 = vmatprep.subr.bf16.mxu0 0
        %4533 = vmatpush1.bf16.msra.mxu0 0
        %4534 = vmatprep.subr.bf16.mxu0 %v4433
        %4535 = vmatpush1.bf16.msra.mxu0 %v4430
        %4536 = vmatprep.subr.bf16.mxu0 0
        %4537 = vmatpush2.bf16.msra.mxu0 0
        %4538 = vmatprep.subr.bf16.mxu0 0
        %4539 = vmatpush2.bf16.msra.mxu0 0
        %4540 = vmatprep.subr.bf16.mxu0 0
        %4541 = vmatpush2.bf16.msra.mxu0 0
        %4542 = vmatprep.subr.bf16.mxu0 0
        %4543 = vmatpush2.bf16.msra.mxu0 0
        %4544 = vmatprep.subr.bf16.mxu0 0
        %4545 = vmatpush2.bf16.msra.mxu0 0
        %4546 = vmatprep.subr.bf16.mxu0 0
        %4547 = vmatpush2.bf16.msra.mxu0 0
        %4548 = vmatprep.subr.bf16.mxu0 0
        %4549 = vmatpush2.bf16.msra.mxu0 0
        %4550 = vmatprep.subr.bf16.mxu0 0
        %4551 = vmatpush2.bf16.msra.mxu0 0
        %4552 = vmatprep.mubr.bf16.mxu0 0
        %4553 = vmatmul.mubr.bf16.gmra.mxu0 %v4415
        %v4554 = vpop.f32.mrf.mxu0
        %v4555 = vadd.f32 0.0, %v4554
        %v4556 = vpop.f32.mrf.mxu0
        %v4557 = vadd.f32 0.0, %v4556
        %v4558 = vpop.f32.mrf.mxu0
        %v4559 = vpop.f32.mrf.mxu0
        %4560 = vdwg.mxu0
        %4561 = vmatprep.subr.bf16.mxu0 0
        %4562 = vmatpush1.bf16.msra.mxu0 0
        %4563 = vmatprep.subr.bf16.mxu0 0
        %4564 = vmatpush1.bf16.msra.mxu0 0
        %4565 = vmatprep.subr.bf16.mxu0 0
        %4566 = vmatpush1.bf16.msra.mxu0 0
        %4567 = vmatprep.subr.bf16.mxu0 0
        %4568 = vmatpush1.bf16.msra.mxu0 0
        %4569 = vmatprep.subr.bf16.mxu0 0
        %4570 = vmatpush1.bf16.msra.mxu0 0
        %4571 = vmatprep.subr.bf16.mxu0 0
        %4572 = vmatpush1.bf16.msra.mxu0 0
        %4573 = vmatprep.subr.bf16.mxu0 0
        %4574 = vmatpush1.bf16.msra.mxu0 0
        %4575 = vmatprep.subr.bf16.mxu0 0
        %4576 = vmatpush1.bf16.msra.mxu0 %v4436
        %4577 = vmatprep.subr.bf16.mxu0 0
        %4578 = vmatpush2.bf16.msra.mxu0 0
        %4579 = vmatprep.subr.bf16.mxu0 0
        %4580 = vmatpush2.bf16.msra.mxu0 0
        %4581 = vmatprep.subr.bf16.mxu0 0
        %4582 = vmatpush2.bf16.msra.mxu0 0
        %4583 = vmatprep.subr.bf16.mxu0 0
        %4584 = vmatpush2.bf16.msra.mxu0 0
        %4585 = vmatprep.subr.bf16.mxu0 0
        %4586 = vmatpush2.bf16.msra.mxu0 0
        %4587 = vmatprep.subr.bf16.mxu0 0
        %4588 = vmatpush2.bf16.msra.mxu0 0
        %4589 = vmatprep.subr.bf16.mxu0 0
        %4590 = vmatpush2.bf16.msra.mxu0 0
        %4591 = vmatprep.subr.bf16.mxu0 0
        %4592 = vmatpush2.bf16.msra.mxu0 0
        %4593 = vmatprep.mubr.bf16.mxu0 0
        %4594 = vmatmul.mubr.bf16.gmra.mxu0 %v4415
        %v4595 = vpop.f32.mrf.mxu0
        %v4596 = vadd.f32 0.0, %v4595
        %v4597 = vpop.f32.mrf.mxu0
        %v4598 = vpop.f32.mrf.mxu0
        %v4599 = vpop.f32.mrf.mxu0
        %4600 = vdwg.mxu0
        %v4601 = vadd.f32 %v4381, %v4473
        %v4602 = vadd.f32 %v4382, %v4475
        %v4603 = vadd.f32 %v4383, %v4514
        %v4604 = vadd.f32 %v4384, %v4516
        %v4605 = vadd.f32 %v4385, %v4555
        %v4606 = vadd.f32 %v4386, %v4557
        %v4607 = vadd.f32 %v4387, %v4596
        %s4608 = scalar_lea.vmem %s1, 80
        %v4609 = vld [vmem:[%s4608] sm:$0xf]
        %4610 = vrot.lane.b32.xlu0 %v221, 54
        %v4611 = vpop.permute.xlu0 %4610
        %4612 = vrot.lane.b32.xlu0 %v220, 54
        %v4613 = vpop.permute.xlu0 %4612
        %4614 = vrot.lane.b32.xlu0 %v222, 54
        %v4615 = vpop.permute.xlu0 %4614
        %4616 = vrot.lane.b32.xlu0 %v230, 54
        %v4617 = vpop.permute.xlu0 %4616
        %4618 = vrot.lane.b32.xlu0 %v238, 54
        %v4619 = vpop.permute.xlu0 %4618
        %4620 = vrot.lane.b32.xlu0 %v237, 54
        %v4621 = vpop.permute.xlu0 %4620
        %4622 = vrot.lane.b32.xlu0 %v239, 54
        %v4623 = vpop.permute.xlu0 %4622
        %4624 = vrot.lane.b32.xlu0 %v4169, 54
        %v4625 = vpop.permute.xlu0 %4624
        %vm4626 = vcmask 441344
        %v4627 = vsel %vm4626, %v4611, %v4613
        %v4628 = vsel %vm4626, %v4613, %v4615
        %v4629 = vsel %vm4626, %v4615, %v4617
        %v4630 = vsel %vm4626, %v4617, %v4619
        %v4631 = vsel %vm4626, %v4619, %v4621
        %v4632 = vsel %vm4626, %v4621, %v4623
        %v4633 = vsel %vm4626, %v4623, %v4625
        %v4635 = vsel %vm264, %v4609, 0
        %v4638 = vsel %vm268, %v4627, 0
        %v4641 = vsel %vm268, %v4628, 0
        %v4644 = vsel %vm268, %v4629, 0
        %v4647 = vsel %vm268, %v4630, 0
        %v4650 = vsel %vm268, %v4631, 0
        %v4653 = vsel %vm268, %v4632, 0
        %v4656 = vsel %vm268, %v4633, 0
        %4658 = vmatprep.subr.bf16.mxu0 0
        %4659 = vmatpush1.bf16.msra.mxu0 0
        %4660 = vmatprep.subr.bf16.mxu0 0
        %4661 = vmatpush1.bf16.msra.mxu0 0
        %4662 = vmatprep.subr.bf16.mxu0 0
        %4663 = vmatpush1.bf16.msra.mxu0 0
        %4664 = vmatprep.subr.bf16.mxu0 0
        %4665 = vmatpush1.bf16.msra.mxu0 0
        %4666 = vmatprep.subr.bf16.mxu0 0
        %4667 = vmatpush1.bf16.msra.mxu0 0
        %4668 = vmatprep.subr.bf16.mxu0 0
        %4669 = vmatpush1.bf16.msra.mxu0 0
        %4670 = vmatprep.subr.bf16.mxu0 0
        %4671 = vmatpush1.bf16.msra.mxu0 0
        %4672 = vmatprep.subr.bf16.mxu0 %v4641
        %4673 = vmatpush1.bf16.msra.mxu0 %v4638
        %4674 = vmatprep.subr.bf16.mxu0 0
        %4675 = vmatpush2.bf16.msra.mxu0 0
        %4676 = vmatprep.subr.bf16.mxu0 0
        %4677 = vmatpush2.bf16.msra.mxu0 0
        %4678 = vmatprep.subr.bf16.mxu0 0
        %4679 = vmatpush2.bf16.msra.mxu0 0
        %4680 = vmatprep.subr.bf16.mxu0 0
        %4681 = vmatpush2.bf16.msra.mxu0 0
        %4682 = vmatprep.subr.bf16.mxu0 0
        %4683 = vmatpush2.bf16.msra.mxu0 0
        %4684 = vmatprep.subr.bf16.mxu0 0
        %4685 = vmatpush2.bf16.msra.mxu0 0
        %4686 = vmatprep.subr.bf16.mxu0 0
        %4687 = vmatpush2.bf16.msra.mxu0 0
        %4688 = vmatprep.subr.bf16.mxu0 0
        %4689 = vmatpush2.bf16.msra.mxu0 0
        %4690 = vmatprep.mubr.bf16.mxu0 0
        %4691 = vmatmul.mubr.bf16.gmra.mxu0 %v4635
        %v4692 = vpop.f32.mrf.mxu0
        %v4693 = vadd.f32 0.0, %v4692
        %v4694 = vpop.f32.mrf.mxu0
        %v4695 = vadd.f32 0.0, %v4694
        %v4696 = vpop.f32.mrf.mxu0
        %v4697 = vpop.f32.mrf.mxu0
        %4698 = vdwg.mxu0
        %4699 = vmatprep.subr.bf16.mxu0 0
        %4700 = vmatpush1.bf16.msra.mxu0 0
        %4701 = vmatprep.subr.bf16.mxu0 0
        %4702 = vmatpush1.bf16.msra.mxu0 0
        %4703 = vmatprep.subr.bf16.mxu0 0
        %4704 = vmatpush1.bf16.msra.mxu0 0
        %4705 = vmatprep.subr.bf16.mxu0 0
        %4706 = vmatpush1.bf16.msra.mxu0 0
        %4707 = vmatprep.subr.bf16.mxu0 0
        %4708 = vmatpush1.bf16.msra.mxu0 0
        %4709 = vmatprep.subr.bf16.mxu0 0
        %4710 = vmatpush1.bf16.msra.mxu0 0
        %4711 = vmatprep.subr.bf16.mxu0 0
        %4712 = vmatpush1.bf16.msra.mxu0 0
        %4713 = vmatprep.subr.bf16.mxu0 %v4647
        %4714 = vmatpush1.bf16.msra.mxu0 %v4644
        %4715 = vmatprep.subr.bf16.mxu0 0
        %4716 = vmatpush2.bf16.msra.mxu0 0
        %4717 = vmatprep.subr.bf16.mxu0 0
        %4718 = vmatpush2.bf16.msra.mxu0 0
        %4719 = vmatprep.subr.bf16.mxu0 0
        %4720 = vmatpush2.bf16.msra.mxu0 0
        %4721 = vmatprep.subr.bf16.mxu0 0
        %4722 = vmatpush2.bf16.msra.mxu0 0
        %4723 = vmatprep.subr.bf16.mxu0 0
        %4724 = vmatpush2.bf16.msra.mxu0 0
        %4725 = vmatprep.subr.bf16.mxu0 0
        %4726 = vmatpush2.bf16.msra.mxu0 0
        %4727 = vmatprep.subr.bf16.mxu0 0
        %4728 = vmatpush2.bf16.msra.mxu0 0
        %4729 = vmatprep.subr.bf16.mxu0 0
        %4730 = vmatpush2.bf16.msra.mxu0 0
        %4731 = vmatprep.mubr.bf16.mxu0 0
        %4732 = vmatmul.mubr.bf16.gmra.mxu0 %v4635
        %v4733 = vpop.f32.mrf.mxu0
        %v4734 = vadd.f32 0.0, %v4733
        %v4735 = vpop.f32.mrf.mxu0
        %v4736 = vadd.f32 0.0, %v4735
        %v4737 = vpop.f32.mrf.mxu0
        %v4738 = vpop.f32.mrf.mxu0
        %4739 = vdwg.mxu0
        %4740 = vmatprep.subr.bf16.mxu0 0
        %4741 = vmatpush1.bf16.msra.mxu0 0
        %4742 = vmatprep.subr.bf16.mxu0 0
        %4743 = vmatpush1.bf16.msra.mxu0 0
        %4744 = vmatprep.subr.bf16.mxu0 0
        %4745 = vmatpush1.bf16.msra.mxu0 0
        %4746 = vmatprep.subr.bf16.mxu0 0
        %4747 = vmatpush1.bf16.msra.mxu0 0
        %4748 = vmatprep.subr.bf16.mxu0 0
        %4749 = vmatpush1.bf16.msra.mxu0 0
        %4750 = vmatprep.subr.bf16.mxu0 0
        %4751 = vmatpush1.bf16.msra.mxu0 0
        %4752 = vmatprep.subr.bf16.mxu0 0
        %4753 = vmatpush1.bf16.msra.mxu0 0
        %4754 = vmatprep.subr.bf16.mxu0 %v4653
        %4755 = vmatpush1.bf16.msra.mxu0 %v4650
        %4756 = vmatprep.subr.bf16.mxu0 0
        %4757 = vmatpush2.bf16.msra.mxu0 0
        %4758 = vmatprep.subr.bf16.mxu0 0
        %4759 = vmatpush2.bf16.msra.mxu0 0
        %4760 = vmatprep.subr.bf16.mxu0 0
        %4761 = vmatpush2.bf16.msra.mxu0 0
        %4762 = vmatprep.subr.bf16.mxu0 0
        %4763 = vmatpush2.bf16.msra.mxu0 0
        %4764 = vmatprep.subr.bf16.mxu0 0
        %4765 = vmatpush2.bf16.msra.mxu0 0
        %4766 = vmatprep.subr.bf16.mxu0 0
        %4767 = vmatpush2.bf16.msra.mxu0 0
        %4768 = vmatprep.subr.bf16.mxu0 0
        %4769 = vmatpush2.bf16.msra.mxu0 0
        %4770 = vmatprep.subr.bf16.mxu0 0
        %4771 = vmatpush2.bf16.msra.mxu0 0
        %4772 = vmatprep.mubr.bf16.mxu0 0
        %4773 = vmatmul.mubr.bf16.gmra.mxu0 %v4635
        %v4774 = vpop.f32.mrf.mxu0
        %v4775 = vadd.f32 0.0, %v4774
        %v4776 = vpop.f32.mrf.mxu0
        %v4777 = vadd.f32 0.0, %v4776
        %v4778 = vpop.f32.mrf.mxu0
        %v4779 = vpop.f32.mrf.mxu0
        %4780 = vdwg.mxu0
        %4781 = vmatprep.subr.bf16.mxu0 0
        %4782 = vmatpush1.bf16.msra.mxu0 0
        %4783 = vmatprep.subr.bf16.mxu0 0
        %4784 = vmatpush1.bf16.msra.mxu0 0
        %4785 = vmatprep.subr.bf16.mxu0 0
        %4786 = vmatpush1.bf16.msra.mxu0 0
        %4787 = vmatprep.subr.bf16.mxu0 0
        %4788 = vmatpush1.bf16.msra.mxu0 0
        %4789 = vmatprep.subr.bf16.mxu0 0
        %4790 = vmatpush1.bf16.msra.mxu0 0
        %4791 = vmatprep.subr.bf16.mxu0 0
        %4792 = vmatpush1.bf16.msra.mxu0 0
        %4793 = vmatprep.subr.bf16.mxu0 0
        %4794 = vmatpush1.bf16.msra.mxu0 0
        %4795 = vmatprep.subr.bf16.mxu0 0
        %4796 = vmatpush1.bf16.msra.mxu0 %v4656
        %4797 = vmatprep.subr.bf16.mxu0 0
        %4798 = vmatpush2.bf16.msra.mxu0 0
        %4799 = vmatprep.subr.bf16.mxu0 0
        %4800 = vmatpush2.bf16.msra.mxu0 0
        %4801 = vmatprep.subr.bf16.mxu0 0
        %4802 = vmatpush2.bf16.msra.mxu0 0
        %4803 = vmatprep.subr.bf16.mxu0 0
        %4804 = vmatpush2.bf16.msra.mxu0 0
        %4805 = vmatprep.subr.bf16.mxu0 0
        %4806 = vmatpush2.bf16.msra.mxu0 0
        %4807 = vmatprep.subr.bf16.mxu0 0
        %4808 = vmatpush2.bf16.msra.mxu0 0
        %4809 = vmatprep.subr.bf16.mxu0 0
        %4810 = vmatpush2.bf16.msra.mxu0 0
        %4811 = vmatprep.subr.bf16.mxu0 0
        %4812 = vmatpush2.bf16.msra.mxu0 0
        %4813 = vmatprep.mubr.bf16.mxu0 0
        %4814 = vmatmul.mubr.bf16.gmra.mxu0 %v4635
        %v4815 = vpop.f32.mrf.mxu0
        %v4816 = vadd.f32 0.0, %v4815
        %v4817 = vpop.f32.mrf.mxu0
        %v4818 = vpop.f32.mrf.mxu0
        %v4819 = vpop.f32.mrf.mxu0
        %4820 = vdwg.mxu0
        %v4821 = vadd.f32 %v4601, %v4693
        %v4822 = vadd.f32 %v4602, %v4695
        %v4823 = vadd.f32 %v4603, %v4734
        %v4824 = vadd.f32 %v4604, %v4736
        %v4825 = vadd.f32 %v4605, %v4775
        %v4826 = vadd.f32 %v4606, %v4777
        %v4827 = vadd.f32 %v4607, %v4816
        %s4828 = scalar_lea.vmem %s1, 84
        %v4829 = vld [vmem:[%s4828] sm:$0xf]
        %4830 = vrot.lane.b32.xlu0 %v221, 46
        %v4831 = vpop.permute.xlu0 %4830
        %4832 = vrot.lane.b32.xlu0 %v220, 46
        %v4833 = vpop.permute.xlu0 %4832
        %4834 = vrot.lane.b32.xlu0 %v222, 46
        %v4835 = vpop.permute.xlu0 %4834
        %4836 = vrot.lane.b32.xlu0 %v230, 46
        %v4837 = vpop.permute.xlu0 %4836
        %4838 = vrot.lane.b32.xlu0 %v238, 46
        %v4839 = vpop.permute.xlu0 %4838
        %4840 = vrot.lane.b32.xlu0 %v237, 46
        %v4841 = vpop.permute.xlu0 %4840
        %4842 = vrot.lane.b32.xlu0 %v239, 46
        %v4843 = vpop.permute.xlu0 %4842
        %4844 = vrot.lane.b32.xlu0 %v4169, 46
        %v4845 = vpop.permute.xlu0 %4844
        %vm4846 = vcmask 375808
        %v4847 = vsel %vm4846, %v4831, %v4833
        %v4848 = vsel %vm4846, %v4833, %v4835
        %v4849 = vsel %vm4846, %v4835, %v4837
        %v4850 = vsel %vm4846, %v4837, %v4839
        %v4851 = vsel %vm4846, %v4839, %v4841
        %v4852 = vsel %vm4846, %v4841, %v4843
        %v4853 = vsel %vm4846, %v4843, %v4845
        %v4855 = vsel %vm264, %v4829, 0
        %v4858 = vsel %vm268, %v4847, 0
        %v4861 = vsel %vm268, %v4848, 0
        %v4864 = vsel %vm268, %v4849, 0
        %v4867 = vsel %vm268, %v4850, 0
        %v4870 = vsel %vm268, %v4851, 0
        %v4873 = vsel %vm268, %v4852, 0
        %v4876 = vsel %vm268, %v4853, 0
        %4878 = vmatprep.subr.bf16.mxu0 0
        %4879 = vmatpush1.bf16.msra.mxu0 0
        %4880 = vmatprep.subr.bf16.mxu0 0
        %4881 = vmatpush1.bf16.msra.mxu0 0
        %4882 = vmatprep.subr.bf16.mxu0 0
        %4883 = vmatpush1.bf16.msra.mxu0 0
        %4884 = vmatprep.subr.bf16.mxu0 0
        %4885 = vmatpush1.bf16.msra.mxu0 0
        %4886 = vmatprep.subr.bf16.mxu0 0
        %4887 = vmatpush1.bf16.msra.mxu0 0
        %4888 = vmatprep.subr.bf16.mxu0 0
        %4889 = vmatpush1.bf16.msra.mxu0 0
        %4890 = vmatprep.subr.bf16.mxu0 0
        %4891 = vmatpush1.bf16.msra.mxu0 0
        %4892 = vmatprep.subr.bf16.mxu0 %v4861
        %4893 = vmatpush1.bf16.msra.mxu0 %v4858
        %4894 = vmatprep.subr.bf16.mxu0 0
        %4895 = vmatpush2.bf16.msra.mxu0 0
        %4896 = vmatprep.subr.bf16.mxu0 0
        %4897 = vmatpush2.bf16.msra.mxu0 0
        %4898 = vmatprep.subr.bf16.mxu0 0
        %4899 = vmatpush2.bf16.msra.mxu0 0
        %4900 = vmatprep.subr.bf16.mxu0 0
        %4901 = vmatpush2.bf16.msra.mxu0 0
        %4902 = vmatprep.subr.bf16.mxu0 0
        %4903 = vmatpush2.bf16.msra.mxu0 0
        %4904 = vmatprep.subr.bf16.mxu0 0
        %4905 = vmatpush2.bf16.msra.mxu0 0
        %4906 = vmatprep.subr.bf16.mxu0 0
        %4907 = vmatpush2.bf16.msra.mxu0 0
        %4908 = vmatprep.subr.bf16.mxu0 0
        %4909 = vmatpush2.bf16.msra.mxu0 0
        %4910 = vmatprep.mubr.bf16.mxu0 0
        %4911 = vmatmul.mubr.bf16.gmra.mxu0 %v4855
        %v4912 = vpop.f32.mrf.mxu0
        %v4913 = vadd.f32 0.0, %v4912
        %v4914 = vpop.f32.mrf.mxu0
        %v4915 = vadd.f32 0.0, %v4914
        %v4916 = vpop.f32.mrf.mxu0
        %v4917 = vpop.f32.mrf.mxu0
        %4918 = vdwg.mxu0
        %4919 = vmatprep.subr.bf16.mxu0 0
        %4920 = vmatpush1.bf16.msra.mxu0 0
        %4921 = vmatprep.subr.bf16.mxu0 0
        %4922 = vmatpush1.bf16.msra.mxu0 0
        %4923 = vmatprep.subr.bf16.mxu0 0
        %4924 = vmatpush1.bf16.msra.mxu0 0
        %4925 = vmatprep.subr.bf16.mxu0 0
        %4926 = vmatpush1.bf16.msra.mxu0 0
        %4927 = vmatprep.subr.bf16.mxu0 0
        %4928 = vmatpush1.bf16.msra.mxu0 0
        %4929 = vmatprep.subr.bf16.mxu0 0
        %4930 = vmatpush1.bf16.msra.mxu0 0
        %4931 = vmatprep.subr.bf16.mxu0 0
        %4932 = vmatpush1.bf16.msra.mxu0 0
        %4933 = vmatprep.subr.bf16.mxu0 %v4867
        %4934 = vmatpush1.bf16.msra.mxu0 %v4864
        %4935 = vmatprep.subr.bf16.mxu0 0
        %4936 = vmatpush2.bf16.msra.mxu0 0
        %4937 = vmatprep.subr.bf16.mxu0 0
        %4938 = vmatpush2.bf16.msra.mxu0 0
        %4939 = vmatprep.subr.bf16.mxu0 0
        %4940 = vmatpush2.bf16.msra.mxu0 0
        %4941 = vmatprep.subr.bf16.mxu0 0
        %4942 = vmatpush2.bf16.msra.mxu0 0
        %4943 = vmatprep.subr.bf16.mxu0 0
        %4944 = vmatpush2.bf16.msra.mxu0 0
        %4945 = vmatprep.subr.bf16.mxu0 0
        %4946 = vmatpush2.bf16.msra.mxu0 0
        %4947 = vmatprep.subr.bf16.mxu0 0
        %4948 = vmatpush2.bf16.msra.mxu0 0
        %4949 = vmatprep.subr.bf16.mxu0 0
        %4950 = vmatpush2.bf16.msra.mxu0 0
        %4951 = vmatprep.mubr.bf16.mxu0 0
        %4952 = vmatmul.mubr.bf16.gmra.mxu0 %v4855
        %v4953 = vpop.f32.mrf.mxu0
        %v4954 = vadd.f32 0.0, %v4953
        %v4955 = vpop.f32.mrf.mxu0
        %v4956 = vadd.f32 0.0, %v4955
        %v4957 = vpop.f32.mrf.mxu0
        %v4958 = vpop.f32.mrf.mxu0
        %4959 = vdwg.mxu0
        %4960 = vmatprep.subr.bf16.mxu0 0
        %4961 = vmatpush1.bf16.msra.mxu0 0
        %4962 = vmatprep.subr.bf16.mxu0 0
        %4963 = vmatpush1.bf16.msra.mxu0 0
        %4964 = vmatprep.subr.bf16.mxu0 0
        %4965 = vmatpush1.bf16.msra.mxu0 0
        %4966 = vmatprep.subr.bf16.mxu0 0
        %4967 = vmatpush1.bf16.msra.mxu0 0
        %4968 = vmatprep.subr.bf16.mxu0 0
        %4969 = vmatpush1.bf16.msra.mxu0 0
        %4970 = vmatprep.subr.bf16.mxu0 0
        %4971 = vmatpush1.bf16.msra.mxu0 0
        %4972 = vmatprep.subr.bf16.mxu0 0
        %4973 = vmatpush1.bf16.msra.mxu0 0
        %4974 = vmatprep.subr.bf16.mxu0 %v4873
        %4975 = vmatpush1.bf16.msra.mxu0 %v4870
        %4976 = vmatprep.subr.bf16.mxu0 0
        %4977 = vmatpush2.bf16.msra.mxu0 0
        %4978 = vmatprep.subr.bf16.mxu0 0
        %4979 = vmatpush2.bf16.msra.mxu0 0
        %4980 = vmatprep.subr.bf16.mxu0 0
        %4981 = vmatpush2.bf16.msra.mxu0 0
        %4982 = vmatprep.subr.bf16.mxu0 0
        %4983 = vmatpush2.bf16.msra.mxu0 0
        %4984 = vmatprep.subr.bf16.mxu0 0
        %4985 = vmatpush2.bf16.msra.mxu0 0
        %4986 = vmatprep.subr.bf16.mxu0 0
        %4987 = vmatpush2.bf16.msra.mxu0 0
        %4988 = vmatprep.subr.bf16.mxu0 0
        %4989 = vmatpush2.bf16.msra.mxu0 0
        %4990 = vmatprep.subr.bf16.mxu0 0
        %4991 = vmatpush2.bf16.msra.mxu0 0
        %4992 = vmatprep.mubr.bf16.mxu0 0
        %4993 = vmatmul.mubr.bf16.gmra.mxu0 %v4855
        %v4994 = vpop.f32.mrf.mxu0
        %v4995 = vadd.f32 0.0, %v4994
        %v4996 = vpop.f32.mrf.mxu0
        %v4997 = vadd.f32 0.0, %v4996
        %v4998 = vpop.f32.mrf.mxu0
        %v4999 = vpop.f32.mrf.mxu0
        %5000 = vdwg.mxu0
        %5001 = vmatprep.subr.bf16.mxu0 0
        %5002 = vmatpush1.bf16.msra.mxu0 0
        %5003 = vmatprep.subr.bf16.mxu0 0
        %5004 = vmatpush1.bf16.msra.mxu0 0
        %5005 = vmatprep.subr.bf16.mxu0 0
        %5006 = vmatpush1.bf16.msra.mxu0 0
        %5007 = vmatprep.subr.bf16.mxu0 0
        %5008 = vmatpush1.bf16.msra.mxu0 0
        %5009 = vmatprep.subr.bf16.mxu0 0
        %5010 = vmatpush1.bf16.msra.mxu0 0
        %5011 = vmatprep.subr.bf16.mxu0 0
        %5012 = vmatpush1.bf16.msra.mxu0 0
        %5013 = vmatprep.subr.bf16.mxu0 0
        %5014 = vmatpush1.bf16.msra.mxu0 0
        %5015 = vmatprep.subr.bf16.mxu0 0
        %5016 = vmatpush1.bf16.msra.mxu0 %v4876
        %5017 = vmatprep.subr.bf16.mxu0 0
        %5018 = vmatpush2.bf16.msra.mxu0 0
        %5019 = vmatprep.subr.bf16.mxu0 0
        %5020 = vmatpush2.bf16.msra.mxu0 0
        %5021 = vmatprep.subr.bf16.mxu0 0
        %5022 = vmatpush2.bf16.msra.mxu0 0
        %5023 = vmatprep.subr.bf16.mxu0 0
        %5024 = vmatpush2.bf16.msra.mxu0 0
        %5025 = vmatprep.subr.bf16.mxu0 0
        %5026 = vmatpush2.bf16.msra.mxu0 0
        %5027 = vmatprep.subr.bf16.mxu0 0
        %5028 = vmatpush2.bf16.msra.mxu0 0
        %5029 = vmatprep.subr.bf16.mxu0 0
        %5030 = vmatpush2.bf16.msra.mxu0 0
        %5031 = vmatprep.subr.bf16.mxu0 0
        %5032 = vmatpush2.bf16.msra.mxu0 0
        %5033 = vmatprep.mubr.bf16.mxu0 0
        %5034 = vmatmul.mubr.bf16.gmra.mxu0 %v4855
        %v5035 = vpop.f32.mrf.mxu0
        %v5036 = vadd.f32 0.0, %v5035
        %v5037 = vpop.f32.mrf.mxu0
        %v5038 = vpop.f32.mrf.mxu0
        %v5039 = vpop.f32.mrf.mxu0
        %5040 = vdwg.mxu0
        %v5041 = vadd.f32 %v4821, %v4913
        %v5042 = vadd.f32 %v4822, %v4915
        %v5043 = vadd.f32 %v4823, %v4954
        %v5044 = vadd.f32 %v4824, %v4956
        %v5045 = vadd.f32 %v4825, %v4995
        %v5046 = vadd.f32 %v4826, %v4997
        %v5047 = vadd.f32 %v4827, %v5036
        %s5048 = scalar_lea.vmem %s1, 88
        %v5049 = vld [vmem:[%s5048] sm:$0xf]
        %5050 = vrot.lane.b32.xlu0 %v221, 45
        %v5051 = vpop.permute.xlu0 %5050
        %5052 = vrot.lane.b32.xlu0 %v220, 45
        %v5053 = vpop.permute.xlu0 %5052
        %5054 = vrot.lane.b32.xlu0 %v222, 45
        %v5055 = vpop.permute.xlu0 %5054
        %5056 = vrot.lane.b32.xlu0 %v230, 45
        %v5057 = vpop.permute.xlu0 %5056
        %5058 = vrot.lane.b32.xlu0 %v238, 45
        %v5059 = vpop.permute.xlu0 %5058
        %5060 = vrot.lane.b32.xlu0 %v237, 45
        %v5061 = vpop.permute.xlu0 %5060
        %5062 = vrot.lane.b32.xlu0 %v239, 45
        %v5063 = vpop.permute.xlu0 %5062
        %5064 = vrot.lane.b32.xlu0 %v4169, 45
        %v5065 = vpop.permute.xlu0 %5064
        %vm5066 = vcmask 367616
        %v5067 = vsel %vm5066, %v5051, %v5053
        %v5068 = vsel %vm5066, %v5053, %v5055
        %v5069 = vsel %vm5066, %v5055, %v5057
        %v5070 = vsel %vm5066, %v5057, %v5059
        %v5071 = vsel %vm5066, %v5059, %v5061
        %v5072 = vsel %vm5066, %v5061, %v5063
        %v5073 = vsel %vm5066, %v5063, %v5065
        %v5075 = vsel %vm264, %v5049, 0
        %v5078 = vsel %vm268, %v5067, 0
        %v5081 = vsel %vm268, %v5068, 0
        %v5084 = vsel %vm268, %v5069, 0
        %v5087 = vsel %vm268, %v5070, 0
        %v5090 = vsel %vm268, %v5071, 0
        %v5093 = vsel %vm268, %v5072, 0
        %v5096 = vsel %vm268, %v5073, 0
        %5098 = vmatprep.subr.bf16.mxu0 0
        %5099 = vmatpush1.bf16.msra.mxu0 0
        %5100 = vmatprep.subr.bf16.mxu0 0
        %5101 = vmatpush1.bf16.msra.mxu0 0
        %5102 = vmatprep.subr.bf16.mxu0 0
        %5103 = vmatpush1.bf16.msra.mxu0 0
        %5104 = vmatprep.subr.bf16.mxu0 0
        %5105 = vmatpush1.bf16.msra.mxu0 0
        %5106 = vmatprep.subr.bf16.mxu0 0
        %5107 = vmatpush1.bf16.msra.mxu0 0
        %5108 = vmatprep.subr.bf16.mxu0 0
        %5109 = vmatpush1.bf16.msra.mxu0 0
        %5110 = vmatprep.subr.bf16.mxu0 0
        %5111 = vmatpush1.bf16.msra.mxu0 0
        %5112 = vmatprep.subr.bf16.mxu0 %v5081
        %5113 = vmatpush1.bf16.msra.mxu0 %v5078
        %5114 = vmatprep.subr.bf16.mxu0 0
        %5115 = vmatpush2.bf16.msra.mxu0 0
        %5116 = vmatprep.subr.bf16.mxu0 0
        %5117 = vmatpush2.bf16.msra.mxu0 0
        %5118 = vmatprep.subr.bf16.mxu0 0
        %5119 = vmatpush2.bf16.msra.mxu0 0
        %5120 = vmatprep.subr.bf16.mxu0 0
        %5121 = vmatpush2.bf16.msra.mxu0 0
        %5122 = vmatprep.subr.bf16.mxu0 0
        %5123 = vmatpush2.bf16.msra.mxu0 0
        %5124 = vmatprep.subr.bf16.mxu0 0
        %5125 = vmatpush2.bf16.msra.mxu0 0
        %5126 = vmatprep.subr.bf16.mxu0 0
        %5127 = vmatpush2.bf16.msra.mxu0 0
        %5128 = vmatprep.subr.bf16.mxu0 0
        %5129 = vmatpush2.bf16.msra.mxu0 0
        %5130 = vmatprep.mubr.bf16.mxu0 0
        %5131 = vmatmul.mubr.bf16.gmra.mxu0 %v5075
        %v5132 = vpop.f32.mrf.mxu0
        %v5133 = vadd.f32 0.0, %v5132
        %v5134 = vpop.f32.mrf.mxu0
        %v5135 = vadd.f32 0.0, %v5134
        %v5136 = vpop.f32.mrf.mxu0
        %v5137 = vpop.f32.mrf.mxu0
        %5138 = vdwg.mxu0
        %5139 = vmatprep.subr.bf16.mxu0 0
        %5140 = vmatpush1.bf16.msra.mxu0 0
        %5141 = vmatprep.subr.bf16.mxu0 0
        %5142 = vmatpush1.bf16.msra.mxu0 0
        %5143 = vmatprep.subr.bf16.mxu0 0
        %5144 = vmatpush1.bf16.msra.mxu0 0
        %5145 = vmatprep.subr.bf16.mxu0 0
        %5146 = vmatpush1.bf16.msra.mxu0 0
        %5147 = vmatprep.subr.bf16.mxu0 0
        %5148 = vmatpush1.bf16.msra.mxu0 0
        %5149 = vmatprep.subr.bf16.mxu0 0
        %5150 = vmatpush1.bf16.msra.mxu0 0
        %5151 = vmatprep.subr.bf16.mxu0 0
        %5152 = vmatpush1.bf16.msra.mxu0 0
        %5153 = vmatprep.subr.bf16.mxu0 %v5087
        %5154 = vmatpush1.bf16.msra.mxu0 %v5084
        %5155 = vmatprep.subr.bf16.mxu0 0
        %5156 = vmatpush2.bf16.msra.mxu0 0
        %5157 = vmatprep.subr.bf16.mxu0 0
        %5158 = vmatpush2.bf16.msra.mxu0 0
        %5159 = vmatprep.subr.bf16.mxu0 0
        %5160 = vmatpush2.bf16.msra.mxu0 0
        %5161 = vmatprep.subr.bf16.mxu0 0
        %5162 = vmatpush2.bf16.msra.mxu0 0
        %5163 = vmatprep.subr.bf16.mxu0 0
        %5164 = vmatpush2.bf16.msra.mxu0 0
        %5165 = vmatprep.subr.bf16.mxu0 0
        %5166 = vmatpush2.bf16.msra.mxu0 0
        %5167 = vmatprep.subr.bf16.mxu0 0
        %5168 = vmatpush2.bf16.msra.mxu0 0
        %5169 = vmatprep.subr.bf16.mxu0 0
        %5170 = vmatpush2.bf16.msra.mxu0 0
        %5171 = vmatprep.mubr.bf16.mxu0 0
        %5172 = vmatmul.mubr.bf16.gmra.mxu0 %v5075
        %v5173 = vpop.f32.mrf.mxu0
        %v5174 = vadd.f32 0.0, %v5173
        %v5175 = vpop.f32.mrf.mxu0
        %v5176 = vadd.f32 0.0, %v5175
        %v5177 = vpop.f32.mrf.mxu0
        %v5178 = vpop.f32.mrf.mxu0
        %5179 = vdwg.mxu0
        %5180 = vmatprep.subr.bf16.mxu0 0
        %5181 = vmatpush1.bf16.msra.mxu0 0
        %5182 = vmatprep.subr.bf16.mxu0 0
        %5183 = vmatpush1.bf16.msra.mxu0 0
        %5184 = vmatprep.subr.bf16.mxu0 0
        %5185 = vmatpush1.bf16.msra.mxu0 0
        %5186 = vmatprep.subr.bf16.mxu0 0
        %5187 = vmatpush1.bf16.msra.mxu0 0
        %5188 = vmatprep.subr.bf16.mxu0 0
        %5189 = vmatpush1.bf16.msra.mxu0 0
        %5190 = vmatprep.subr.bf16.mxu0 0
        %5191 = vmatpush1.bf16.msra.mxu0 0
        %5192 = vmatprep.subr.bf16.mxu0 0
        %5193 = vmatpush1.bf16.msra.mxu0 0
        %5194 = vmatprep.subr.bf16.mxu0 %v5093
        %5195 = vmatpush1.bf16.msra.mxu0 %v5090
        %5196 = vmatprep.subr.bf16.mxu0 0
        %5197 = vmatpush2.bf16.msra.mxu0 0
        %5198 = vmatprep.subr.bf16.mxu0 0
        %5199 = vmatpush2.bf16.msra.mxu0 0
        %5200 = vmatprep.subr.bf16.mxu0 0
        %5201 = vmatpush2.bf16.msra.mxu0 0
        %5202 = vmatprep.subr.bf16.mxu0 0
        %5203 = vmatpush2.bf16.msra.mxu0 0
        %5204 = vmatprep.subr.bf16.mxu0 0
        %5205 = vmatpush2.bf16.msra.mxu0 0
        %5206 = vmatprep.subr.bf16.mxu0 0
        %5207 = vmatpush2.bf16.msra.mxu0 0
        %5208 = vmatprep.subr.bf16.mxu0 0
        %5209 = vmatpush2.bf16.msra.mxu0 0
        %5210 = vmatprep.subr.bf16.mxu0 0
        %5211 = vmatpush2.bf16.msra.mxu0 0
        %5212 = vmatprep.mubr.bf16.mxu0 0
        %5213 = vmatmul.mubr.bf16.gmra.mxu0 %v5075
        %v5214 = vpop.f32.mrf.mxu0
        %v5215 = vadd.f32 0.0, %v5214
        %v5216 = vpop.f32.mrf.mxu0
        %v5217 = vadd.f32 0.0, %v5216
        %v5218 = vpop.f32.mrf.mxu0
        %v5219 = vpop.f32.mrf.mxu0
        %5220 = vdwg.mxu0
        %5221 = vmatprep.subr.bf16.mxu0 0
        %5222 = vmatpush1.bf16.msra.mxu0 0
        %5223 = vmatprep.subr.bf16.mxu0 0
        %5224 = vmatpush1.bf16.msra.mxu0 0
        %5225 = vmatprep.subr.bf16.mxu0 0
        %5226 = vmatpush1.bf16.msra.mxu0 0
        %5227 = vmatprep.subr.bf16.mxu0 0
        %5228 = vmatpush1.bf16.msra.mxu0 0
        %5229 = vmatprep.subr.bf16.mxu0 0
        %5230 = vmatpush1.bf16.msra.mxu0 0
        %5231 = vmatprep.subr.bf16.mxu0 0
        %5232 = vmatpush1.bf16.msra.mxu0 0
        %5233 = vmatprep.subr.bf16.mxu0 0
        %5234 = vmatpush1.bf16.msra.mxu0 0
        %5235 = vmatprep.subr.bf16.mxu0 0
        %5236 = vmatpush1.bf16.msra.mxu0 %v5096
        %5237 = vmatprep.subr.bf16.mxu0 0
        %5238 = vmatpush2.bf16.msra.mxu0 0
        %5239 = vmatprep.subr.bf16.mxu0 0
        %5240 = vmatpush2.bf16.msra.mxu0 0
        %5241 = vmatprep.subr.bf16.mxu0 0
        %5242 = vmatpush2.bf16.msra.mxu0 0
        %5243 = vmatprep.subr.bf16.mxu0 0
        %5244 = vmatpush2.bf16.msra.mxu0 0
        %5245 = vmatprep.subr.bf16.mxu0 0
        %5246 = vmatpush2.bf16.msra.mxu0 0
        %5247 = vmatprep.subr.bf16.mxu0 0
        %5248 = vmatpush2.bf16.msra.mxu0 0
        %5249 = vmatprep.subr.bf16.mxu0 0
        %5250 = vmatpush2.bf16.msra.mxu0 0
        %5251 = vmatprep.subr.bf16.mxu0 0
        %5252 = vmatpush2.bf16.msra.mxu0 0
        %5253 = vmatprep.mubr.bf16.mxu0 0
        %5254 = vmatmul.mubr.bf16.gmra.mxu0 %v5075
        %v5255 = vpop.f32.mrf.mxu0
        %v5256 = vadd.f32 0.0, %v5255
        %v5257 = vpop.f32.mrf.mxu0
        %v5258 = vpop.f32.mrf.mxu0
        %v5259 = vpop.f32.mrf.mxu0
        %5260 = vdwg.mxu0
        %v5261 = vadd.f32 %v5041, %v5133
        %v5262 = vadd.f32 %v5042, %v5135
        %v5263 = vadd.f32 %v5043, %v5174
        %v5264 = vadd.f32 %v5044, %v5176
        %v5265 = vadd.f32 %v5045, %v5215
        %v5266 = vadd.f32 %v5046, %v5217
        %v5267 = vadd.f32 %v5047, %v5256
        %s5268 = scalar_lea.vmem %s1, 92
        %v5269 = vld [vmem:[%s5268] sm:$0xf]
        %5270 = vrot.lane.b32.xlu0 %v221, 44
        %v5271 = vpop.permute.xlu0 %5270
        %5272 = vrot.lane.b32.xlu0 %v220, 44
        %v5273 = vpop.permute.xlu0 %5272
        %5274 = vrot.lane.b32.xlu0 %v222, 44
        %v5275 = vpop.permute.xlu0 %5274
        %5276 = vrot.lane.b32.xlu0 %v230, 44
        %v5277 = vpop.permute.xlu0 %5276
        %5278 = vrot.lane.b32.xlu0 %v238, 44
        %v5279 = vpop.permute.xlu0 %5278
        %5280 = vrot.lane.b32.xlu0 %v237, 44
        %v5281 = vpop.permute.xlu0 %5280
        %5282 = vrot.lane.b32.xlu0 %v239, 44
        %v5283 = vpop.permute.xlu0 %5282
        %5284 = vrot.lane.b32.xlu0 %v4169, 44
        %v5285 = vpop.permute.xlu0 %5284
        %vm5286 = vcmask 359424
        %v5287 = vsel %vm5286, %v5271, %v5273
        %v5288 = vsel %vm5286, %v5273, %v5275
        %v5289 = vsel %vm5286, %v5275, %v5277
        %v5290 = vsel %vm5286, %v5277, %v5279
        %v5291 = vsel %vm5286, %v5279, %v5281
        %v5292 = vsel %vm5286, %v5281, %v5283
        %v5293 = vsel %vm5286, %v5283, %v5285
        %v5295 = vsel %vm264, %v5269, 0
        %v5298 = vsel %vm268, %v5287, 0
        %v5301 = vsel %vm268, %v5288, 0
        %v5304 = vsel %vm268, %v5289, 0
        %v5307 = vsel %vm268, %v5290, 0
        %v5310 = vsel %vm268, %v5291, 0
        %v5313 = vsel %vm268, %v5292, 0
        %v5316 = vsel %vm268, %v5293, 0
        %5318 = vmatprep.subr.bf16.mxu0 0
        %5319 = vmatpush1.bf16.msra.mxu0 0
        %5320 = vmatprep.subr.bf16.mxu0 0
        %5321 = vmatpush1.bf16.msra.mxu0 0
        %5322 = vmatprep.subr.bf16.mxu0 0
        %5323 = vmatpush1.bf16.msra.mxu0 0
        %5324 = vmatprep.subr.bf16.mxu0 0
        %5325 = vmatpush1.bf16.msra.mxu0 0
        %5326 = vmatprep.subr.bf16.mxu0 0
        %5327 = vmatpush1.bf16.msra.mxu0 0
        %5328 = vmatprep.subr.bf16.mxu0 0
        %5329 = vmatpush1.bf16.msra.mxu0 0
        %5330 = vmatprep.subr.bf16.mxu0 0
        %5331 = vmatpush1.bf16.msra.mxu0 0
        %5332 = vmatprep.subr.bf16.mxu0 %v5301
        %5333 = vmatpush1.bf16.msra.mxu0 %v5298
        %5334 = vmatprep.subr.bf16.mxu0 0
        %5335 = vmatpush2.bf16.msra.mxu0 0
        %5336 = vmatprep.subr.bf16.mxu0 0
        %5337 = vmatpush2.bf16.msra.mxu0 0
        %5338 = vmatprep.subr.bf16.mxu0 0
        %5339 = vmatpush2.bf16.msra.mxu0 0
        %5340 = vmatprep.subr.bf16.mxu0 0
        %5341 = vmatpush2.bf16.msra.mxu0 0
        %5342 = vmatprep.subr.bf16.mxu0 0
        %5343 = vmatpush2.bf16.msra.mxu0 0
        %5344 = vmatprep.subr.bf16.mxu0 0
        %5345 = vmatpush2.bf16.msra.mxu0 0
        %5346 = vmatprep.subr.bf16.mxu0 0
        %5347 = vmatpush2.bf16.msra.mxu0 0
        %5348 = vmatprep.subr.bf16.mxu0 0
        %5349 = vmatpush2.bf16.msra.mxu0 0
        %5350 = vmatprep.mubr.bf16.mxu0 0
        %5351 = vmatmul.mubr.bf16.gmra.mxu0 %v5295
        %v5352 = vpop.f32.mrf.mxu0
        %v5353 = vadd.f32 0.0, %v5352
        %v5354 = vpop.f32.mrf.mxu0
        %v5355 = vadd.f32 0.0, %v5354
        %v5356 = vpop.f32.mrf.mxu0
        %v5357 = vpop.f32.mrf.mxu0
        %5358 = vdwg.mxu0
        %5359 = vmatprep.subr.bf16.mxu0 0
        %5360 = vmatpush1.bf16.msra.mxu0 0
        %5361 = vmatprep.subr.bf16.mxu0 0
        %5362 = vmatpush1.bf16.msra.mxu0 0
        %5363 = vmatprep.subr.bf16.mxu0 0
        %5364 = vmatpush1.bf16.msra.mxu0 0
        %5365 = vmatprep.subr.bf16.mxu0 0
        %5366 = vmatpush1.bf16.msra.mxu0 0
        %5367 = vmatprep.subr.bf16.mxu0 0
        %5368 = vmatpush1.bf16.msra.mxu0 0
        %5369 = vmatprep.subr.bf16.mxu0 0
        %5370 = vmatpush1.bf16.msra.mxu0 0
        %5371 = vmatprep.subr.bf16.mxu0 0
        %5372 = vmatpush1.bf16.msra.mxu0 0
        %5373 = vmatprep.subr.bf16.mxu0 %v5307
        %5374 = vmatpush1.bf16.msra.mxu0 %v5304
        %5375 = vmatprep.subr.bf16.mxu0 0
        %5376 = vmatpush2.bf16.msra.mxu0 0
        %5377 = vmatprep.subr.bf16.mxu0 0
        %5378 = vmatpush2.bf16.msra.mxu0 0
        %5379 = vmatprep.subr.bf16.mxu0 0
        %5380 = vmatpush2.bf16.msra.mxu0 0
        %5381 = vmatprep.subr.bf16.mxu0 0
        %5382 = vmatpush2.bf16.msra.mxu0 0
        %5383 = vmatprep.subr.bf16.mxu0 0
        %5384 = vmatpush2.bf16.msra.mxu0 0
        %5385 = vmatprep.subr.bf16.mxu0 0
        %5386 = vmatpush2.bf16.msra.mxu0 0
        %5387 = vmatprep.subr.bf16.mxu0 0
        %5388 = vmatpush2.bf16.msra.mxu0 0
        %5389 = vmatprep.subr.bf16.mxu0 0
        %5390 = vmatpush2.bf16.msra.mxu0 0
        %5391 = vmatprep.mubr.bf16.mxu0 0
        %5392 = vmatmul.mubr.bf16.gmra.mxu0 %v5295
        %v5393 = vpop.f32.mrf.mxu0
        %v5394 = vadd.f32 0.0, %v5393
        %v5395 = vpop.f32.mrf.mxu0
        %v5396 = vadd.f32 0.0, %v5395
        %v5397 = vpop.f32.mrf.mxu0
        %v5398 = vpop.f32.mrf.mxu0
        %5399 = vdwg.mxu0
        %5400 = vmatprep.subr.bf16.mxu0 0
        %5401 = vmatpush1.bf16.msra.mxu0 0
        %5402 = vmatprep.subr.bf16.mxu0 0
        %5403 = vmatpush1.bf16.msra.mxu0 0
        %5404 = vmatprep.subr.bf16.mxu0 0
        %5405 = vmatpush1.bf16.msra.mxu0 0
        %5406 = vmatprep.subr.bf16.mxu0 0
        %5407 = vmatpush1.bf16.msra.mxu0 0
        %5408 = vmatprep.subr.bf16.mxu0 0
        %5409 = vmatpush1.bf16.msra.mxu0 0
        %5410 = vmatprep.subr.bf16.mxu0 0
        %5411 = vmatpush1.bf16.msra.mxu0 0
        %5412 = vmatprep.subr.bf16.mxu0 0
        %5413 = vmatpush1.bf16.msra.mxu0 0
        %5414 = vmatprep.subr.bf16.mxu0 %v5313
        %5415 = vmatpush1.bf16.msra.mxu0 %v5310
        %5416 = vmatprep.subr.bf16.mxu0 0
        %5417 = vmatpush2.bf16.msra.mxu0 0
        %5418 = vmatprep.subr.bf16.mxu0 0
        %5419 = vmatpush2.bf16.msra.mxu0 0
        %5420 = vmatprep.subr.bf16.mxu0 0
        %5421 = vmatpush2.bf16.msra.mxu0 0
        %5422 = vmatprep.subr.bf16.mxu0 0
        %5423 = vmatpush2.bf16.msra.mxu0 0
        %5424 = vmatprep.subr.bf16.mxu0 0
        %5425 = vmatpush2.bf16.msra.mxu0 0
        %5426 = vmatprep.subr.bf16.mxu0 0
        %5427 = vmatpush2.bf16.msra.mxu0 0
        %5428 = vmatprep.subr.bf16.mxu0 0
        %5429 = vmatpush2.bf16.msra.mxu0 0
        %5430 = vmatprep.subr.bf16.mxu0 0
        %5431 = vmatpush2.bf16.msra.mxu0 0
        %5432 = vmatprep.mubr.bf16.mxu0 0
        %5433 = vmatmul.mubr.bf16.gmra.mxu0 %v5295
        %v5434 = vpop.f32.mrf.mxu0
        %v5435 = vadd.f32 0.0, %v5434
        %v5436 = vpop.f32.mrf.mxu0
        %v5437 = vadd.f32 0.0, %v5436
        %v5438 = vpop.f32.mrf.mxu0
        %v5439 = vpop.f32.mrf.mxu0
        %5440 = vdwg.mxu0
        %5441 = vmatprep.subr.bf16.mxu0 0
        %5442 = vmatpush1.bf16.msra.mxu0 0
        %5443 = vmatprep.subr.bf16.mxu0 0
        %5444 = vmatpush1.bf16.msra.mxu0 0
        %5445 = vmatprep.subr.bf16.mxu0 0
        %5446 = vmatpush1.bf16.msra.mxu0 0
        %5447 = vmatprep.subr.bf16.mxu0 0
        %5448 = vmatpush1.bf16.msra.mxu0 0
        %5449 = vmatprep.subr.bf16.mxu0 0
        %5450 = vmatpush1.bf16.msra.mxu0 0
        %5451 = vmatprep.subr.bf16.mxu0 0
        %5452 = vmatpush1.bf16.msra.mxu0 0
        %5453 = vmatprep.subr.bf16.mxu0 0
        %5454 = vmatpush1.bf16.msra.mxu0 0
        %5455 = vmatprep.subr.bf16.mxu0 0
        %5456 = vmatpush1.bf16.msra.mxu0 %v5316
        %5457 = vmatprep.subr.bf16.mxu0 0
        %5458 = vmatpush2.bf16.msra.mxu0 0
        %5459 = vmatprep.subr.bf16.mxu0 0
        %5460 = vmatpush2.bf16.msra.mxu0 0
        %5461 = vmatprep.subr.bf16.mxu0 0
        %5462 = vmatpush2.bf16.msra.mxu0 0
        %5463 = vmatprep.subr.bf16.mxu0 0
        %5464 = vmatpush2.bf16.msra.mxu0 0
        %5465 = vmatprep.subr.bf16.mxu0 0
        %5466 = vmatpush2.bf16.msra.mxu0 0
        %5467 = vmatprep.subr.bf16.mxu0 0
        %5468 = vmatpush2.bf16.msra.mxu0 0
        %5469 = vmatprep.subr.bf16.mxu0 0
        %5470 = vmatpush2.bf16.msra.mxu0 0
        %5471 = vmatprep.subr.bf16.mxu0 0
        %5472 = vmatpush2.bf16.msra.mxu0 0
        %5473 = vmatprep.mubr.bf16.mxu0 0
        %5474 = vmatmul.mubr.bf16.gmra.mxu0 %v5295
        %v5475 = vpop.f32.mrf.mxu0
        %v5476 = vadd.f32 0.0, %v5475
        %v5477 = vpop.f32.mrf.mxu0
        %v5478 = vpop.f32.mrf.mxu0
        %v5479 = vpop.f32.mrf.mxu0
        %5480 = vdwg.mxu0
        %v5481 = vadd.f32 %v5261, %v5353
        %v5482 = vadd.f32 %v5262, %v5355
        %v5483 = vadd.f32 %v5263, %v5394
        %v5484 = vadd.f32 %v5264, %v5396
        %v5485 = vadd.f32 %v5265, %v5435
        %v5486 = vadd.f32 %v5266, %v5437
        %v5487 = vadd.f32 %v5267, %v5476
        %s5488 = scalar_lea.vmem %s1, 96
        %v5489 = vld [vmem:[%s5488] sm:$0xf]
        %5490 = vrot.lane.b32.xlu0 %v221, 36
        %v5491 = vpop.permute.xlu0 %5490
        %5492 = vrot.lane.b32.xlu0 %v220, 36
        %v5493 = vpop.permute.xlu0 %5492
        %5494 = vrot.lane.b32.xlu0 %v222, 36
        %v5495 = vpop.permute.xlu0 %5494
        %5496 = vrot.lane.b32.xlu0 %v230, 36
        %v5497 = vpop.permute.xlu0 %5496
        %5498 = vrot.lane.b32.xlu0 %v238, 36
        %v5499 = vpop.permute.xlu0 %5498
        %5500 = vrot.lane.b32.xlu0 %v237, 36
        %v5501 = vpop.permute.xlu0 %5500
        %5502 = vrot.lane.b32.xlu0 %v239, 36
        %v5503 = vpop.permute.xlu0 %5502
        %5504 = vrot.lane.b32.xlu0 %v4169, 36
        %v5505 = vpop.permute.xlu0 %5504
        %vm5506 = vcmask 293888
        %v5507 = vsel %vm5506, %v5491, %v5493
        %v5508 = vsel %vm5506, %v5493, %v5495
        %v5509 = vsel %vm5506, %v5495, %v5497
        %v5510 = vsel %vm5506, %v5497, %v5499
        %v5511 = vsel %vm5506, %v5499, %v5501
        %v5512 = vsel %vm5506, %v5501, %v5503
        %v5513 = vsel %vm5506, %v5503, %v5505
        %v5515 = vsel %vm264, %v5489, 0
        %v5518 = vsel %vm268, %v5507, 0
        %v5521 = vsel %vm268, %v5508, 0
        %v5524 = vsel %vm268, %v5509, 0
        %v5527 = vsel %vm268, %v5510, 0
        %v5530 = vsel %vm268, %v5511, 0
        %v5533 = vsel %vm268, %v5512, 0
        %v5536 = vsel %vm268, %v5513, 0
        %5538 = vmatprep.subr.bf16.mxu0 0
        %5539 = vmatpush1.bf16.msra.mxu0 0
        %5540 = vmatprep.subr.bf16.mxu0 0
        %5541 = vmatpush1.bf16.msra.mxu0 0
        %5542 = vmatprep.subr.bf16.mxu0 0
        %5543 = vmatpush1.bf16.msra.mxu0 0
        %5544 = vmatprep.subr.bf16.mxu0 0
        %5545 = vmatpush1.bf16.msra.mxu0 0
        %5546 = vmatprep.subr.bf16.mxu0 0
        %5547 = vmatpush1.bf16.msra.mxu0 0
        %5548 = vmatprep.subr.bf16.mxu0 0
        %5549 = vmatpush1.bf16.msra.mxu0 0
        %5550 = vmatprep.subr.bf16.mxu0 0
        %5551 = vmatpush1.bf16.msra.mxu0 0
        %5552 = vmatprep.subr.bf16.mxu0 %v5521
        %5553 = vmatpush1.bf16.msra.mxu0 %v5518
        %5554 = vmatprep.subr.bf16.mxu0 0
        %5555 = vmatpush2.bf16.msra.mxu0 0
        %5556 = vmatprep.subr.bf16.mxu0 0
        %5557 = vmatpush2.bf16.msra.mxu0 0
        %5558 = vmatprep.subr.bf16.mxu0 0
        %5559 = vmatpush2.bf16.msra.mxu0 0
        %5560 = vmatprep.subr.bf16.mxu0 0
        %5561 = vmatpush2.bf16.msra.mxu0 0
        %5562 = vmatprep.subr.bf16.mxu0 0
        %5563 = vmatpush2.bf16.msra.mxu0 0
        %5564 = vmatprep.subr.bf16.mxu0 0
        %5565 = vmatpush2.bf16.msra.mxu0 0
        %5566 = vmatprep.subr.bf16.mxu0 0
        %5567 = vmatpush2.bf16.msra.mxu0 0
        %5568 = vmatprep.subr.bf16.mxu0 0
        %5569 = vmatpush2.bf16.msra.mxu0 0
        %5570 = vmatprep.mubr.bf16.mxu0 0
        %5571 = vmatmul.mubr.bf16.gmra.mxu0 %v5515
        %v5572 = vpop.f32.mrf.mxu0
        %v5573 = vadd.f32 0.0, %v5572
        %v5574 = vpop.f32.mrf.mxu0
        %v5575 = vadd.f32 0.0, %v5574
        %v5576 = vpop.f32.mrf.mxu0
        %v5577 = vpop.f32.mrf.mxu0
        %5578 = vdwg.mxu0
        %5579 = vmatprep.subr.bf16.mxu0 0
        %5580 = vmatpush1.bf16.msra.mxu0 0
        %5581 = vmatprep.subr.bf16.mxu0 0
        %5582 = vmatpush1.bf16.msra.mxu0 0
        %5583 = vmatprep.subr.bf16.mxu0 0
        %5584 = vmatpush1.bf16.msra.mxu0 0
        %5585 = vmatprep.subr.bf16.mxu0 0
        %5586 = vmatpush1.bf16.msra.mxu0 0
        %5587 = vmatprep.subr.bf16.mxu0 0
        %5588 = vmatpush1.bf16.msra.mxu0 0
        %5589 = vmatprep.subr.bf16.mxu0 0
        %5590 = vmatpush1.bf16.msra.mxu0 0
        %5591 = vmatprep.subr.bf16.mxu0 0
        %5592 = vmatpush1.bf16.msra.mxu0 0
        %5593 = vmatprep.subr.bf16.mxu0 %v5527
        %5594 = vmatpush1.bf16.msra.mxu0 %v5524
        %5595 = vmatprep.subr.bf16.mxu0 0
        %5596 = vmatpush2.bf16.msra.mxu0 0
        %5597 = vmatprep.subr.bf16.mxu0 0
        %5598 = vmatpush2.bf16.msra.mxu0 0
        %5599 = vmatprep.subr.bf16.mxu0 0
        %5600 = vmatpush2.bf16.msra.mxu0 0
        %5601 = vmatprep.subr.bf16.mxu0 0
        %5602 = vmatpush2.bf16.msra.mxu0 0
        %5603 = vmatprep.subr.bf16.mxu0 0
        %5604 = vmatpush2.bf16.msra.mxu0 0
        %5605 = vmatprep.subr.bf16.mxu0 0
        %5606 = vmatpush2.bf16.msra.mxu0 0
        %5607 = vmatprep.subr.bf16.mxu0 0
        %5608 = vmatpush2.bf16.msra.mxu0 0
        %5609 = vmatprep.subr.bf16.mxu0 0
        %5610 = vmatpush2.bf16.msra.mxu0 0
        %5611 = vmatprep.mubr.bf16.mxu0 0
        %5612 = vmatmul.mubr.bf16.gmra.mxu0 %v5515
        %v5613 = vpop.f32.mrf.mxu0
        %v5614 = vadd.f32 0.0, %v5613
        %v5615 = vpop.f32.mrf.mxu0
        %v5616 = vadd.f32 0.0, %v5615
        %v5617 = vpop.f32.mrf.mxu0
        %v5618 = vpop.f32.mrf.mxu0
        %5619 = vdwg.mxu0
        %5620 = vmatprep.subr.bf16.mxu0 0
        %5621 = vmatpush1.bf16.msra.mxu0 0
        %5622 = vmatprep.subr.bf16.mxu0 0
        %5623 = vmatpush1.bf16.msra.mxu0 0
        %5624 = vmatprep.subr.bf16.mxu0 0
        %5625 = vmatpush1.bf16.msra.mxu0 0
        %5626 = vmatprep.subr.bf16.mxu0 0
        %5627 = vmatpush1.bf16.msra.mxu0 0
        %5628 = vmatprep.subr.bf16.mxu0 0
        %5629 = vmatpush1.bf16.msra.mxu0 0
        %5630 = vmatprep.subr.bf16.mxu0 0
        %5631 = vmatpush1.bf16.msra.mxu0 0
        %5632 = vmatprep.subr.bf16.mxu0 0
        %5633 = vmatpush1.bf16.msra.mxu0 0
        %5634 = vmatprep.subr.bf16.mxu0 %v5533
        %5635 = vmatpush1.bf16.msra.mxu0 %v5530
        %5636 = vmatprep.subr.bf16.mxu0 0
        %5637 = vmatpush2.bf16.msra.mxu0 0
        %5638 = vmatprep.subr.bf16.mxu0 0
        %5639 = vmatpush2.bf16.msra.mxu0 0
        %5640 = vmatprep.subr.bf16.mxu0 0
        %5641 = vmatpush2.bf16.msra.mxu0 0
        %5642 = vmatprep.subr.bf16.mxu0 0
        %5643 = vmatpush2.bf16.msra.mxu0 0
        %5644 = vmatprep.subr.bf16.mxu0 0
        %5645 = vmatpush2.bf16.msra.mxu0 0
        %5646 = vmatprep.subr.bf16.mxu0 0
        %5647 = vmatpush2.bf16.msra.mxu0 0
        %5648 = vmatprep.subr.bf16.mxu0 0
        %5649 = vmatpush2.bf16.msra.mxu0 0
        %5650 = vmatprep.subr.bf16.mxu0 0
        %5651 = vmatpush2.bf16.msra.mxu0 0
        %5652 = vmatprep.mubr.bf16.mxu0 0
        %5653 = vmatmul.mubr.bf16.gmra.mxu0 %v5515
        %v5654 = vpop.f32.mrf.mxu0
        %v5655 = vadd.f32 0.0, %v5654
        %v5656 = vpop.f32.mrf.mxu0
        %v5657 = vadd.f32 0.0, %v5656
        %v5658 = vpop.f32.mrf.mxu0
        %v5659 = vpop.f32.mrf.mxu0
        %5660 = vdwg.mxu0
        %5661 = vmatprep.subr.bf16.mxu0 0
        %5662 = vmatpush1.bf16.msra.mxu0 0
        %5663 = vmatprep.subr.bf16.mxu0 0
        %5664 = vmatpush1.bf16.msra.mxu0 0
        %5665 = vmatprep.subr.bf16.mxu0 0
        %5666 = vmatpush1.bf16.msra.mxu0 0
        %5667 = vmatprep.subr.bf16.mxu0 0
        %5668 = vmatpush1.bf16.msra.mxu0 0
        %5669 = vmatprep.subr.bf16.mxu0 0
        %5670 = vmatpush1.bf16.msra.mxu0 0
        %5671 = vmatprep.subr.bf16.mxu0 0
        %5672 = vmatpush1.bf16.msra.mxu0 0
        %5673 = vmatprep.subr.bf16.mxu0 0
        %5674 = vmatpush1.bf16.msra.mxu0 0
        %5675 = vmatprep.subr.bf16.mxu0 0
        %5676 = vmatpush1.bf16.msra.mxu0 %v5536
        %5677 = vmatprep.subr.bf16.mxu0 0
        %5678 = vmatpush2.bf16.msra.mxu0 0
        %5679 = vmatprep.subr.bf16.mxu0 0
        %5680 = vmatpush2.bf16.msra.mxu0 0
        %5681 = vmatprep.subr.bf16.mxu0 0
        %5682 = vmatpush2.bf16.msra.mxu0 0
        %5683 = vmatprep.subr.bf16.mxu0 0
        %5684 = vmatpush2.bf16.msra.mxu0 0
        %5685 = vmatprep.subr.bf16.mxu0 0
        %5686 = vmatpush2.bf16.msra.mxu0 0
        %5687 = vmatprep.subr.bf16.mxu0 0
        %5688 = vmatpush2.bf16.msra.mxu0 0
        %5689 = vmatprep.subr.bf16.mxu0 0
        %5690 = vmatpush2.bf16.msra.mxu0 0
        %5691 = vmatprep.subr.bf16.mxu0 0
        %5692 = vmatpush2.bf16.msra.mxu0 0
        %5693 = vmatprep.mubr.bf16.mxu0 0
        %5694 = vmatmul.mubr.bf16.gmra.mxu0 %v5515
        %v5695 = vpop.f32.mrf.mxu0
        %v5696 = vadd.f32 0.0, %v5695
        %v5697 = vpop.f32.mrf.mxu0
        %v5698 = vpop.f32.mrf.mxu0
        %v5699 = vpop.f32.mrf.mxu0
        %5700 = vdwg.mxu0
        %v5701 = vadd.f32 %v5481, %v5573
        %v5702 = vadd.f32 %v5482, %v5575
        %v5703 = vadd.f32 %v5483, %v5614
        %v5704 = vadd.f32 %v5484, %v5616
        %v5705 = vadd.f32 %v5485, %v5655
        %v5706 = vadd.f32 %v5486, %v5657
        %v5707 = vadd.f32 %v5487, %v5696
        %s5708 = scalar_lea.vmem %s1, 100
        %v5709 = vld [vmem:[%s5708] sm:$0xf]
        %5710 = vrot.lane.b32.xlu0 %v221, 35
        %v5711 = vpop.permute.xlu0 %5710
        %5712 = vrot.lane.b32.xlu0 %v220, 35
        %v5713 = vpop.permute.xlu0 %5712
        %5714 = vrot.lane.b32.xlu0 %v222, 35
        %v5715 = vpop.permute.xlu0 %5714
        %5716 = vrot.lane.b32.xlu0 %v230, 35
        %v5717 = vpop.permute.xlu0 %5716
        %5718 = vrot.lane.b32.xlu0 %v238, 35
        %v5719 = vpop.permute.xlu0 %5718
        %5720 = vrot.lane.b32.xlu0 %v237, 35
        %v5721 = vpop.permute.xlu0 %5720
        %5722 = vrot.lane.b32.xlu0 %v239, 35
        %v5723 = vpop.permute.xlu0 %5722
        %5724 = vrot.lane.b32.xlu0 %v4169, 35
        %v5725 = vpop.permute.xlu0 %5724
        %vm5726 = vcmask 285696
        %v5727 = vsel %vm5726, %v5711, %v5713
        %v5728 = vsel %vm5726, %v5713, %v5715
        %v5729 = vsel %vm5726, %v5715, %v5717
        %v5730 = vsel %vm5726, %v5717, %v5719
        %v5731 = vsel %vm5726, %v5719, %v5721
        %v5732 = vsel %vm5726, %v5721, %v5723
        %v5733 = vsel %vm5726, %v5723, %v5725
        %v5735 = vsel %vm264, %v5709, 0
        %v5738 = vsel %vm268, %v5727, 0
        %v5741 = vsel %vm268, %v5728, 0
        %v5744 = vsel %vm268, %v5729, 0
        %v5747 = vsel %vm268, %v5730, 0
        %v5750 = vsel %vm268, %v5731, 0
        %v5753 = vsel %vm268, %v5732, 0
        %v5756 = vsel %vm268, %v5733, 0
        %5758 = vmatprep.subr.bf16.mxu0 0
        %5759 = vmatpush1.bf16.msra.mxu0 0
        %5760 = vmatprep.subr.bf16.mxu0 0
        %5761 = vmatpush1.bf16.msra.mxu0 0
        %5762 = vmatprep.subr.bf16.mxu0 0
        %5763 = vmatpush1.bf16.msra.mxu0 0
        %5764 = vmatprep.subr.bf16.mxu0 0
        %5765 = vmatpush1.bf16.msra.mxu0 0
        %5766 = vmatprep.subr.bf16.mxu0 0
        %5767 = vmatpush1.bf16.msra.mxu0 0
        %5768 = vmatprep.subr.bf16.mxu0 0
        %5769 = vmatpush1.bf16.msra.mxu0 0
        %5770 = vmatprep.subr.bf16.mxu0 0
        %5771 = vmatpush1.bf16.msra.mxu0 0
        %5772 = vmatprep.subr.bf16.mxu0 %v5741
        %5773 = vmatpush1.bf16.msra.mxu0 %v5738
        %5774 = vmatprep.subr.bf16.mxu0 0
        %5775 = vmatpush2.bf16.msra.mxu0 0
        %5776 = vmatprep.subr.bf16.mxu0 0
        %5777 = vmatpush2.bf16.msra.mxu0 0
        %5778 = vmatprep.subr.bf16.mxu0 0
        %5779 = vmatpush2.bf16.msra.mxu0 0
        %5780 = vmatprep.subr.bf16.mxu0 0
        %5781 = vmatpush2.bf16.msra.mxu0 0
        %5782 = vmatprep.subr.bf16.mxu0 0
        %5783 = vmatpush2.bf16.msra.mxu0 0
        %5784 = vmatprep.subr.bf16.mxu0 0
        %5785 = vmatpush2.bf16.msra.mxu0 0
        %5786 = vmatprep.subr.bf16.mxu0 0
        %5787 = vmatpush2.bf16.msra.mxu0 0
        %5788 = vmatprep.subr.bf16.mxu0 0
        %5789 = vmatpush2.bf16.msra.mxu0 0
        %5790 = vmatprep.mubr.bf16.mxu0 0
        %5791 = vmatmul.mubr.bf16.gmra.mxu0 %v5735
        %v5792 = vpop.f32.mrf.mxu0
        %v5793 = vadd.f32 0.0, %v5792
        %v5794 = vpop.f32.mrf.mxu0
        %v5795 = vadd.f32 0.0, %v5794
        %v5796 = vpop.f32.mrf.mxu0
        %v5797 = vpop.f32.mrf.mxu0
        %5798 = vdwg.mxu0
        %5799 = vmatprep.subr.bf16.mxu0 0
        %5800 = vmatpush1.bf16.msra.mxu0 0
        %5801 = vmatprep.subr.bf16.mxu0 0
        %5802 = vmatpush1.bf16.msra.mxu0 0
        %5803 = vmatprep.subr.bf16.mxu0 0
        %5804 = vmatpush1.bf16.msra.mxu0 0
        %5805 = vmatprep.subr.bf16.mxu0 0
        %5806 = vmatpush1.bf16.msra.mxu0 0
        %5807 = vmatprep.subr.bf16.mxu0 0
        %5808 = vmatpush1.bf16.msra.mxu0 0
        %5809 = vmatprep.subr.bf16.mxu0 0
        %5810 = vmatpush1.bf16.msra.mxu0 0
        %5811 = vmatprep.subr.bf16.mxu0 0
        %5812 = vmatpush1.bf16.msra.mxu0 0
        %5813 = vmatprep.subr.bf16.mxu0 %v5747
        %5814 = vmatpush1.bf16.msra.mxu0 %v5744
        %5815 = vmatprep.subr.bf16.mxu0 0
        %5816 = vmatpush2.bf16.msra.mxu0 0
        %5817 = vmatprep.subr.bf16.mxu0 0
        %5818 = vmatpush2.bf16.msra.mxu0 0
        %5819 = vmatprep.subr.bf16.mxu0 0
        %5820 = vmatpush2.bf16.msra.mxu0 0
        %5821 = vmatprep.subr.bf16.mxu0 0
        %5822 = vmatpush2.bf16.msra.mxu0 0
        %5823 = vmatprep.subr.bf16.mxu0 0
        %5824 = vmatpush2.bf16.msra.mxu0 0
        %5825 = vmatprep.subr.bf16.mxu0 0
        %5826 = vmatpush2.bf16.msra.mxu0 0
        %5827 = vmatprep.subr.bf16.mxu0 0
        %5828 = vmatpush2.bf16.msra.mxu0 0
        %5829 = vmatprep.subr.bf16.mxu0 0
        %5830 = vmatpush2.bf16.msra.mxu0 0
        %5831 = vmatprep.mubr.bf16.mxu0 0
        %5832 = vmatmul.mubr.bf16.gmra.mxu0 %v5735
        %v5833 = vpop.f32.mrf.mxu0
        %v5834 = vadd.f32 0.0, %v5833
        %v5835 = vpop.f32.mrf.mxu0
        %v5836 = vadd.f32 0.0, %v5835
        %v5837 = vpop.f32.mrf.mxu0
        %v5838 = vpop.f32.mrf.mxu0
        %5839 = vdwg.mxu0
        %5840 = vmatprep.subr.bf16.mxu0 0
        %5841 = vmatpush1.bf16.msra.mxu0 0
        %5842 = vmatprep.subr.bf16.mxu0 0
        %5843 = vmatpush1.bf16.msra.mxu0 0
        %5844 = vmatprep.subr.bf16.mxu0 0
        %5845 = vmatpush1.bf16.msra.mxu0 0
        %5846 = vmatprep.subr.bf16.mxu0 0
        %5847 = vmatpush1.bf16.msra.mxu0 0
        %5848 = vmatprep.subr.bf16.mxu0 0
        %5849 = vmatpush1.bf16.msra.mxu0 0
        %5850 = vmatprep.subr.bf16.mxu0 0
        %5851 = vmatpush1.bf16.msra.mxu0 0
        %5852 = vmatprep.subr.bf16.mxu0 0
        %5853 = vmatpush1.bf16.msra.mxu0 0
        %5854 = vmatprep.subr.bf16.mxu0 %v5753
        %5855 = vmatpush1.bf16.msra.mxu0 %v5750
        %5856 = vmatprep.subr.bf16.mxu0 0
        %5857 = vmatpush2.bf16.msra.mxu0 0
        %5858 = vmatprep.subr.bf16.mxu0 0
        %5859 = vmatpush2.bf16.msra.mxu0 0
        %5860 = vmatprep.subr.bf16.mxu0 0
        %5861 = vmatpush2.bf16.msra.mxu0 0
        %5862 = vmatprep.subr.bf16.mxu0 0
        %5863 = vmatpush2.bf16.msra.mxu0 0
        %5864 = vmatprep.subr.bf16.mxu0 0
        %5865 = vmatpush2.bf16.msra.mxu0 0
        %5866 = vmatprep.subr.bf16.mxu0 0
        %5867 = vmatpush2.bf16.msra.mxu0 0
        %5868 = vmatprep.subr.bf16.mxu0 0
        %5869 = vmatpush2.bf16.msra.mxu0 0
        %5870 = vmatprep.subr.bf16.mxu0 0
        %5871 = vmatpush2.bf16.msra.mxu0 0
        %5872 = vmatprep.mubr.bf16.mxu0 0
        %5873 = vmatmul.mubr.bf16.gmra.mxu0 %v5735
        %v5874 = vpop.f32.mrf.mxu0
        %v5875 = vadd.f32 0.0, %v5874
        %v5876 = vpop.f32.mrf.mxu0
        %v5877 = vadd.f32 0.0, %v5876
        %v5878 = vpop.f32.mrf.mxu0
        %v5879 = vpop.f32.mrf.mxu0
        %5880 = vdwg.mxu0
        %5881 = vmatprep.subr.bf16.mxu0 0
        %5882 = vmatpush1.bf16.msra.mxu0 0
        %5883 = vmatprep.subr.bf16.mxu0 0
        %5884 = vmatpush1.bf16.msra.mxu0 0
        %5885 = vmatprep.subr.bf16.mxu0 0
        %5886 = vmatpush1.bf16.msra.mxu0 0
        %5887 = vmatprep.subr.bf16.mxu0 0
        %5888 = vmatpush1.bf16.msra.mxu0 0
        %5889 = vmatprep.subr.bf16.mxu0 0
        %5890 = vmatpush1.bf16.msra.mxu0 0
        %5891 = vmatprep.subr.bf16.mxu0 0
        %5892 = vmatpush1.bf16.msra.mxu0 0
        %5893 = vmatprep.subr.bf16.mxu0 0
        %5894 = vmatpush1.bf16.msra.mxu0 0
        %5895 = vmatprep.subr.bf16.mxu0 0
        %5896 = vmatpush1.bf16.msra.mxu0 %v5756
        %5897 = vmatprep.subr.bf16.mxu0 0
        %5898 = vmatpush2.bf16.msra.mxu0 0
        %5899 = vmatprep.subr.bf16.mxu0 0
        %5900 = vmatpush2.bf16.msra.mxu0 0
        %5901 = vmatprep.subr.bf16.mxu0 0
        %5902 = vmatpush2.bf16.msra.mxu0 0
        %5903 = vmatprep.subr.bf16.mxu0 0
        %5904 = vmatpush2.bf16.msra.mxu0 0
        %5905 = vmatprep.subr.bf16.mxu0 0
        %5906 = vmatpush2.bf16.msra.mxu0 0
        %5907 = vmatprep.subr.bf16.mxu0 0
        %5908 = vmatpush2.bf16.msra.mxu0 0
        %5909 = vmatprep.subr.bf16.mxu0 0
        %5910 = vmatpush2.bf16.msra.mxu0 0
        %5911 = vmatprep.subr.bf16.mxu0 0
        %5912 = vmatpush2.bf16.msra.mxu0 0
        %5913 = vmatprep.mubr.bf16.mxu0 0
        %5914 = vmatmul.mubr.bf16.gmra.mxu0 %v5735
        %v5915 = vpop.f32.mrf.mxu0
        %v5916 = vadd.f32 0.0, %v5915
        %v5917 = vpop.f32.mrf.mxu0
        %v5918 = vpop.f32.mrf.mxu0
        %v5919 = vpop.f32.mrf.mxu0
        %5920 = vdwg.mxu0
        %v5921 = vadd.f32 %v5701, %v5793
        %v5922 = vadd.f32 %v5702, %v5795
        %v5923 = vadd.f32 %v5703, %v5834
        %v5924 = vadd.f32 %v5704, %v5836
        %v5925 = vadd.f32 %v5705, %v5875
        %v5926 = vadd.f32 %v5706, %v5877
        %v5927 = vadd.f32 %v5707, %v5916
        %s5928 = scalar_lea.vmem %s1, 104
        %v5929 = vld [vmem:[%s5928] sm:$0xf]
        %5930 = vrot.lane.b32.xlu0 %v221, 34
        %v5931 = vpop.permute.xlu0 %5930
        %5932 = vrot.lane.b32.xlu0 %v220, 34
        %v5933 = vpop.permute.xlu0 %5932
        %5934 = vrot.lane.b32.xlu0 %v222, 34
        %v5935 = vpop.permute.xlu0 %5934
        %5936 = vrot.lane.b32.xlu0 %v230, 34
        %v5937 = vpop.permute.xlu0 %5936
        %5938 = vrot.lane.b32.xlu0 %v238, 34
        %v5939 = vpop.permute.xlu0 %5938
        %5940 = vrot.lane.b32.xlu0 %v237, 34
        %v5941 = vpop.permute.xlu0 %5940
        %5942 = vrot.lane.b32.xlu0 %v239, 34
        %v5943 = vpop.permute.xlu0 %5942
        %5944 = vrot.lane.b32.xlu0 %v4169, 34
        %v5945 = vpop.permute.xlu0 %5944
        %vm5946 = vcmask 277504
        %v5947 = vsel %vm5946, %v5931, %v5933
        %v5948 = vsel %vm5946, %v5933, %v5935
        %v5949 = vsel %vm5946, %v5935, %v5937
        %v5950 = vsel %vm5946, %v5937, %v5939
        %v5951 = vsel %vm5946, %v5939, %v5941
        %v5952 = vsel %vm5946, %v5941, %v5943
        %v5953 = vsel %vm5946, %v5943, %v5945
        %v5955 = vsel %vm264, %v5929, 0
        %v5958 = vsel %vm268, %v5947, 0
        %v5961 = vsel %vm268, %v5948, 0
        %v5964 = vsel %vm268, %v5949, 0
        %v5967 = vsel %vm268, %v5950, 0
        %v5970 = vsel %vm268, %v5951, 0
        %v5973 = vsel %vm268, %v5952, 0
        %v5976 = vsel %vm268, %v5953, 0
        %5978 = vmatprep.subr.bf16.mxu0 0
        %5979 = vmatpush1.bf16.msra.mxu0 0
        %5980 = vmatprep.subr.bf16.mxu0 0
        %5981 = vmatpush1.bf16.msra.mxu0 0
        %5982 = vmatprep.subr.bf16.mxu0 0
        %5983 = vmatpush1.bf16.msra.mxu0 0
        %5984 = vmatprep.subr.bf16.mxu0 0
        %5985 = vmatpush1.bf16.msra.mxu0 0
        %5986 = vmatprep.subr.bf16.mxu0 0
        %5987 = vmatpush1.bf16.msra.mxu0 0
        %5988 = vmatprep.subr.bf16.mxu0 0
        %5989 = vmatpush1.bf16.msra.mxu0 0
        %5990 = vmatprep.subr.bf16.mxu0 0
        %5991 = vmatpush1.bf16.msra.mxu0 0
        %5992 = vmatprep.subr.bf16.mxu0 %v5961
        %5993 = vmatpush1.bf16.msra.mxu0 %v5958
        %5994 = vmatprep.subr.bf16.mxu0 0
        %5995 = vmatpush2.bf16.msra.mxu0 0
        %5996 = vmatprep.subr.bf16.mxu0 0
        %5997 = vmatpush2.bf16.msra.mxu0 0
        %5998 = vmatprep.subr.bf16.mxu0 0
        %5999 = vmatpush2.bf16.msra.mxu0 0
        %6000 = vmatprep.subr.bf16.mxu0 0
        %6001 = vmatpush2.bf16.msra.mxu0 0
        %6002 = vmatprep.subr.bf16.mxu0 0
        %6003 = vmatpush2.bf16.msra.mxu0 0
        %6004 = vmatprep.subr.bf16.mxu0 0
        %6005 = vmatpush2.bf16.msra.mxu0 0
        %6006 = vmatprep.subr.bf16.mxu0 0
        %6007 = vmatpush2.bf16.msra.mxu0 0
        %6008 = vmatprep.subr.bf16.mxu0 0
        %6009 = vmatpush2.bf16.msra.mxu0 0
        %6010 = vmatprep.mubr.bf16.mxu0 0
        %6011 = vmatmul.mubr.bf16.gmra.mxu0 %v5955
        %v6012 = vpop.f32.mrf.mxu0
        %v6013 = vadd.f32 0.0, %v6012
        %v6014 = vpop.f32.mrf.mxu0
        %v6015 = vadd.f32 0.0, %v6014
        %v6016 = vpop.f32.mrf.mxu0
        %v6017 = vpop.f32.mrf.mxu0
        %6018 = vdwg.mxu0
        %6019 = vmatprep.subr.bf16.mxu0 0
        %6020 = vmatpush1.bf16.msra.mxu0 0
        %6021 = vmatprep.subr.bf16.mxu0 0
        %6022 = vmatpush1.bf16.msra.mxu0 0
        %6023 = vmatprep.subr.bf16.mxu0 0
        %6024 = vmatpush1.bf16.msra.mxu0 0
        %6025 = vmatprep.subr.bf16.mxu0 0
        %6026 = vmatpush1.bf16.msra.mxu0 0
        %6027 = vmatprep.subr.bf16.mxu0 0
        %6028 = vmatpush1.bf16.msra.mxu0 0
        %6029 = vmatprep.subr.bf16.mxu0 0
        %6030 = vmatpush1.bf16.msra.mxu0 0
        %6031 = vmatprep.subr.bf16.mxu0 0
        %6032 = vmatpush1.bf16.msra.mxu0 0
        %6033 = vmatprep.subr.bf16.mxu0 %v5967
        %6034 = vmatpush1.bf16.msra.mxu0 %v5964
        %6035 = vmatprep.subr.bf16.mxu0 0
        %6036 = vmatpush2.bf16.msra.mxu0 0
        %6037 = vmatprep.subr.bf16.mxu0 0
        %6038 = vmatpush2.bf16.msra.mxu0 0
        %6039 = vmatprep.subr.bf16.mxu0 0
        %6040 = vmatpush2.bf16.msra.mxu0 0
        %6041 = vmatprep.subr.bf16.mxu0 0
        %6042 = vmatpush2.bf16.msra.mxu0 0
        %6043 = vmatprep.subr.bf16.mxu0 0
        %6044 = vmatpush2.bf16.msra.mxu0 0
        %6045 = vmatprep.subr.bf16.mxu0 0
        %6046 = vmatpush2.bf16.msra.mxu0 0
        %6047 = vmatprep.subr.bf16.mxu0 0
        %6048 = vmatpush2.bf16.msra.mxu0 0
        %6049 = vmatprep.subr.bf16.mxu0 0
        %6050 = vmatpush2.bf16.msra.mxu0 0
        %6051 = vmatprep.mubr.bf16.mxu0 0
        %6052 = vmatmul.mubr.bf16.gmra.mxu0 %v5955
        %v6053 = vpop.f32.mrf.mxu0
        %v6054 = vadd.f32 0.0, %v6053
        %v6055 = vpop.f32.mrf.mxu0
        %v6056 = vadd.f32 0.0, %v6055
        %v6057 = vpop.f32.mrf.mxu0
        %v6058 = vpop.f32.mrf.mxu0
        %6059 = vdwg.mxu0
        %6060 = vmatprep.subr.bf16.mxu0 0
        %6061 = vmatpush1.bf16.msra.mxu0 0
        %6062 = vmatprep.subr.bf16.mxu0 0
        %6063 = vmatpush1.bf16.msra.mxu0 0
        %6064 = vmatprep.subr.bf16.mxu0 0
        %6065 = vmatpush1.bf16.msra.mxu0 0
        %6066 = vmatprep.subr.bf16.mxu0 0
        %6067 = vmatpush1.bf16.msra.mxu0 0
        %6068 = vmatprep.subr.bf16.mxu0 0
        %6069 = vmatpush1.bf16.msra.mxu0 0
        %6070 = vmatprep.subr.bf16.mxu0 0
        %6071 = vmatpush1.bf16.msra.mxu0 0
        %6072 = vmatprep.subr.bf16.mxu0 0
        %6073 = vmatpush1.bf16.msra.mxu0 0
        %6074 = vmatprep.subr.bf16.mxu0 %v5973
        %6075 = vmatpush1.bf16.msra.mxu0 %v5970
        %6076 = vmatprep.subr.bf16.mxu0 0
        %6077 = vmatpush2.bf16.msra.mxu0 0
        %6078 = vmatprep.subr.bf16.mxu0 0
        %6079 = vmatpush2.bf16.msra.mxu0 0
        %6080 = vmatprep.subr.bf16.mxu0 0
        %6081 = vmatpush2.bf16.msra.mxu0 0
        %6082 = vmatprep.subr.bf16.mxu0 0
        %6083 = vmatpush2.bf16.msra.mxu0 0
        %6084 = vmatprep.subr.bf16.mxu0 0
        %6085 = vmatpush2.bf16.msra.mxu0 0
        %6086 = vmatprep.subr.bf16.mxu0 0
        %6087 = vmatpush2.bf16.msra.mxu0 0
        %6088 = vmatprep.subr.bf16.mxu0 0
        %6089 = vmatpush2.bf16.msra.mxu0 0
        %6090 = vmatprep.subr.bf16.mxu0 0
        %6091 = vmatpush2.bf16.msra.mxu0 0
        %6092 = vmatprep.mubr.bf16.mxu0 0
        %6093 = vmatmul.mubr.bf16.gmra.mxu0 %v5955
        %v6094 = vpop.f32.mrf.mxu0
        %v6095 = vadd.f32 0.0, %v6094
        %v6096 = vpop.f32.mrf.mxu0
        %v6097 = vadd.f32 0.0, %v6096
        %v6098 = vpop.f32.mrf.mxu0
        %v6099 = vpop.f32.mrf.mxu0
        %6100 = vdwg.mxu0
        %6101 = vmatprep.subr.bf16.mxu0 0
        %6102 = vmatpush1.bf16.msra.mxu0 0
        %6103 = vmatprep.subr.bf16.mxu0 0
        %6104 = vmatpush1.bf16.msra.mxu0 0
        %6105 = vmatprep.subr.bf16.mxu0 0
        %6106 = vmatpush1.bf16.msra.mxu0 0
        %6107 = vmatprep.subr.bf16.mxu0 0
        %6108 = vmatpush1.bf16.msra.mxu0 0
        %6109 = vmatprep.subr.bf16.mxu0 0
        %6110 = vmatpush1.bf16.msra.mxu0 0
        %6111 = vmatprep.subr.bf16.mxu0 0
        %6112 = vmatpush1.bf16.msra.mxu0 0
        %6113 = vmatprep.subr.bf16.mxu0 0
        %6114 = vmatpush1.bf16.msra.mxu0 0
        %6115 = vmatprep.subr.bf16.mxu0 0
        %6116 = vmatpush1.bf16.msra.mxu0 %v5976
        %6117 = vmatprep.subr.bf16.mxu0 0
        %6118 = vmatpush2.bf16.msra.mxu0 0
        %6119 = vmatprep.subr.bf16.mxu0 0
        %6120 = vmatpush2.bf16.msra.mxu0 0
        %6121 = vmatprep.subr.bf16.mxu0 0
        %6122 = vmatpush2.bf16.msra.mxu0 0
        %6123 = vmatprep.subr.bf16.mxu0 0
        %6124 = vmatpush2.bf16.msra.mxu0 0
        %6125 = vmatprep.subr.bf16.mxu0 0
        %6126 = vmatpush2.bf16.msra.mxu0 0
        %6127 = vmatprep.subr.bf16.mxu0 0
        %6128 = vmatpush2.bf16.msra.mxu0 0
        %6129 = vmatprep.subr.bf16.mxu0 0
        %6130 = vmatpush2.bf16.msra.mxu0 0
        %6131 = vmatprep.subr.bf16.mxu0 0
        %6132 = vmatpush2.bf16.msra.mxu0 0
        %6133 = vmatprep.mubr.bf16.mxu0 0
        %6134 = vmatmul.mubr.bf16.gmra.mxu0 %v5955
        %v6135 = vpop.f32.mrf.mxu0
        %v6136 = vadd.f32 0.0, %v6135
        %v6137 = vpop.f32.mrf.mxu0
        %v6138 = vpop.f32.mrf.mxu0
        %v6139 = vpop.f32.mrf.mxu0
        %6140 = vdwg.mxu0
        %v6141 = vadd.f32 %v5921, %v6013
        %v6142 = vadd.f32 %v5922, %v6015
        %v6143 = vadd.f32 %v5923, %v6054
        %v6144 = vadd.f32 %v5924, %v6056
        %v6145 = vadd.f32 %v5925, %v6095
        %v6146 = vadd.f32 %v5926, %v6097
        %v6147 = vadd.f32 %v5927, %v6136
        %v6148 = vld [vmem:[%s2] sm:$0xff]
        %v6150 = vlaneseq
        %v6151 = vshrl.u32 %v6150, 7
        %v6152 = vsub.s32 0, %v6151
        %v6153 = vrot.slane %v6148, %v6152
        %v6154 = vlaneseq
        %v6155 = vshrl.u32 %v6154, 7
        %v6156 = vsub.s32 1, %v6155
        %v6157 = vrot.slane %v6148, %v6156
        %v6158 = vlaneseq
        %v6159 = vshrl.u32 %v6158, 7
        %v6160 = vsub.s32 2, %v6159
        %v6161 = vrot.slane %v6148, %v6160
        %v6162 = vlaneseq
        %v6163 = vshrl.u32 %v6162, 7
        %v6164 = vsub.s32 3, %v6163
        %v6165 = vrot.slane %v6148, %v6164
        %v6166 = vlaneseq
        %v6167 = vshrl.u32 %v6166, 7
        %v6168 = vsub.s32 4, %v6167
        %v6169 = vrot.slane %v6148, %v6168
        %v6170 = vlaneseq
        %v6171 = vshrl.u32 %v6170, 7
        %v6172 = vsub.s32 5, %v6171
        %v6173 = vrot.slane %v6148, %v6172
        %v6174 = vlaneseq
        %v6175 = vshrl.u32 %v6174, 7
        %v6176 = vsub.s32 6, %v6175
        %v6177 = vrot.slane %v6148, %v6176
        %v6185 = vmul.f32 %v6141, %v6153
        %v6186 = vmul.f32 %v6142, %v6157
        %v6187 = vmul.f32 %v6143, %v6161
        %v6188 = vmul.f32 %v6144, %v6165
        %v6189 = vmul.f32 %v6145, %v6169
        %v6190 = vmul.f32 %v6146, %v6173
        %v6191 = vmul.f32 %v6147, %v6177
        %v6192 = vadd.f32 %v6185, %v6186
        %v6193 = vadd.f32 %v6192, %v6187
        %v6194 = vadd.f32 %v6193, %v6188
        %v6195 = vadd.f32 %v6194, %v6189
        %v6196 = vadd.f32 %v6195, %v6190
        %v6197 = vadd.f32 %v6196, %v6191
        %6198 = vadd.xlane.f32.xlu0 %v6197
        %v6199 = vpop.xlane.xlu0 %6198
        %v6200 = vmul.f32 %v6199, 0.001953125
        %v6201 = vsub.f32 %v6141, %v6200
        %v6202 = vsub.f32 %v6142, %v6200
        %v6203 = vsub.f32 %v6143, %v6200
        %v6204 = vsub.f32 %v6144, %v6200
        %v6205 = vsub.f32 %v6145, %v6200
        %v6206 = vsub.f32 %v6146, %v6200
        %v6207 = vsub.f32 %v6147, %v6200
        %v6208 = vmul.f32 %v6201, %v6201
        %v6209 = vmul.f32 %v6202, %v6202
        %v6210 = vmul.f32 %v6203, %v6203
        %v6211 = vmul.f32 %v6204, %v6204
        %v6212 = vmul.f32 %v6205, %v6205
        %v6213 = vmul.f32 %v6206, %v6206
        %v6214 = vmul.f32 %v6207, %v6207
        %v6215 = vmul.f32 %v6208, %v6153
        %v6216 = vmul.f32 %v6209, %v6157
        %v6217 = vmul.f32 %v6210, %v6161
        %v6218 = vmul.f32 %v6211, %v6165
        %v6219 = vmul.f32 %v6212, %v6169
        %v6220 = vmul.f32 %v6213, %v6173
        %v6221 = vmul.f32 %v6214, %v6177
        %v6222 = vadd.f32 %v6215, %v6216
        %v6223 = vadd.f32 %v6222, %v6217
        %v6224 = vadd.f32 %v6223, %v6218
        %v6225 = vadd.f32 %v6224, %v6219
        %v6226 = vadd.f32 %v6225, %v6220
        %v6227 = vadd.f32 %v6226, %v6221
        %6228 = vadd.xlane.f32.xlu0 %v6227
        %v6229 = vpop.xlane.xlu0 %6228
        %v6230 = vmul.f32 %v6229, 0.001953125
        %v6231 = vadd.f32 %v6230, 1e-05
        %v6232 = vrsqrt.pop %v6231
        %v6233 = vmul.f32 %v6201, %v6232
        %v6234 = vmul.f32 %v6202, %v6232
        %v6235 = vmul.f32 %v6203, %v6232
        %v6236 = vmul.f32 %v6204, %v6232
        %v6237 = vmul.f32 %v6205, %v6232
        %v6238 = vmul.f32 %v6206, %v6232
        %v6239 = vmul.f32 %v6207, %v6232
        %s6240 = sld [smem:[#allocation2]]
        %vm6241 = vcmp.ge.f32.partialorder %v6233, 0.0
        %vm6242 = vcmp.ge.f32.partialorder %v6234, 0.0
        %vm6243 = vcmp.ge.f32.partialorder %v6235, 0.0
        %vm6244 = vcmp.ge.f32.partialorder %v6236, 0.0
        %vm6245 = vcmp.ge.f32.partialorder %v6237, 0.0
        %vm6246 = vcmp.ge.f32.partialorder %v6238, 0.0
        %vm6247 = vcmp.ge.f32.partialorder %v6239, 0.0
        %v6248 = vstv %s6240
        %v6249 = vmul.f32 %v6233, %v6248
        %v6250 = vmul.f32 %v6234, %v6248
        %v6251 = vmul.f32 %v6235, %v6248
        %v6252 = vmul.f32 %v6236, %v6248
        %v6253 = vmul.f32 %v6237, %v6248
        %v6254 = vmul.f32 %v6238, %v6248
        %v6255 = vmul.f32 %v6239, %v6248
        %v6256 = vsel %vm6241, %v6233, %v6249
        %v6257 = vsel %vm6242, %v6234, %v6250
        %v6258 = vsel %vm6243, %v6235, %v6251
        %v6259 = vsel %vm6244, %v6236, %v6252
        %v6260 = vsel %vm6245, %v6237, %v6253
        %v6261 = vsel %vm6246, %v6238, %v6254
        %v6262 = vsel %vm6247, %v6239, %v6255
        %6263 = vst [vmem:[%s191] sm:$0xff] %v6256
        %6264 = vst [vmem:[%s191 + $0x8] sm:$0xff] %v6257
        %6265 = vst [vmem:[%s191 + $0x10] sm:$0xff] %v6258
        %6266 = vst [vmem:[%s191 + $0x18] sm:$0xff] %v6259
        %6267 = vst [vmem:[%s191 + $0x20] sm:$0xff] %v6260
        %6268 = vst [vmem:[%s191 + $0x28] sm:$0xff] %v6261
        %6269 = vst [vmem:[%s191 + $0x30] sm:$0xff] %v6262
        %s6270 = sand.u32 %s116, 1
        %s6271 = scalar_lea.sflag [#allocation4], %s6270
        %s6272 = sand.u32 %s116, 1
        %s6273 = smul.addr %s6272, 56
        %s6274 = scalar_lea.vmem [#allocation3], %s6273
        // Predicated region
        $region37: #{tpu_custom_call.1} parent=35 // pred_check
          %p6275 = pneg %p126
        $region38: #{tpu_custom_call.1} parent=35 // pred_check_branch
          %6277 = sbr.rel (%p6275) target = $region40
        $region39: #{tpu_custom_call.1} parent=35 // pred_region
          %s6279 = ssub.s32 896, 896
          %6280 = vsyncadd %s6271, %s6279
          %s6281 = smul.addr %s19, 7
          %s6282 = smul.addr %s6281, 128
          %s6283 = scalar_lea.hbm %s4, %s6282
          %s6285 = sshll.u32 %s6274, 4
          %s6286 = int_to_ptr.vmem [resolvable:$true] %s6285
          %6288 = dma.vmem_to_hbm [thread:$0]  %s6286, 896, %s6283, %s6271
        $region40: #{tpu_custom_call.1} parent=35 // pred_fallthru
          _
      $region36: #{tpu_custom_call.1} parent=5 // pred_fallthru
        _
      %p6289 = scmp.le.s32.totalorder 2, %s14
      // Predicated region
      $region41: #{tpu_custom_call.1} parent=5 // pred_check
        %p6290 = pneg %p6289
      $region42: #{tpu_custom_call.1} parent=5 // pred_check_branch
        %6292 = sbr.rel (%p6290) target = $region44
      $region43: #{tpu_custom_call.1} parent=5 // pred_region
        %s6293 = ssub.s32 %s14, 2
        // Predicated region
        $region45: #{tpu_custom_call.1} parent=43 // pred_check
          %p6294 = pneg %p132
        $region46: #{tpu_custom_call.1} parent=43 // pred_check_branch
          %6296 = sbr.rel (%p6294) target = $region48
        $region47: #{tpu_custom_call.1} parent=43 // pred_region
          %s6297 = sand.u32 %s117, 1
          %s6298 = scalar_lea.sflag [#allocation4], %s6297
          %s6299 = sand.u32 %s117, 1
          %s6300 = smul.addr %s6299, 56
          %s6301 = scalar_lea.vmem [#allocation3], %s6300
          %6302 = dma.done %s6298, 896
        $region48: #{tpu_custom_call.1} parent=43 // pred_fallthru
          _
      $region44: #{tpu_custom_call.1} parent=5 // pred_fallthru
        _
    $region6: #{tpu_custom_call.1} parent=1 // loop_footer
      %s18 = sadd.s32 1, %s14
    $region7: #{tpu_custom_call.1} parent=1 // loop_footer_branch
      %13 = sbr.rel target = $region3
    $region8: #{tpu_custom_call.1} parent=1 // loop_exit
      _
    %6303 = vsyncpa [#allocation4], 1
    %s6304 = scalar_lea.sflag [#allocation4], 1
    %6305 = vsyncpa %s6304, 1

</llo_original>
